<compile_context>
chip_gen: v7x
topology: tpu7x:2x2x1
jax: 0.10.0
libtpu: 0.0.40
codegen_flags: <defaults>
</compile_context>

<pallas_src>
import functools
import math

import jax
import jax.numpy as jnp
from jax.experimental import pallas as pl
from jax.experimental.pallas import tpu as pltpu

LANE = 128       # TPU lane width
SUBLANE = 8      # f32 sublane count


def _round_up(x, m):
    return (x + m - 1) // m * m


# --------------------------- fused decoder kernel ---------------------------
def make_decoder_kernel(num_layers, T, BP, HP, out_dim):
    """Fused two-branch stacked LSTM + Linear heads + reparametrize.

    Layouts (all lane/sublane tile aligned):
      hidden/cell state : (BP, HP)    [h_mean(H) | h_logvar(H) | zeros]
      gates             : (BP, 4*HP)  gate k lives in lanes [k*HP, (k+1)*HP)
    """
    GP = 4 * HP

    def lstm_cell(gates, c):
        # All gate slices are 128-lane aligned -> no cross-lane relayout on the
        # serial path.  Nonlinearities and state updates stay f32.
        i = jax.nn.sigmoid(gates[:, 0 * HP:1 * HP])
        f = jax.nn.sigmoid(gates[:, 1 * HP:2 * HP])
        g = jnp.tanh(gates[:, 2 * HP:3 * HP])
        o = jax.nn.sigmoid(gates[:, 3 * HP:4 * HP])
        c_new = f * c + i * g
        h_new = o * jnp.tanh(c_new)
        return h_new, c_new

    def kernel(*refs):
        x_ref = refs[0]                                  # (T*BP, D)        f32
        layer_refs = refs[1:1 + 3 * num_layers]          # wih/whh bf16, b f32
        wlin_ref = refs[1 + 3 * num_layers]              # (HP, 2*out_dim)  bf16
        blin_ref = refs[2 + 3 * num_layers]              # (1, 2*out_dim)   f32
        eps_ref = refs[3 + 3 * num_layers]               # (T*BP, out_dim)  f32
        out_ref = refs[4 + 3 * num_layers]               # (T*BP, 3*out_dim) f32
        preact_sc = refs[5 + 3 * num_layers]             # (T*BP, GP) f32 scratch

        # Layer-0 input projection hoisted over the whole sequence (one bulk
        # MXU pass), parked in VMEM scratch; per-step slices below are
        # sublane-aligned (BP = 8 rows).
        preact_sc[...] = (
            jnp.dot(x_ref[...].astype(jnp.bfloat16), layer_refs[0][...],
                    preferred_element_type=jnp.float32)
            + layer_refs[2][...])

        # Hoist the tiny bias broadcasts for layers >= 1 out of the t-loop
        # (JAX does not CSE broadcast_in_dim).
        bias_bcast = [None] * num_layers
        for l in range(1, num_layers):
            bias_bcast[l] = jnp.broadcast_to(layer_refs[3 * l + 2][...], (BP, GP))

        h = [jnp.zeros((BP, HP), jnp.float32) for _ in range(num_layers)]
        c = [jnp.zeros((BP, HP), jnp.float32) for _ in range(num_layers)]
        top = []
        for t in range(T):                               # static unroll (T small)
            # ---- layer 0: aligned preact slice + recurrent dot -------------
            g0 = preact_sc[t * BP:(t + 1) * BP, :] + jnp.dot(
                h[0].astype(jnp.bfloat16), layer_refs[1][...],
                preferred_element_type=jnp.float32)
            h[0], c[0] = lstm_cell(g0, c[0])
            x_t = h[0]
            # ---- layers >= 1: per-step input projection so the unrolled
            # dataflow wavefronts (layer l step t only needs layer l-1 step t)
            for l in range(1, num_layers):
                gl = (jnp.dot(x_t.astype(jnp.bfloat16), layer_refs[3 * l][...],
                              preferred_element_type=jnp.float32)
                      + jnp.dot(h[l].astype(jnp.bfloat16),
                                layer_refs[3 * l + 1][...],
                                preferred_element_type=jnp.float32)
                      + bias_bcast[l])
                h[l], c[l] = lstm_cell(gl, c[l])
                x_t = h[l]
            top.append(x_t)

        # Top-layer hidden sequence stays in vregs; sublane-aligned concat.
        hs = jnp.concatenate(top, axis=0)                # (T*BP, HP)

        # Fused mean/logvar Linear heads (block-diagonal weight) + reparam.
        lin = jnp.dot(hs.astype(jnp.bfloat16), wlin_ref[...],
                      preferred_element_type=jnp.float32) + blin_ref[...]
        mu = lin[:, :out_dim]
        logvar = lin[:, out_dim:2 * out_dim]
        z = eps_ref[...] * jnp.exp(0.5 * logvar) + mu
        # Single merged output buffer -> one writeback DMA; split in wrapper.
        out_ref[:, 0:2 * out_dim] = lin
        out_ref[:, 2 * out_dim:3 * out_dim] = z

    return kernel


# ----------------------- parameter fusion (done once) -----------------------
def prepare_decoder_params(params, num_layers):
    """Pre-fuse / pre-pad / pre-transpose PyTorch-layout weights once.

    Per layer:
      wih0      : (D, 4*HP)  bf16   gate k: cols [k*HP, k*HP+H)=mean, [+H,+2H)=logvar
      wih_l>0 / whh : (HP, 4*HP) bf16  rows [0,H)=h_mean, [H,2H)=h_logvar, rest 0
      b         : (1, 4*HP)  f32    b_ih + b_hh, zeros in pad lanes
      wlin      : (HP, 2*out_dim) bf16 ;  blin : (1, 2*out_dim) f32
    """
    H = params["mean_lstm_l0"]["w_hh"].shape[1]
    HP = _round_up(2 * H, LANE)
    GP = 4 * HP

    def fuse_gates_dense(w_m, w_l):      # shared dense input (layer 0)
        D = w_m.shape[1]
        out = jnp.zeros((D, GP), jnp.float32)
        for k in range(4):
            out = out.at[:, k * HP:k * HP + H].set(w_m[k * H:(k + 1) * H, :].T)
            out = out.at[:, k * HP + H:k * HP + 2 * H].set(w_l[k * H:(k + 1) * H, :].T)
        return out

    def fuse_gates_split(w_m, w_l):      # input is fused hidden [h_m|h_l|0]
        out = jnp.zeros((HP, GP), jnp.float32)
        for k in range(4):
            out = out.at[0:H, k * HP:k * HP + H].set(w_m[k * H:(k + 1) * H, :].T)
            out = out.at[H:2 * H, k * HP + H:k * HP + 2 * H].set(
                w_l[k * H:(k + 1) * H, :].T)
        return out

    def fuse_bias(b_m, b_l):
        out = jnp.zeros((1, GP), jnp.float32)
        for k in range(4):
            out = out.at[0, k * HP:k * HP + H].set(b_m[k * H:(k + 1) * H])
            out = out.at[0, k * HP + H:k * HP + 2 * H].set(b_l[k * H:(k + 1) * H])
        return out

    fused = {}
    for l in range(num_layers):
        pm = params[f"mean_lstm_l{l}"]
        pv = params[f"logvar_lstm_l{l}"]
        wih = fuse_gates_dense(pm["w_ih"], pv["w_ih"]) if l == 0 \
            else fuse_gates_split(pm["w_ih"], pv["w_ih"])
        whh = fuse_gates_split(pm["w_hh"], pv["w_hh"])
        fused[f"wih{l}"] = wih.astype(jnp.bfloat16)   # bf16 -> single-pass MXU
        fused[f"whh{l}"] = whh.astype(jnp.bfloat16)
        fused[f"b{l}"] = fuse_bias(pm["b_ih"] + pm["b_hh"], pv["b_ih"] + pv["b_hh"])

    lm, lv = params["mean_linear"], params["logvar_linear"]
    out_dim = lm["w"].shape[0]
    wlin = jnp.zeros((HP, 2 * out_dim), jnp.float32)
    wlin = wlin.at[0:H, :out_dim].set(lm["w"].T)
    wlin = wlin.at[H:2 * H, out_dim:].set(lv["w"].T)
    fused["wlin"] = wlin.astype(jnp.bfloat16)
    fused["blin"] = jnp.concatenate([lm["b"], lv["b"]]).reshape(1, 2 * out_dim)
    return fused


# ------------------------------- forward ------------------------------------
def decoder_forward(x, fused, eps, *, num_layers):
    """x: (B, T, input_dim) batch-first; eps: (B, T, output_dim) ~ N(0,1)."""
    B, T, D = x.shape
    HP = fused["whh0"].shape[0]
    out_dim = fused["wlin"].shape[1] // 2
    BP = _round_up(B, SUBLANE)            # pad batch to the f32 sublane tile

    def to_time_major(a, feat):
        a = jnp.transpose(a, (1, 0, 2))                  # (T, B, feat)
        a = jnp.pad(a, ((0, 0), (0, BP - B), (0, 0)))
        return a.reshape(T * BP, feat)

    x_tm = to_time_major(x, D)
    eps_tm = to_time_major(eps, out_dim)

    ins = [x_tm]
    for l in range(num_layers):
        ins += [fused[f"wih{l}"], fused[f"whh{l}"], fused[f"b{l}"]]
    ins += [fused["wlin"], fused["blin"], eps_tm]

    vmem = pl.BlockSpec(memory_space=pltpu.MemorySpace.VMEM)
    out2d = pl.pallas_call(
        make_decoder_kernel(num_layers, T, BP, HP, out_dim),
        out_shape=jax.ShapeDtypeStruct((T * BP, 3 * out_dim), jnp.float32),
        in_specs=[vmem] * len(ins),
        out_specs=vmem,
        scratch_shapes=[pltpu.VMEM((T * BP, 4 * HP), jnp.float32)],
    )(*ins)

    out = jnp.transpose(out2d.reshape(T, BP, 3 * out_dim)[:, :B, :], (1, 0, 2))
    return (out[..., :out_dim],
            out[..., out_dim:2 * out_dim],
            out[..., 2 * out_dim:])


# ------------------------- deterministic param init -------------------------
def init_params(key, input_dim, hidden_dim, output_dim, num_layers):
    params = {}
    k = 1.0 / math.sqrt(hidden_dim)

    def uniform(kk, shape):
        return jax.random.uniform(kk, shape, jnp.float32, -k, k)

    for prefix in ("mean", "logvar"):
        for l in range(num_layers):
            d_in = input_dim if l == 0 else hidden_dim
            key, k1, k2, k3, k4 = jax.random.split(key, 5)
            params[f"{prefix}_lstm_l{l}"] = dict(
                w_ih=uniform(k1, (4 * hidden_dim, d_in)),
                w_hh=uniform(k2, (4 * hidden_dim, hidden_dim)),
                b_ih=uniform(k3, (4 * hidden_dim,)),
                b_hh=uniform(k4, (4 * hidden_dim,)),
            )
        key, k1, k2 = jax.random.split(key, 3)
        params[f"{prefix}_linear"] = dict(
            w=uniform(k1, (output_dim, hidden_dim)),
            b=uniform(k2, (output_dim,)),
        )
    return params


# --------------------------- pure-JAX f32 reference --------------------------
_HI = jax.lax.Precision.HIGHEST   # reference only; no process-wide config change


def lstm_ref(x_bf, w_ih, w_hh, b_ih, b_hh):
    B = x_bf.shape[0]
    H = w_hh.shape[1]

    def step(carry, x_t):
        h, c = carry
        gates = (jnp.dot(x_t, w_ih.T, precision=_HI) + b_ih
                 + jnp.dot(h, w_hh.T, precision=_HI) + b_hh)
        i, f, g, o = jnp.split(gates, 4, axis=-1)
        i, f, o = jax.nn.sigmoid(i), jax.nn.sigmoid(f), jax.nn.sigmoid(o)
        g = jnp.tanh(g)
        c = f * c + i * g
        h = o * jnp.tanh(c)
        return (h, c), h

    init = (jnp.zeros((B, H), jnp.float32), jnp.zeros((B, H), jnp.float32))
    _, hs = jax.lax.scan(step, init, jnp.transpose(x_bf, (1, 0, 2)))
    return jnp.transpose(hs, (1, 0, 2))


def branch_ref(x, params, prefix, num_layers):
    h = x
    for l in range(num_layers):
        p = params[f"{prefix}_lstm_l{l}"]
        h = lstm_ref(h, p["w_ih"], p["w_hh"], p["b_ih"], p["b_hh"])
    lin = params[f"{prefix}_linear"]
    return jnp.dot(h, lin["w"].T, precision=_HI) + lin["b"]


# --------------------------------- main --------------------------------------
if __name__ == "__main__":
    B, T = 2, 8
    INPUT_DIM, HIDDEN_DIM, OUTPUT_DIM = 16, 32, 8
    NUM_LAYERS = 2          # args.decoder_layer

    key = jax.random.PRNGKey(0)
    key, xk, pk, ek = jax.random.split(key, 4)
    x = jax.random.normal(xk, (B, T, INPUT_DIM), jnp.float32)
    params = init_params(pk, INPUT_DIM, HIDDEN_DIM, OUTPUT_DIM, NUM_LAYERS)
    # External N(0,1) draw (replaces torch.FloatTensor(...).normal_()).
    eps = jax.random.normal(ek, (B, T, OUTPUT_DIM), jnp.float32)

    fused = prepare_decoder_params(params, NUM_LAYERS)   # once, outside jit
    fwd = jax.jit(functools.partial(decoder_forward, num_layers=NUM_LAYERS))
    mu, logvar, z = fwd(x, fused, eps)
    jax.block_until_ready((mu, logvar, z))

    # Correctness vs. a full-f32 reference (kernel matmuls are bf16 with f32
    # accumulation, so tolerances are bf16-grade).
    mu_ref = branch_ref(x, params, "mean", NUM_LAYERS)
    logvar_ref = branch_ref(x, params, "logvar", NUM_LAYERS)

    assert mu.shape == (B, T, OUTPUT_DIM)
    assert logvar.shape == (B, T, OUTPUT_DIM)
    assert z.shape == (B, T, OUTPUT_DIM)
    assert jnp.allclose(mu, mu_ref, atol=3e-2, rtol=3e-2), \
        float(jnp.max(jnp.abs(mu - mu_ref)))
    assert jnp.allclose(logvar, logvar_ref, atol=3e-2, rtol=3e-2), \
        float(jnp.max(jnp.abs(logvar - logvar_ref)))
    # Reparametrize math checked exactly against the kernel's own mu/logvar...
    z_expect = eps * jnp.exp(0.5 * logvar) + mu
    assert jnp.allclose(z, z_expect, atol=1e-3, rtol=1e-3), \
        float(jnp.max(jnp.abs(z - z_expect)))
    # ...and loosely against the f32 reference (propagated bf16 drift scaled by std).
    z_ref = eps * jnp.exp(0.5 * logvar_ref) + mu_ref
    assert jnp.allclose(z, z_ref, atol=1e-1, rtol=1e-1), \
        float(jnp.max(jnp.abs(z - z_ref)))

    print("KERNEL_OK")
</pallas_src>

<mosaic_0001>
module attributes {stable_mosaic.version = 11 : i64} {
  func.func @kernel(%arg0: memref<64x16xf32, #tpu.memory_space<vmem>>, %arg1: memref<16x512xbf16, #tpu.memory_space<vmem>>, %arg2: memref<128x512xbf16, #tpu.memory_space<vmem>>, %arg3: memref<1x512xf32, #tpu.memory_space<vmem>>, %arg4: memref<128x512xbf16, #tpu.memory_space<vmem>>, %arg5: memref<128x512xbf16, #tpu.memory_space<vmem>>, %arg6: memref<1x512xf32, #tpu.memory_space<vmem>>, %arg7: memref<128x16xbf16, #tpu.memory_space<vmem>>, %arg8: memref<1x16xf32, #tpu.memory_space<vmem>>, %arg9: memref<64x8xf32, #tpu.memory_space<vmem>>, %arg10: memref<64x24xf32, #tpu.memory_space<vmem>>, %arg11: memref<64x512xf32, #tpu.memory_space<vmem>>) attributes {dimension_semantics = [], scalar_prefetch = 0 : i64, scratch_operands = 1 : i64, tpu.core_type = #tpu.core_type<tc>} {
    %c0 = arith.constant 0 : index
    %c0_0 = arith.constant 0 : index
    %0 = vector.load %arg0[%c0, %c0_0] : memref<64x16xf32, #tpu.memory_space<vmem>>, vector<64x16xf32>
    %1 = arith.truncf %0 : vector<64x16xf32> to vector<64x16xbf16>
    %c0_1 = arith.constant 0 : index
    %c0_2 = arith.constant 0 : index
    %2 = vector.load %arg1[%c0_1, %c0_2] : memref<16x512xbf16, #tpu.memory_space<vmem>>, vector<16x512xbf16>
    %cst = arith.constant dense<0.000000e+00> : vector<64x512xf32>
    %3 = tpu.matmul %1, %2, %cst {dimension_numbers = #tpu.dot_dimension_numbers<[1], [0], [0], [1], [0, 0, 1, 1], [], []>} : vector<64x16xbf16>, vector<16x512xbf16>, vector<64x512xf32> -> vector<64x512xf32>
    %c0_3 = arith.constant 0 : index
    %c0_4 = arith.constant 0 : index
    %4 = vector.load %arg3[%c0_3, %c0_4] : memref<1x512xf32, #tpu.memory_space<vmem>>, vector<1x512xf32>
    %5 = vector.broadcast %4 : vector<1x512xf32> to vector<64x512xf32>
    %6 = arith.addf %3, %5 : vector<64x512xf32>
    %c0_5 = arith.constant 0 : index
    %c0_6 = arith.constant 0 : index
    %7 = vector.load %arg11[%c0_5, %c0_6] : memref<64x512xf32, #tpu.memory_space<vmem>>, vector<64x512xf32>
    tpu.vector_store %arg11[%c0_5, %c0_6], %6 {strides = array<i32>} : memref<64x512xf32, #tpu.memory_space<vmem>>, vector<64x512xf32>,
    %c0_7 = arith.constant 0 : index
    %c0_8 = arith.constant 0 : index
    %8 = vector.load %arg6[%c0_7, %c0_8] : memref<1x512xf32, #tpu.memory_space<vmem>>, vector<1x512xf32>
    %9 = vector.shape_cast %8 : vector<1x512xf32> to vector<1x512xf32>
    %10 = vector.broadcast %9 : vector<1x512xf32> to vector<8x512xf32>
    %cst_9 = arith.constant 0.000000e+00 : f32
    %11 = vector.broadcast %cst_9 : f32 to vector<8x128xf32>
    %cst_10 = arith.constant 0.000000e+00 : f32
    %12 = vector.broadcast %cst_10 : f32 to vector<8x128xf32>
    %cst_11 = arith.constant 0.000000e+00 : f32
    %13 = vector.broadcast %cst_11 : f32 to vector<8x128xf32>
    %cst_12 = arith.constant 0.000000e+00 : f32
    %14 = vector.broadcast %cst_12 : f32 to vector<8x128xf32>
    %c0_13 = arith.constant 0 : index
    %c0_14 = arith.constant 0 : index
    %15 = vector.load %arg11[%c0_13, %c0_14] : memref<64x512xf32, #tpu.memory_space<vmem>>, vector<8x512xf32>
    %16 = arith.truncf %11 : vector<8x128xf32> to vector<8x128xbf16>
    %c0_15 = arith.constant 0 : index
    %c0_16 = arith.constant 0 : index
    %17 = vector.load %arg2[%c0_15, %c0_16] : memref<128x512xbf16, #tpu.memory_space<vmem>>, vector<128x512xbf16>
    %cst_17 = arith.constant dense<0.000000e+00> : vector<8x512xf32>
    %18 = tpu.matmul %16, %17, %cst_17 {dimension_numbers = #tpu.dot_dimension_numbers<[1], [0], [0], [1], [0, 0, 1, 1], [], []>} : vector<8x128xbf16>, vector<128x512xbf16>, vector<8x512xf32> -> vector<8x512xf32>
    %19 = arith.addf %15, %18 : vector<8x512xf32>
    %20 = vector.extract_strided_slice %19 {offsets = [0, 0], sizes = [8, 128], strides = [1, 1]} : vector<8x512xf32> to vector<8x128xf32>
    %21 = arith.negf %20 : vector<8x128xf32>
    %22 = math.exp %21 : vector<8x128xf32>
    %cst_18 = arith.constant 1.000000e+00 : f32
    %23 = vector.broadcast %cst_18 : f32 to vector<8x128xf32>
    %24 = arith.addf %23, %22 : vector<8x128xf32>
    %25 = arith.divf %23, %24 : vector<8x128xf32>
    %26 = vector.extract_strided_slice %19 {offsets = [0, 128], sizes = [8, 128], strides = [1, 1]} : vector<8x512xf32> to vector<8x128xf32>
    %27 = arith.negf %26 : vector<8x128xf32>
    %28 = math.exp %27 : vector<8x128xf32>
    %cst_19 = arith.constant 1.000000e+00 : f32
    %29 = vector.broadcast %cst_19 : f32 to vector<8x128xf32>
    %30 = arith.addf %29, %28 : vector<8x128xf32>
    %31 = arith.divf %29, %30 : vector<8x128xf32>
    %32 = vector.extract_strided_slice %19 {offsets = [0, 256], sizes = [8, 128], strides = [1, 1]} : vector<8x512xf32> to vector<8x128xf32>
    %33 = math.tanh %32 : vector<8x128xf32>
    %34 = vector.extract_strided_slice %19 {offsets = [0, 384], sizes = [8, 128], strides = [1, 1]} : vector<8x512xf32> to vector<8x128xf32>
    %35 = arith.negf %34 : vector<8x128xf32>
    %36 = math.exp %35 : vector<8x128xf32>
    %cst_20 = arith.constant 1.000000e+00 : f32
    %37 = vector.broadcast %cst_20 : f32 to vector<8x128xf32>
    %38 = arith.addf %37, %36 : vector<8x128xf32>
    %39 = arith.divf %37, %38 : vector<8x128xf32>
    %40 = arith.mulf %31, %13 : vector<8x128xf32>
    %41 = arith.mulf %25, %33 : vector<8x128xf32>
    %42 = arith.addf %40, %41 : vector<8x128xf32>
    %43 = math.tanh %42 : vector<8x128xf32>
    %44 = arith.mulf %39, %43 : vector<8x128xf32>
    %45 = arith.truncf %44 : vector<8x128xf32> to vector<8x128xbf16>
    %c0_21 = arith.constant 0 : index
    %c0_22 = arith.constant 0 : index
    %46 = vector.load %arg4[%c0_21, %c0_22] : memref<128x512xbf16, #tpu.memory_space<vmem>>, vector<128x512xbf16>
    %cst_23 = arith.constant dense<0.000000e+00> : vector<8x512xf32>
    %47 = tpu.matmul %45, %46, %cst_23 {dimension_numbers = #tpu.dot_dimension_numbers<[1], [0], [0], [1], [0, 0, 1, 1], [], []>} : vector<8x128xbf16>, vector<128x512xbf16>, vector<8x512xf32> -> vector<8x512xf32>
    %48 = arith.truncf %12 : vector<8x128xf32> to vector<8x128xbf16>
    %c0_24 = arith.constant 0 : index
    %c0_25 = arith.constant 0 : index
    %49 = vector.load %arg5[%c0_24, %c0_25] : memref<128x512xbf16, #tpu.memory_space<vmem>>, vector<128x512xbf16>
    %cst_26 = arith.constant dense<0.000000e+00> : vector<8x512xf32>
    %50 = tpu.matmul %48, %49, %cst_26 {dimension_numbers = #tpu.dot_dimension_numbers<[1], [0], [0], [1], [0, 0, 1, 1], [], []>} : vector<8x128xbf16>, vector<128x512xbf16>, vector<8x512xf32> -> vector<8x512xf32>
    %51 = arith.addf %47, %50 : vector<8x512xf32>
    %52 = arith.addf %51, %10 : vector<8x512xf32>
    %53 = vector.extract_strided_slice %52 {offsets = [0, 0], sizes = [8, 128], strides = [1, 1]} : vector<8x512xf32> to vector<8x128xf32>
    %54 = arith.negf %53 : vector<8x128xf32>
    %55 = math.exp %54 : vector<8x128xf32>
    %cst_27 = arith.constant 1.000000e+00 : f32
    %56 = vector.broadcast %cst_27 : f32 to vector<8x128xf32>
    %57 = arith.addf %56, %55 : vector<8x128xf32>
    %58 = arith.divf %56, %57 : vector<8x128xf32>
    %59 = vector.extract_strided_slice %52 {offsets = [0, 128], sizes = [8, 128], strides = [1, 1]} : vector<8x512xf32> to vector<8x128xf32>
    %60 = arith.negf %59 : vector<8x128xf32>
    %61 = math.exp %60 : vector<8x128xf32>
    %cst_28 = arith.constant 1.000000e+00 : f32
    %62 = vector.broadcast %cst_28 : f32 to vector<8x128xf32>
    %63 = arith.addf %62, %61 : vector<8x128xf32>
    %64 = arith.divf %62, %63 : vector<8x128xf32>
    %65 = vector.extract_strided_slice %52 {offsets = [0, 256], sizes = [8, 128], strides = [1, 1]} : vector<8x512xf32> to vector<8x128xf32>
    %66 = math.tanh %65 : vector<8x128xf32>
    %67 = vector.extract_strided_slice %52 {offsets = [0, 384], sizes = [8, 128], strides = [1, 1]} : vector<8x512xf32> to vector<8x128xf32>
    %68 = arith.negf %67 : vector<8x128xf32>
    %69 = math.exp %68 : vector<8x128xf32>
    %cst_29 = arith.constant 1.000000e+00 : f32
    %70 = vector.broadcast %cst_29 : f32 to vector<8x128xf32>
    %71 = arith.addf %70, %69 : vector<8x128xf32>
    %72 = arith.divf %70, %71 : vector<8x128xf32>
    %73 = arith.mulf %64, %14 : vector<8x128xf32>
    %74 = arith.mulf %58, %66 : vector<8x128xf32>
    %75 = arith.addf %73, %74 : vector<8x128xf32>
    %76 = math.tanh %75 : vector<8x128xf32>
    %77 = arith.mulf %72, %76 : vector<8x128xf32>
    %c8 = arith.constant 8 : index
    %c0_30 = arith.constant 0 : index
    %78 = vector.load %arg11[%c8, %c0_30] : memref<64x512xf32, #tpu.memory_space<vmem>>, vector<8x512xf32>
    %79 = arith.truncf %44 : vector<8x128xf32> to vector<8x128xbf16>
    %c0_31 = arith.constant 0 : index
    %c0_32 = arith.constant 0 : index
    %80 = vector.load %arg2[%c0_31, %c0_32] : memref<128x512xbf16, #tpu.memory_space<vmem>>, vector<128x512xbf16>
    %cst_33 = arith.constant dense<0.000000e+00> : vector<8x512xf32>
    %81 = tpu.matmul %79, %80, %cst_33 {dimension_numbers = #tpu.dot_dimension_numbers<[1], [0], [0], [1], [0, 0, 1, 1], [], []>} : vector<8x128xbf16>, vector<128x512xbf16>, vector<8x512xf32> -> vector<8x512xf32>
    %82 = arith.addf %78, %81 : vector<8x512xf32>
    %83 = vector.extract_strided_slice %82 {offsets = [0, 0], sizes = [8, 128], strides = [1, 1]} : vector<8x512xf32> to vector<8x128xf32>
    %84 = arith.negf %83 : vector<8x128xf32>
    %85 = math.exp %84 : vector<8x128xf32>
    %cst_34 = arith.constant 1.000000e+00 : f32
    %86 = vector.broadcast %cst_34 : f32 to vector<8x128xf32>
    %87 = arith.addf %86, %85 : vector<8x128xf32>
    %88 = arith.divf %86, %87 : vector<8x128xf32>
    %89 = vector.extract_strided_slice %82 {offsets = [0, 128], sizes = [8, 128], strides = [1, 1]} : vector<8x512xf32> to vector<8x128xf32>
    %90 = arith.negf %89 : vector<8x128xf32>
    %91 = math.exp %90 : vector<8x128xf32>
    %cst_35 = arith.constant 1.000000e+00 : f32
    %92 = vector.broadcast %cst_35 : f32 to vector<8x128xf32>
    %93 = arith.addf %92, %91 : vector<8x128xf32>
    %94 = arith.divf %92, %93 : vector<8x128xf32>
    %95 = vector.extract_strided_slice %82 {offsets = [0, 256], sizes = [8, 128], strides = [1, 1]} : vector<8x512xf32> to vector<8x128xf32>
    %96 = math.tanh %95 : vector<8x128xf32>
    %97 = vector.extract_strided_slice %82 {offsets = [0, 384], sizes = [8, 128], strides = [1, 1]} : vector<8x512xf32> to vector<8x128xf32>
    %98 = arith.negf %97 : vector<8x128xf32>
    %99 = math.exp %98 : vector<8x128xf32>
    %cst_36 = arith.constant 1.000000e+00 : f32
    %100 = vector.broadcast %cst_36 : f32 to vector<8x128xf32>
    %101 = arith.addf %100, %99 : vector<8x128xf32>
    %102 = arith.divf %100, %101 : vector<8x128xf32>
    %103 = arith.mulf %94, %42 : vector<8x128xf32>
    %104 = arith.mulf %88, %96 : vector<8x128xf32>
    %105 = arith.addf %103, %104 : vector<8x128xf32>
    %106 = math.tanh %105 : vector<8x128xf32>
    %107 = arith.mulf %102, %106 : vector<8x128xf32>
    %108 = arith.truncf %107 : vector<8x128xf32> to vector<8x128xbf16>
    %c0_37 = arith.constant 0 : index
    %c0_38 = arith.constant 0 : index
    %109 = vector.load %arg4[%c0_37, %c0_38] : memref<128x512xbf16, #tpu.memory_space<vmem>>, vector<128x512xbf16>
    %cst_39 = arith.constant dense<0.000000e+00> : vector<8x512xf32>
    %110 = tpu.matmul %108, %109, %cst_39 {dimension_numbers = #tpu.dot_dimension_numbers<[1], [0], [0], [1], [0, 0, 1, 1], [], []>} : vector<8x128xbf16>, vector<128x512xbf16>, vector<8x512xf32> -> vector<8x512xf32>
    %111 = arith.truncf %77 : vector<8x128xf32> to vector<8x128xbf16>
    %c0_40 = arith.constant 0 : index
    %c0_41 = arith.constant 0 : index
    %112 = vector.load %arg5[%c0_40, %c0_41] : memref<128x512xbf16, #tpu.memory_space<vmem>>, vector<128x512xbf16>
    %cst_42 = arith.constant dense<0.000000e+00> : vector<8x512xf32>
    %113 = tpu.matmul %111, %112, %cst_42 {dimension_numbers = #tpu.dot_dimension_numbers<[1], [0], [0], [1], [0, 0, 1, 1], [], []>} : vector<8x128xbf16>, vector<128x512xbf16>, vector<8x512xf32> -> vector<8x512xf32>
    %114 = arith.addf %110, %113 : vector<8x512xf32>
    %115 = arith.addf %114, %10 : vector<8x512xf32>
    %116 = vector.extract_strided_slice %115 {offsets = [0, 0], sizes = [8, 128], strides = [1, 1]} : vector<8x512xf32> to vector<8x128xf32>
    %117 = arith.negf %116 : vector<8x128xf32>
    %118 = math.exp %117 : vector<8x128xf32>
    %cst_43 = arith.constant 1.000000e+00 : f32
    %119 = vector.broadcast %cst_43 : f32 to vector<8x128xf32>
    %120 = arith.addf %119, %118 : vector<8x128xf32>
    %121 = arith.divf %119, %120 : vector<8x128xf32>
    %122 = vector.extract_strided_slice %115 {offsets = [0, 128], sizes = [8, 128], strides = [1, 1]} : vector<8x512xf32> to vector<8x128xf32>
    %123 = arith.negf %122 : vector<8x128xf32>
    %124 = math.exp %123 : vector<8x128xf32>
    %cst_44 = arith.constant 1.000000e+00 : f32
    %125 = vector.broadcast %cst_44 : f32 to vector<8x128xf32>
    %126 = arith.addf %125, %124 : vector<8x128xf32>
    %127 = arith.divf %125, %126 : vector<8x128xf32>
    %128 = vector.extract_strided_slice %115 {offsets = [0, 256], sizes = [8, 128], strides = [1, 1]} : vector<8x512xf32> to vector<8x128xf32>
    %129 = math.tanh %128 : vector<8x128xf32>
    %130 = vector.extract_strided_slice %115 {offsets = [0, 384], sizes = [8, 128], strides = [1, 1]} : vector<8x512xf32> to vector<8x128xf32>
    %131 = arith.negf %130 : vector<8x128xf32>
    %132 = math.exp %131 : vector<8x128xf32>
    %cst_45 = arith.constant 1.000000e+00 : f32
    %133 = vector.broadcast %cst_45 : f32 to vector<8x128xf32>
    %134 = arith.addf %133, %132 : vector<8x128xf32>
    %135 = arith.divf %133, %134 : vector<8x128xf32>
    %136 = arith.mulf %127, %75 : vector<8x128xf32>
    %137 = arith.mulf %121, %129 : vector<8x128xf32>
    %138 = arith.addf %136, %137 : vector<8x128xf32>
    %139 = math.tanh %138 : vector<8x128xf32>
    %140 = arith.mulf %135, %139 : vector<8x128xf32>
    %c16 = arith.constant 16 : index
    %c0_46 = arith.constant 0 : index
    %141 = vector.load %arg11[%c16, %c0_46] : memref<64x512xf32, #tpu.memory_space<vmem>>, vector<8x512xf32>
    %142 = arith.truncf %107 : vector<8x128xf32> to vector<8x128xbf16>
    %c0_47 = arith.constant 0 : index
    %c0_48 = arith.constant 0 : index
    %143 = vector.load %arg2[%c0_47, %c0_48] : memref<128x512xbf16, #tpu.memory_space<vmem>>, vector<128x512xbf16>
    %cst_49 = arith.constant dense<0.000000e+00> : vector<8x512xf32>
    %144 = tpu.matmul %142, %143, %cst_49 {dimension_numbers = #tpu.dot_dimension_numbers<[1], [0], [0], [1], [0, 0, 1, 1], [], []>} : vector<8x128xbf16>, vector<128x512xbf16>, vector<8x512xf32> -> vector<8x512xf32>
    %145 = arith.addf %141, %144 : vector<8x512xf32>
    %146 = vector.extract_strided_slice %145 {offsets = [0, 0], sizes = [8, 128], strides = [1, 1]} : vector<8x512xf32> to vector<8x128xf32>
    %147 = arith.negf %146 : vector<8x128xf32>
    %148 = math.exp %147 : vector<8x128xf32>
    %cst_50 = arith.constant 1.000000e+00 : f32
    %149 = vector.broadcast %cst_50 : f32 to vector<8x128xf32>
    %150 = arith.addf %149, %148 : vector<8x128xf32>
    %151 = arith.divf %149, %150 : vector<8x128xf32>
    %152 = vector.extract_strided_slice %145 {offsets = [0, 128], sizes = [8, 128], strides = [1, 1]} : vector<8x512xf32> to vector<8x128xf32>
    %153 = arith.negf %152 : vector<8x128xf32>
    %154 = math.exp %153 : vector<8x128xf32>
    %cst_51 = arith.constant 1.000000e+00 : f32
    %155 = vector.broadcast %cst_51 : f32 to vector<8x128xf32>
    %156 = arith.addf %155, %154 : vector<8x128xf32>
    %157 = arith.divf %155, %156 : vector<8x128xf32>
    %158 = vector.extract_strided_slice %145 {offsets = [0, 256], sizes = [8, 128], strides = [1, 1]} : vector<8x512xf32> to vector<8x128xf32>
    %159 = math.tanh %158 : vector<8x128xf32>
    %160 = vector.extract_strided_slice %145 {offsets = [0, 384], sizes = [8, 128], strides = [1, 1]} : vector<8x512xf32> to vector<8x128xf32>
    %161 = arith.negf %160 : vector<8x128xf32>
    %162 = math.exp %161 : vector<8x128xf32>
    %cst_52 = arith.constant 1.000000e+00 : f32
    %163 = vector.broadcast %cst_52 : f32 to vector<8x128xf32>
    %164 = arith.addf %163, %162 : vector<8x128xf32>
    %165 = arith.divf %163, %164 : vector<8x128xf32>
    %166 = arith.mulf %157, %105 : vector<8x128xf32>
    %167 = arith.mulf %151, %159 : vector<8x128xf32>
    %168 = arith.addf %166, %167 : vector<8x128xf32>
    %169 = math.tanh %168 : vector<8x128xf32>
    %170 = arith.mulf %165, %169 : vector<8x128xf32>
    %171 = arith.truncf %170 : vector<8x128xf32> to vector<8x128xbf16>
    %c0_53 = arith.constant 0 : index
    %c0_54 = arith.constant 0 : index
    %172 = vector.load %arg4[%c0_53, %c0_54] : memref<128x512xbf16, #tpu.memory_space<vmem>>, vector<128x512xbf16>
    %cst_55 = arith.constant dense<0.000000e+00> : vector<8x512xf32>
    %173 = tpu.matmul %171, %172, %cst_55 {dimension_numbers = #tpu.dot_dimension_numbers<[1], [0], [0], [1], [0, 0, 1, 1], [], []>} : vector<8x128xbf16>, vector<128x512xbf16>, vector<8x512xf32> -> vector<8x512xf32>
    %174 = arith.truncf %140 : vector<8x128xf32> to vector<8x128xbf16>
    %c0_56 = arith.constant 0 : index
    %c0_57 = arith.constant 0 : index
    %175 = vector.load %arg5[%c0_56, %c0_57] : memref<128x512xbf16, #tpu.memory_space<vmem>>, vector<128x512xbf16>
    %cst_58 = arith.constant dense<0.000000e+00> : vector<8x512xf32>
    %176 = tpu.matmul %174, %175, %cst_58 {dimension_numbers = #tpu.dot_dimension_numbers<[1], [0], [0], [1], [0, 0, 1, 1], [], []>} : vector<8x128xbf16>, vector<128x512xbf16>, vector<8x512xf32> -> vector<8x512xf32>
    %177 = arith.addf %173, %176 : vector<8x512xf32>
    %178 = arith.addf %177, %10 : vector<8x512xf32>
    %179 = vector.extract_strided_slice %178 {offsets = [0, 0], sizes = [8, 128], strides = [1, 1]} : vector<8x512xf32> to vector<8x128xf32>
    %180 = arith.negf %179 : vector<8x128xf32>
    %181 = math.exp %180 : vector<8x128xf32>
    %cst_59 = arith.constant 1.000000e+00 : f32
    %182 = vector.broadcast %cst_59 : f32 to vector<8x128xf32>
    %183 = arith.addf %182, %181 : vector<8x128xf32>
    %184 = arith.divf %182, %183 : vector<8x128xf32>
    %185 = vector.extract_strided_slice %178 {offsets = [0, 128], sizes = [8, 128], strides = [1, 1]} : vector<8x512xf32> to vector<8x128xf32>
    %186 = arith.negf %185 : vector<8x128xf32>
    %187 = math.exp %186 : vector<8x128xf32>
    %cst_60 = arith.constant 1.000000e+00 : f32
    %188 = vector.broadcast %cst_60 : f32 to vector<8x128xf32>
    %189 = arith.addf %188, %187 : vector<8x128xf32>
    %190 = arith.divf %188, %189 : vector<8x128xf32>
    %191 = vector.extract_strided_slice %178 {offsets = [0, 256], sizes = [8, 128], strides = [1, 1]} : vector<8x512xf32> to vector<8x128xf32>
    %192 = math.tanh %191 : vector<8x128xf32>
    %193 = vector.extract_strided_slice %178 {offsets = [0, 384], sizes = [8, 128], strides = [1, 1]} : vector<8x512xf32> to vector<8x128xf32>
    %194 = arith.negf %193 : vector<8x128xf32>
    %195 = math.exp %194 : vector<8x128xf32>
    %cst_61 = arith.constant 1.000000e+00 : f32
    %196 = vector.broadcast %cst_61 : f32 to vector<8x128xf32>
    %197 = arith.addf %196, %195 : vector<8x128xf32>
    %198 = arith.divf %196, %197 : vector<8x128xf32>
    %199 = arith.mulf %190, %138 : vector<8x128xf32>
    %200 = arith.mulf %184, %192 : vector<8x128xf32>
    %201 = arith.addf %199, %200 : vector<8x128xf32>
    %202 = math.tanh %201 : vector<8x128xf32>
    %203 = arith.mulf %198, %202 : vector<8x128xf32>
    %c24 = arith.constant 24 : index
    %c0_62 = arith.constant 0 : index
    %204 = vector.load %arg11[%c24, %c0_62] : memref<64x512xf32, #tpu.memory_space<vmem>>, vector<8x512xf32>
    %205 = arith.truncf %170 : vector<8x128xf32> to vector<8x128xbf16>
    %c0_63 = arith.constant 0 : index
    %c0_64 = arith.constant 0 : index
    %206 = vector.load %arg2[%c0_63, %c0_64] : memref<128x512xbf16, #tpu.memory_space<vmem>>, vector<128x512xbf16>
    %cst_65 = arith.constant dense<0.000000e+00> : vector<8x512xf32>
    %207 = tpu.matmul %205, %206, %cst_65 {dimension_numbers = #tpu.dot_dimension_numbers<[1], [0], [0], [1], [0, 0, 1, 1], [], []>} : vector<8x128xbf16>, vector<128x512xbf16>, vector<8x512xf32> -> vector<8x512xf32>
    %208 = arith.addf %204, %207 : vector<8x512xf32>
    %209 = vector.extract_strided_slice %208 {offsets = [0, 0], sizes = [8, 128], strides = [1, 1]} : vector<8x512xf32> to vector<8x128xf32>
    %210 = arith.negf %209 : vector<8x128xf32>
    %211 = math.exp %210 : vector<8x128xf32>
    %cst_66 = arith.constant 1.000000e+00 : f32
    %212 = vector.broadcast %cst_66 : f32 to vector<8x128xf32>
    %213 = arith.addf %212, %211 : vector<8x128xf32>
    %214 = arith.divf %212, %213 : vector<8x128xf32>
    %215 = vector.extract_strided_slice %208 {offsets = [0, 128], sizes = [8, 128], strides = [1, 1]} : vector<8x512xf32> to vector<8x128xf32>
    %216 = arith.negf %215 : vector<8x128xf32>
    %217 = math.exp %216 : vector<8x128xf32>
    %cst_67 = arith.constant 1.000000e+00 : f32
    %218 = vector.broadcast %cst_67 : f32 to vector<8x128xf32>
    %219 = arith.addf %218, %217 : vector<8x128xf32>
    %220 = arith.divf %218, %219 : vector<8x128xf32>
    %221 = vector.extract_strided_slice %208 {offsets = [0, 256], sizes = [8, 128], strides = [1, 1]} : vector<8x512xf32> to vector<8x128xf32>
    %222 = math.tanh %221 : vector<8x128xf32>
    %223 = vector.extract_strided_slice %208 {offsets = [0, 384], sizes = [8, 128], strides = [1, 1]} : vector<8x512xf32> to vector<8x128xf32>
    %224 = arith.negf %223 : vector<8x128xf32>
    %225 = math.exp %224 : vector<8x128xf32>
    %cst_68 = arith.constant 1.000000e+00 : f32
    %226 = vector.broadcast %cst_68 : f32 to vector<8x128xf32>
    %227 = arith.addf %226, %225 : vector<8x128xf32>
    %228 = arith.divf %226, %227 : vector<8x128xf32>
    %229 = arith.mulf %220, %168 : vector<8x128xf32>
    %230 = arith.mulf %214, %222 : vector<8x128xf32>
    %231 = arith.addf %229, %230 : vector<8x128xf32>
    %232 = math.tanh %231 : vector<8x128xf32>
    %233 = arith.mulf %228, %232 : vector<8x128xf32>
    %234 = arith.truncf %233 : vector<8x128xf32> to vector<8x128xbf16>
    %c0_69 = arith.constant 0 : index
    %c0_70 = arith.constant 0 : index
    %235 = vector.load %arg4[%c0_69, %c0_70] : memref<128x512xbf16, #tpu.memory_space<vmem>>, vector<128x512xbf16>
    %cst_71 = arith.constant dense<0.000000e+00> : vector<8x512xf32>
    %236 = tpu.matmul %234, %235, %cst_71 {dimension_numbers = #tpu.dot_dimension_numbers<[1], [0], [0], [1], [0, 0, 1, 1], [], []>} : vector<8x128xbf16>, vector<128x512xbf16>, vector<8x512xf32> -> vector<8x512xf32>
    %237 = arith.truncf %203 : vector<8x128xf32> to vector<8x128xbf16>
    %c0_72 = arith.constant 0 : index
    %c0_73 = arith.constant 0 : index
    %238 = vector.load %arg5[%c0_72, %c0_73] : memref<128x512xbf16, #tpu.memory_space<vmem>>, vector<128x512xbf16>
    %cst_74 = arith.constant dense<0.000000e+00> : vector<8x512xf32>
    %239 = tpu.matmul %237, %238, %cst_74 {dimension_numbers = #tpu.dot_dimension_numbers<[1], [0], [0], [1], [0, 0, 1, 1], [], []>} : vector<8x128xbf16>, vector<128x512xbf16>, vector<8x512xf32> -> vector<8x512xf32>
    %240 = arith.addf %236, %239 : vector<8x512xf32>
    %241 = arith.addf %240, %10 : vector<8x512xf32>
    %242 = vector.extract_strided_slice %241 {offsets = [0, 0], sizes = [8, 128], strides = [1, 1]} : vector<8x512xf32> to vector<8x128xf32>
    %243 = arith.negf %242 : vector<8x128xf32>
    %244 = math.exp %243 : vector<8x128xf32>
    %cst_75 = arith.constant 1.000000e+00 : f32
    %245 = vector.broadcast %cst_75 : f32 to vector<8x128xf32>
    %246 = arith.addf %245, %244 : vector<8x128xf32>
    %247 = arith.divf %245, %246 : vector<8x128xf32>
    %248 = vector.extract_strided_slice %241 {offsets = [0, 128], sizes = [8, 128], strides = [1, 1]} : vector<8x512xf32> to vector<8x128xf32>
    %249 = arith.negf %248 : vector<8x128xf32>
    %250 = math.exp %249 : vector<8x128xf32>
    %cst_76 = arith.constant 1.000000e+00 : f32
    %251 = vector.broadcast %cst_76 : f32 to vector<8x128xf32>
    %252 = arith.addf %251, %250 : vector<8x128xf32>
    %253 = arith.divf %251, %252 : vector<8x128xf32>
    %254 = vector.extract_strided_slice %241 {offsets = [0, 256], sizes = [8, 128], strides = [1, 1]} : vector<8x512xf32> to vector<8x128xf32>
    %255 = math.tanh %254 : vector<8x128xf32>
    %256 = vector.extract_strided_slice %241 {offsets = [0, 384], sizes = [8, 128], strides = [1, 1]} : vector<8x512xf32> to vector<8x128xf32>
    %257 = arith.negf %256 : vector<8x128xf32>
    %258 = math.exp %257 : vector<8x128xf32>
    %cst_77 = arith.constant 1.000000e+00 : f32
    %259 = vector.broadcast %cst_77 : f32 to vector<8x128xf32>
    %260 = arith.addf %259, %258 : vector<8x128xf32>
    %261 = arith.divf %259, %260 : vector<8x128xf32>
    %262 = arith.mulf %253, %201 : vector<8x128xf32>
    %263 = arith.mulf %247, %255 : vector<8x128xf32>
    %264 = arith.addf %262, %263 : vector<8x128xf32>
    %265 = math.tanh %264 : vector<8x128xf32>
    %266 = arith.mulf %261, %265 : vector<8x128xf32>
    %c32 = arith.constant 32 : index
    %c0_78 = arith.constant 0 : index
    %267 = vector.load %arg11[%c32, %c0_78] : memref<64x512xf32, #tpu.memory_space<vmem>>, vector<8x512xf32>
    %268 = arith.truncf %233 : vector<8x128xf32> to vector<8x128xbf16>
    %c0_79 = arith.constant 0 : index
    %c0_80 = arith.constant 0 : index
    %269 = vector.load %arg2[%c0_79, %c0_80] : memref<128x512xbf16, #tpu.memory_space<vmem>>, vector<128x512xbf16>
    %cst_81 = arith.constant dense<0.000000e+00> : vector<8x512xf32>
    %270 = tpu.matmul %268, %269, %cst_81 {dimension_numbers = #tpu.dot_dimension_numbers<[1], [0], [0], [1], [0, 0, 1, 1], [], []>} : vector<8x128xbf16>, vector<128x512xbf16>, vector<8x512xf32> -> vector<8x512xf32>
    %271 = arith.addf %267, %270 : vector<8x512xf32>
    %272 = vector.extract_strided_slice %271 {offsets = [0, 0], sizes = [8, 128], strides = [1, 1]} : vector<8x512xf32> to vector<8x128xf32>
    %273 = arith.negf %272 : vector<8x128xf32>
    %274 = math.exp %273 : vector<8x128xf32>
    %cst_82 = arith.constant 1.000000e+00 : f32
    %275 = vector.broadcast %cst_82 : f32 to vector<8x128xf32>
    %276 = arith.addf %275, %274 : vector<8x128xf32>
    %277 = arith.divf %275, %276 : vector<8x128xf32>
    %278 = vector.extract_strided_slice %271 {offsets = [0, 128], sizes = [8, 128], strides = [1, 1]} : vector<8x512xf32> to vector<8x128xf32>
    %279 = arith.negf %278 : vector<8x128xf32>
    %280 = math.exp %279 : vector<8x128xf32>
    %cst_83 = arith.constant 1.000000e+00 : f32
    %281 = vector.broadcast %cst_83 : f32 to vector<8x128xf32>
    %282 = arith.addf %281, %280 : vector<8x128xf32>
    %283 = arith.divf %281, %282 : vector<8x128xf32>
    %284 = vector.extract_strided_slice %271 {offsets = [0, 256], sizes = [8, 128], strides = [1, 1]} : vector<8x512xf32> to vector<8x128xf32>
    %285 = math.tanh %284 : vector<8x128xf32>
    %286 = vector.extract_strided_slice %271 {offsets = [0, 384], sizes = [8, 128], strides = [1, 1]} : vector<8x512xf32> to vector<8x128xf32>
    %287 = arith.negf %286 : vector<8x128xf32>
    %288 = math.exp %287 : vector<8x128xf32>
    %cst_84 = arith.constant 1.000000e+00 : f32
    %289 = vector.broadcast %cst_84 : f32 to vector<8x128xf32>
    %290 = arith.addf %289, %288 : vector<8x128xf32>
    %291 = arith.divf %289, %290 : vector<8x128xf32>
    %292 = arith.mulf %283, %231 : vector<8x128xf32>
    %293 = arith.mulf %277, %285 : vector<8x128xf32>
    %294 = arith.addf %292, %293 : vector<8x128xf32>
    %295 = math.tanh %294 : vector<8x128xf32>
    %296 = arith.mulf %291, %295 : vector<8x128xf32>
    %297 = arith.truncf %296 : vector<8x128xf32> to vector<8x128xbf16>
    %c0_85 = arith.constant 0 : index
    %c0_86 = arith.constant 0 : index
    %298 = vector.load %arg4[%c0_85, %c0_86] : memref<128x512xbf16, #tpu.memory_space<vmem>>, vector<128x512xbf16>
    %cst_87 = arith.constant dense<0.000000e+00> : vector<8x512xf32>
    %299 = tpu.matmul %297, %298, %cst_87 {dimension_numbers = #tpu.dot_dimension_numbers<[1], [0], [0], [1], [0, 0, 1, 1], [], []>} : vector<8x128xbf16>, vector<128x512xbf16>, vector<8x512xf32> -> vector<8x512xf32>
    %300 = arith.truncf %266 : vector<8x128xf32> to vector<8x128xbf16>
    %c0_88 = arith.constant 0 : index
    %c0_89 = arith.constant 0 : index
    %301 = vector.load %arg5[%c0_88, %c0_89] : memref<128x512xbf16, #tpu.memory_space<vmem>>, vector<128x512xbf16>
    %cst_90 = arith.constant dense<0.000000e+00> : vector<8x512xf32>
    %302 = tpu.matmul %300, %301, %cst_90 {dimension_numbers = #tpu.dot_dimension_numbers<[1], [0], [0], [1], [0, 0, 1, 1], [], []>} : vector<8x128xbf16>, vector<128x512xbf16>, vector<8x512xf32> -> vector<8x512xf32>
    %303 = arith.addf %299, %302 : vector<8x512xf32>
    %304 = arith.addf %303, %10 : vector<8x512xf32>
    %305 = vector.extract_strided_slice %304 {offsets = [0, 0], sizes = [8, 128], strides = [1, 1]} : vector<8x512xf32> to vector<8x128xf32>
    %306 = arith.negf %305 : vector<8x128xf32>
    %307 = math.exp %306 : vector<8x128xf32>
    %cst_91 = arith.constant 1.000000e+00 : f32
    %308 = vector.broadcast %cst_91 : f32 to vector<8x128xf32>
    %309 = arith.addf %308, %307 : vector<8x128xf32>
    %310 = arith.divf %308, %309 : vector<8x128xf32>
    %311 = vector.extract_strided_slice %304 {offsets = [0, 128], sizes = [8, 128], strides = [1, 1]} : vector<8x512xf32> to vector<8x128xf32>
    %312 = arith.negf %311 : vector<8x128xf32>
    %313 = math.exp %312 : vector<8x128xf32>
    %cst_92 = arith.constant 1.000000e+00 : f32
    %314 = vector.broadcast %cst_92 : f32 to vector<8x128xf32>
    %315 = arith.addf %314, %313 : vector<8x128xf32>
    %316 = arith.divf %314, %315 : vector<8x128xf32>
    %317 = vector.extract_strided_slice %304 {offsets = [0, 256], sizes = [8, 128], strides = [1, 1]} : vector<8x512xf32> to vector<8x128xf32>
    %318 = math.tanh %317 : vector<8x128xf32>
    %319 = vector.extract_strided_slice %304 {offsets = [0, 384], sizes = [8, 128], strides = [1, 1]} : vector<8x512xf32> to vector<8x128xf32>
    %320 = arith.negf %319 : vector<8x128xf32>
    %321 = math.exp %320 : vector<8x128xf32>
    %cst_93 = arith.constant 1.000000e+00 : f32
    %322 = vector.broadcast %cst_93 : f32 to vector<8x128xf32>
    %323 = arith.addf %322, %321 : vector<8x128xf32>
    %324 = arith.divf %322, %323 : vector<8x128xf32>
    %325 = arith.mulf %316, %264 : vector<8x128xf32>
    %326 = arith.mulf %310, %318 : vector<8x128xf32>
    %327 = arith.addf %325, %326 : vector<8x128xf32>
    %328 = math.tanh %327 : vector<8x128xf32>
    %329 = arith.mulf %324, %328 : vector<8x128xf32>
    %c40 = arith.constant 40 : index
    %c0_94 = arith.constant 0 : index
    %330 = vector.load %arg11[%c40, %c0_94] : memref<64x512xf32, #tpu.memory_space<vmem>>, vector<8x512xf32>
    %331 = arith.truncf %296 : vector<8x128xf32> to vector<8x128xbf16>
    %c0_95 = arith.constant 0 : index
    %c0_96 = arith.constant 0 : index
    %332 = vector.load %arg2[%c0_95, %c0_96] : memref<128x512xbf16, #tpu.memory_space<vmem>>, vector<128x512xbf16>
    %cst_97 = arith.constant dense<0.000000e+00> : vector<8x512xf32>
    %333 = tpu.matmul %331, %332, %cst_97 {dimension_numbers = #tpu.dot_dimension_numbers<[1], [0], [0], [1], [0, 0, 1, 1], [], []>} : vector<8x128xbf16>, vector<128x512xbf16>, vector<8x512xf32> -> vector<8x512xf32>
    %334 = arith.addf %330, %333 : vector<8x512xf32>
    %335 = vector.extract_strided_slice %334 {offsets = [0, 0], sizes = [8, 128], strides = [1, 1]} : vector<8x512xf32> to vector<8x128xf32>
    %336 = arith.negf %335 : vector<8x128xf32>
    %337 = math.exp %336 : vector<8x128xf32>
    %cst_98 = arith.constant 1.000000e+00 : f32
    %338 = vector.broadcast %cst_98 : f32 to vector<8x128xf32>
    %339 = arith.addf %338, %337 : vector<8x128xf32>
    %340 = arith.divf %338, %339 : vector<8x128xf32>
    %341 = vector.extract_strided_slice %334 {offsets = [0, 128], sizes = [8, 128], strides = [1, 1]} : vector<8x512xf32> to vector<8x128xf32>
    %342 = arith.negf %341 : vector<8x128xf32>
    %343 = math.exp %342 : vector<8x128xf32>
    %cst_99 = arith.constant 1.000000e+00 : f32
    %344 = vector.broadcast %cst_99 : f32 to vector<8x128xf32>
    %345 = arith.addf %344, %343 : vector<8x128xf32>
    %346 = arith.divf %344, %345 : vector<8x128xf32>
    %347 = vector.extract_strided_slice %334 {offsets = [0, 256], sizes = [8, 128], strides = [1, 1]} : vector<8x512xf32> to vector<8x128xf32>
    %348 = math.tanh %347 : vector<8x128xf32>
    %349 = vector.extract_strided_slice %334 {offsets = [0, 384], sizes = [8, 128], strides = [1, 1]} : vector<8x512xf32> to vector<8x128xf32>
    %350 = arith.negf %349 : vector<8x128xf32>
    %351 = math.exp %350 : vector<8x128xf32>
    %cst_100 = arith.constant 1.000000e+00 : f32
    %352 = vector.broadcast %cst_100 : f32 to vector<8x128xf32>
    %353 = arith.addf %352, %351 : vector<8x128xf32>
    %354 = arith.divf %352, %353 : vector<8x128xf32>
    %355 = arith.mulf %346, %294 : vector<8x128xf32>
    %356 = arith.mulf %340, %348 : vector<8x128xf32>
    %357 = arith.addf %355, %356 : vector<8x128xf32>
    %358 = math.tanh %357 : vector<8x128xf32>
    %359 = arith.mulf %354, %358 : vector<8x128xf32>
    %360 = arith.truncf %359 : vector<8x128xf32> to vector<8x128xbf16>
    %c0_101 = arith.constant 0 : index
    %c0_102 = arith.constant 0 : index
    %361 = vector.load %arg4[%c0_101, %c0_102] : memref<128x512xbf16, #tpu.memory_space<vmem>>, vector<128x512xbf16>
    %cst_103 = arith.constant dense<0.000000e+00> : vector<8x512xf32>
    %362 = tpu.matmul %360, %361, %cst_103 {dimension_numbers = #tpu.dot_dimension_numbers<[1], [0], [0], [1], [0, 0, 1, 1], [], []>} : vector<8x128xbf16>, vector<128x512xbf16>, vector<8x512xf32> -> vector<8x512xf32>
    %363 = arith.truncf %329 : vector<8x128xf32> to vector<8x128xbf16>
    %c0_104 = arith.constant 0 : index
    %c0_105 = arith.constant 0 : index
    %364 = vector.load %arg5[%c0_104, %c0_105] : memref<128x512xbf16, #tpu.memory_space<vmem>>, vector<128x512xbf16>
    %cst_106 = arith.constant dense<0.000000e+00> : vector<8x512xf32>
    %365 = tpu.matmul %363, %364, %cst_106 {dimension_numbers = #tpu.dot_dimension_numbers<[1], [0], [0], [1], [0, 0, 1, 1], [], []>} : vector<8x128xbf16>, vector<128x512xbf16>, vector<8x512xf32> -> vector<8x512xf32>
    %366 = arith.addf %362, %365 : vector<8x512xf32>
    %367 = arith.addf %366, %10 : vector<8x512xf32>
    %368 = vector.extract_strided_slice %367 {offsets = [0, 0], sizes = [8, 128], strides = [1, 1]} : vector<8x512xf32> to vector<8x128xf32>
    %369 = arith.negf %368 : vector<8x128xf32>
    %370 = math.exp %369 : vector<8x128xf32>
    %cst_107 = arith.constant 1.000000e+00 : f32
    %371 = vector.broadcast %cst_107 : f32 to vector<8x128xf32>
    %372 = arith.addf %371, %370 : vector<8x128xf32>
    %373 = arith.divf %371, %372 : vector<8x128xf32>
    %374 = vector.extract_strided_slice %367 {offsets = [0, 128], sizes = [8, 128], strides = [1, 1]} : vector<8x512xf32> to vector<8x128xf32>
    %375 = arith.negf %374 : vector<8x128xf32>
    %376 = math.exp %375 : vector<8x128xf32>
    %cst_108 = arith.constant 1.000000e+00 : f32
    %377 = vector.broadcast %cst_108 : f32 to vector<8x128xf32>
    %378 = arith.addf %377, %376 : vector<8x128xf32>
    %379 = arith.divf %377, %378 : vector<8x128xf32>
    %380 = vector.extract_strided_slice %367 {offsets = [0, 256], sizes = [8, 128], strides = [1, 1]} : vector<8x512xf32> to vector<8x128xf32>
    %381 = math.tanh %380 : vector<8x128xf32>
    %382 = vector.extract_strided_slice %367 {offsets = [0, 384], sizes = [8, 128], strides = [1, 1]} : vector<8x512xf32> to vector<8x128xf32>
    %383 = arith.negf %382 : vector<8x128xf32>
    %384 = math.exp %383 : vector<8x128xf32>
    %cst_109 = arith.constant 1.000000e+00 : f32
    %385 = vector.broadcast %cst_109 : f32 to vector<8x128xf32>
    %386 = arith.addf %385, %384 : vector<8x128xf32>
    %387 = arith.divf %385, %386 : vector<8x128xf32>
    %388 = arith.mulf %379, %327 : vector<8x128xf32>
    %389 = arith.mulf %373, %381 : vector<8x128xf32>
    %390 = arith.addf %388, %389 : vector<8x128xf32>
    %391 = math.tanh %390 : vector<8x128xf32>
    %392 = arith.mulf %387, %391 : vector<8x128xf32>
    %c48 = arith.constant 48 : index
    %c0_110 = arith.constant 0 : index
    %393 = vector.load %arg11[%c48, %c0_110] : memref<64x512xf32, #tpu.memory_space<vmem>>, vector<8x512xf32>
    %394 = arith.truncf %359 : vector<8x128xf32> to vector<8x128xbf16>
    %c0_111 = arith.constant 0 : index
    %c0_112 = arith.constant 0 : index
    %395 = vector.load %arg2[%c0_111, %c0_112] : memref<128x512xbf16, #tpu.memory_space<vmem>>, vector<128x512xbf16>
    %cst_113 = arith.constant dense<0.000000e+00> : vector<8x512xf32>
    %396 = tpu.matmul %394, %395, %cst_113 {dimension_numbers = #tpu.dot_dimension_numbers<[1], [0], [0], [1], [0, 0, 1, 1], [], []>} : vector<8x128xbf16>, vector<128x512xbf16>, vector<8x512xf32> -> vector<8x512xf32>
    %397 = arith.addf %393, %396 : vector<8x512xf32>
    %398 = vector.extract_strided_slice %397 {offsets = [0, 0], sizes = [8, 128], strides = [1, 1]} : vector<8x512xf32> to vector<8x128xf32>
    %399 = arith.negf %398 : vector<8x128xf32>
    %400 = math.exp %399 : vector<8x128xf32>
    %cst_114 = arith.constant 1.000000e+00 : f32
    %401 = vector.broadcast %cst_114 : f32 to vector<8x128xf32>
    %402 = arith.addf %401, %400 : vector<8x128xf32>
    %403 = arith.divf %401, %402 : vector<8x128xf32>
    %404 = vector.extract_strided_slice %397 {offsets = [0, 128], sizes = [8, 128], strides = [1, 1]} : vector<8x512xf32> to vector<8x128xf32>
    %405 = arith.negf %404 : vector<8x128xf32>
    %406 = math.exp %405 : vector<8x128xf32>
    %cst_115 = arith.constant 1.000000e+00 : f32
    %407 = vector.broadcast %cst_115 : f32 to vector<8x128xf32>
    %408 = arith.addf %407, %406 : vector<8x128xf32>
    %409 = arith.divf %407, %408 : vector<8x128xf32>
    %410 = vector.extract_strided_slice %397 {offsets = [0, 256], sizes = [8, 128], strides = [1, 1]} : vector<8x512xf32> to vector<8x128xf32>
    %411 = math.tanh %410 : vector<8x128xf32>
    %412 = vector.extract_strided_slice %397 {offsets = [0, 384], sizes = [8, 128], strides = [1, 1]} : vector<8x512xf32> to vector<8x128xf32>
    %413 = arith.negf %412 : vector<8x128xf32>
    %414 = math.exp %413 : vector<8x128xf32>
    %cst_116 = arith.constant 1.000000e+00 : f32
    %415 = vector.broadcast %cst_116 : f32 to vector<8x128xf32>
    %416 = arith.addf %415, %414 : vector<8x128xf32>
    %417 = arith.divf %415, %416 : vector<8x128xf32>
    %418 = arith.mulf %409, %357 : vector<8x128xf32>
    %419 = arith.mulf %403, %411 : vector<8x128xf32>
    %420 = arith.addf %418, %419 : vector<8x128xf32>
    %421 = math.tanh %420 : vector<8x128xf32>
    %422 = arith.mulf %417, %421 : vector<8x128xf32>
    %423 = arith.truncf %422 : vector<8x128xf32> to vector<8x128xbf16>
    %c0_117 = arith.constant 0 : index
    %c0_118 = arith.constant 0 : index
    %424 = vector.load %arg4[%c0_117, %c0_118] : memref<128x512xbf16, #tpu.memory_space<vmem>>, vector<128x512xbf16>
    %cst_119 = arith.constant dense<0.000000e+00> : vector<8x512xf32>
    %425 = tpu.matmul %423, %424, %cst_119 {dimension_numbers = #tpu.dot_dimension_numbers<[1], [0], [0], [1], [0, 0, 1, 1], [], []>} : vector<8x128xbf16>, vector<128x512xbf16>, vector<8x512xf32> -> vector<8x512xf32>
    %426 = arith.truncf %392 : vector<8x128xf32> to vector<8x128xbf16>
    %c0_120 = arith.constant 0 : index
    %c0_121 = arith.constant 0 : index
    %427 = vector.load %arg5[%c0_120, %c0_121] : memref<128x512xbf16, #tpu.memory_space<vmem>>, vector<128x512xbf16>
    %cst_122 = arith.constant dense<0.000000e+00> : vector<8x512xf32>
    %428 = tpu.matmul %426, %427, %cst_122 {dimension_numbers = #tpu.dot_dimension_numbers<[1], [0], [0], [1], [0, 0, 1, 1], [], []>} : vector<8x128xbf16>, vector<128x512xbf16>, vector<8x512xf32> -> vector<8x512xf32>
    %429 = arith.addf %425, %428 : vector<8x512xf32>
    %430 = arith.addf %429, %10 : vector<8x512xf32>
    %431 = vector.extract_strided_slice %430 {offsets = [0, 0], sizes = [8, 128], strides = [1, 1]} : vector<8x512xf32> to vector<8x128xf32>
    %432 = arith.negf %431 : vector<8x128xf32>
    %433 = math.exp %432 : vector<8x128xf32>
    %cst_123 = arith.constant 1.000000e+00 : f32
    %434 = vector.broadcast %cst_123 : f32 to vector<8x128xf32>
    %435 = arith.addf %434, %433 : vector<8x128xf32>
    %436 = arith.divf %434, %435 : vector<8x128xf32>
    %437 = vector.extract_strided_slice %430 {offsets = [0, 128], sizes = [8, 128], strides = [1, 1]} : vector<8x512xf32> to vector<8x128xf32>
    %438 = arith.negf %437 : vector<8x128xf32>
    %439 = math.exp %438 : vector<8x128xf32>
    %cst_124 = arith.constant 1.000000e+00 : f32
    %440 = vector.broadcast %cst_124 : f32 to vector<8x128xf32>
    %441 = arith.addf %440, %439 : vector<8x128xf32>
    %442 = arith.divf %440, %441 : vector<8x128xf32>
    %443 = vector.extract_strided_slice %430 {offsets = [0, 256], sizes = [8, 128], strides = [1, 1]} : vector<8x512xf32> to vector<8x128xf32>
    %444 = math.tanh %443 : vector<8x128xf32>
    %445 = vector.extract_strided_slice %430 {offsets = [0, 384], sizes = [8, 128], strides = [1, 1]} : vector<8x512xf32> to vector<8x128xf32>
    %446 = arith.negf %445 : vector<8x128xf32>
    %447 = math.exp %446 : vector<8x128xf32>
    %cst_125 = arith.constant 1.000000e+00 : f32
    %448 = vector.broadcast %cst_125 : f32 to vector<8x128xf32>
    %449 = arith.addf %448, %447 : vector<8x128xf32>
    %450 = arith.divf %448, %449 : vector<8x128xf32>
    %451 = arith.mulf %442, %390 : vector<8x128xf32>
    %452 = arith.mulf %436, %444 : vector<8x128xf32>
    %453 = arith.addf %451, %452 : vector<8x128xf32>
    %454 = math.tanh %453 : vector<8x128xf32>
    %455 = arith.mulf %450, %454 : vector<8x128xf32>
    %c56 = arith.constant 56 : index
    %c0_126 = arith.constant 0 : index
    %456 = vector.load %arg11[%c56, %c0_126] : memref<64x512xf32, #tpu.memory_space<vmem>>, vector<8x512xf32>
    %457 = arith.truncf %422 : vector<8x128xf32> to vector<8x128xbf16>
    %c0_127 = arith.constant 0 : index
    %c0_128 = arith.constant 0 : index
    %458 = vector.load %arg2[%c0_127, %c0_128] : memref<128x512xbf16, #tpu.memory_space<vmem>>, vector<128x512xbf16>
    %cst_129 = arith.constant dense<0.000000e+00> : vector<8x512xf32>
    %459 = tpu.matmul %457, %458, %cst_129 {dimension_numbers = #tpu.dot_dimension_numbers<[1], [0], [0], [1], [0, 0, 1, 1], [], []>} : vector<8x128xbf16>, vector<128x512xbf16>, vector<8x512xf32> -> vector<8x512xf32>
    %460 = arith.addf %456, %459 : vector<8x512xf32>
    %461 = vector.extract_strided_slice %460 {offsets = [0, 0], sizes = [8, 128], strides = [1, 1]} : vector<8x512xf32> to vector<8x128xf32>
    %462 = arith.negf %461 : vector<8x128xf32>
    %463 = math.exp %462 : vector<8x128xf32>
    %cst_130 = arith.constant 1.000000e+00 : f32
    %464 = vector.broadcast %cst_130 : f32 to vector<8x128xf32>
    %465 = arith.addf %464, %463 : vector<8x128xf32>
    %466 = arith.divf %464, %465 : vector<8x128xf32>
    %467 = vector.extract_strided_slice %460 {offsets = [0, 128], sizes = [8, 128], strides = [1, 1]} : vector<8x512xf32> to vector<8x128xf32>
    %468 = arith.negf %467 : vector<8x128xf32>
    %469 = math.exp %468 : vector<8x128xf32>
    %cst_131 = arith.constant 1.000000e+00 : f32
    %470 = vector.broadcast %cst_131 : f32 to vector<8x128xf32>
    %471 = arith.addf %470, %469 : vector<8x128xf32>
    %472 = arith.divf %470, %471 : vector<8x128xf32>
    %473 = vector.extract_strided_slice %460 {offsets = [0, 256], sizes = [8, 128], strides = [1, 1]} : vector<8x512xf32> to vector<8x128xf32>
    %474 = math.tanh %473 : vector<8x128xf32>
    %475 = vector.extract_strided_slice %460 {offsets = [0, 384], sizes = [8, 128], strides = [1, 1]} : vector<8x512xf32> to vector<8x128xf32>
    %476 = arith.negf %475 : vector<8x128xf32>
    %477 = math.exp %476 : vector<8x128xf32>
    %cst_132 = arith.constant 1.000000e+00 : f32
    %478 = vector.broadcast %cst_132 : f32 to vector<8x128xf32>
    %479 = arith.addf %478, %477 : vector<8x128xf32>
    %480 = arith.divf %478, %479 : vector<8x128xf32>
    %481 = arith.mulf %472, %420 : vector<8x128xf32>
    %482 = arith.mulf %466, %474 : vector<8x128xf32>
    %483 = arith.addf %481, %482 : vector<8x128xf32>
    %484 = math.tanh %483 : vector<8x128xf32>
    %485 = arith.mulf %480, %484 : vector<8x128xf32>
    %486 = arith.truncf %485 : vector<8x128xf32> to vector<8x128xbf16>
    %c0_133 = arith.constant 0 : index
    %c0_134 = arith.constant 0 : index
    %487 = vector.load %arg4[%c0_133, %c0_134] : memref<128x512xbf16, #tpu.memory_space<vmem>>, vector<128x512xbf16>
    %cst_135 = arith.constant dense<0.000000e+00> : vector<8x512xf32>
    %488 = tpu.matmul %486, %487, %cst_135 {dimension_numbers = #tpu.dot_dimension_numbers<[1], [0], [0], [1], [0, 0, 1, 1], [], []>} : vector<8x128xbf16>, vector<128x512xbf16>, vector<8x512xf32> -> vector<8x512xf32>
    %489 = arith.truncf %455 : vector<8x128xf32> to vector<8x128xbf16>
    %c0_136 = arith.constant 0 : index
    %c0_137 = arith.constant 0 : index
    %490 = vector.load %arg5[%c0_136, %c0_137] : memref<128x512xbf16, #tpu.memory_space<vmem>>, vector<128x512xbf16>
    %cst_138 = arith.constant dense<0.000000e+00> : vector<8x512xf32>
    %491 = tpu.matmul %489, %490, %cst_138 {dimension_numbers = #tpu.dot_dimension_numbers<[1], [0], [0], [1], [0, 0, 1, 1], [], []>} : vector<8x128xbf16>, vector<128x512xbf16>, vector<8x512xf32> -> vector<8x512xf32>
    %492 = arith.addf %488, %491 : vector<8x512xf32>
    %493 = arith.addf %492, %10 : vector<8x512xf32>
    %494 = vector.extract_strided_slice %493 {offsets = [0, 0], sizes = [8, 128], strides = [1, 1]} : vector<8x512xf32> to vector<8x128xf32>
    %495 = arith.negf %494 : vector<8x128xf32>
    %496 = math.exp %495 : vector<8x128xf32>
    %cst_139 = arith.constant 1.000000e+00 : f32
    %497 = vector.broadcast %cst_139 : f32 to vector<8x128xf32>
    %498 = arith.addf %497, %496 : vector<8x128xf32>
    %499 = arith.divf %497, %498 : vector<8x128xf32>
    %500 = vector.extract_strided_slice %493 {offsets = [0, 128], sizes = [8, 128], strides = [1, 1]} : vector<8x512xf32> to vector<8x128xf32>
    %501 = arith.negf %500 : vector<8x128xf32>
    %502 = math.exp %501 : vector<8x128xf32>
    %cst_140 = arith.constant 1.000000e+00 : f32
    %503 = vector.broadcast %cst_140 : f32 to vector<8x128xf32>
    %504 = arith.addf %503, %502 : vector<8x128xf32>
    %505 = arith.divf %503, %504 : vector<8x128xf32>
    %506 = vector.extract_strided_slice %493 {offsets = [0, 256], sizes = [8, 128], strides = [1, 1]} : vector<8x512xf32> to vector<8x128xf32>
    %507 = math.tanh %506 : vector<8x128xf32>
    %508 = vector.extract_strided_slice %493 {offsets = [0, 384], sizes = [8, 128], strides = [1, 1]} : vector<8x512xf32> to vector<8x128xf32>
    %509 = arith.negf %508 : vector<8x128xf32>
    %510 = math.exp %509 : vector<8x128xf32>
    %cst_141 = arith.constant 1.000000e+00 : f32
    %511 = vector.broadcast %cst_141 : f32 to vector<8x128xf32>
    %512 = arith.addf %511, %510 : vector<8x128xf32>
    %513 = arith.divf %511, %512 : vector<8x128xf32>
    %514 = arith.mulf %505, %453 : vector<8x128xf32>
    %515 = arith.mulf %499, %507 : vector<8x128xf32>
    %516 = arith.addf %514, %515 : vector<8x128xf32>
    %517 = math.tanh %516 : vector<8x128xf32>
    %518 = arith.mulf %513, %517 : vector<8x128xf32>
    %519 = tpu.concatenate %77, %140, %203, %266, %329, %392, %455, %518 in 0 : vector<8x128xf32>, vector<8x128xf32>, vector<8x128xf32>, vector<8x128xf32>, vector<8x128xf32>, vector<8x128xf32>, vector<8x128xf32>, vector<8x128xf32> -> vector<64x128xf32>
    %520 = arith.truncf %519 : vector<64x128xf32> to vector<64x128xbf16>
    %c0_142 = arith.constant 0 : index
    %c0_143 = arith.constant 0 : index
    %521 = vector.load %arg7[%c0_142, %c0_143] : memref<128x16xbf16, #tpu.memory_space<vmem>>, vector<128x16xbf16>
    %cst_144 = arith.constant dense<0.000000e+00> : vector<64x16xf32>
    %522 = tpu.matmul %520, %521, %cst_144 {dimension_numbers = #tpu.dot_dimension_numbers<[1], [0], [0], [1], [0, 0, 1, 1], [], []>} : vector<64x128xbf16>, vector<128x16xbf16>, vector<64x16xf32> -> vector<64x16xf32>
    %c0_145 = arith.constant 0 : index
    %c0_146 = arith.constant 0 : index
    %523 = vector.load %arg8[%c0_145, %c0_146] : memref<1x16xf32, #tpu.memory_space<vmem>>, vector<1x16xf32>
    %524 = vector.broadcast %523 : vector<1x16xf32> to vector<64x16xf32>
    %525 = arith.addf %522, %524 : vector<64x16xf32>
    %526 = vector.extract_strided_slice %525 {offsets = [0, 0], sizes = [64, 8], strides = [1, 1]} : vector<64x16xf32> to vector<64x8xf32>
    %527 = vector.extract_strided_slice %525 {offsets = [0, 8], sizes = [64, 8], strides = [1, 1]} : vector<64x16xf32> to vector<64x8xf32>
    %c0_147 = arith.constant 0 : index
    %c0_148 = arith.constant 0 : index
    %528 = vector.load %arg9[%c0_147, %c0_148] : memref<64x8xf32, #tpu.memory_space<vmem>>, vector<64x8xf32>
    %cst_149 = arith.constant 5.000000e-01 : f32
    %529 = vector.broadcast %cst_149 : f32 to vector<64x8xf32>
    %530 = arith.mulf %529, %527 : vector<64x8xf32>
    %531 = math.exp %530 : vector<64x8xf32>
    %532 = arith.mulf %528, %531 : vector<64x8xf32>
    %533 = arith.addf %532, %526 : vector<64x8xf32>
    %c0_150 = arith.constant 0 : index
    %c0_151 = arith.constant 0 : index
    %534 = vector.load %arg10[%c0_150, %c0_151] : memref<64x24xf32, #tpu.memory_space<vmem>>, vector<64x16xf32>
    tpu.vector_store %arg10[%c0_150, %c0_151], %525 {strides = array<i32>} : memref<64x24xf32, #tpu.memory_space<vmem>>, vector<64x16xf32>,
    %c0_152 = arith.constant 0 : index
    %c16_153 = arith.constant 16 : index
    %535 = vector.load %arg10[%c0_152, %c16_153] : memref<64x24xf32, #tpu.memory_space<vmem>>, vector<64x8xf32>
    tpu.vector_store %arg10[%c0_152, %c16_153], %533 {strides = array<i32>} : memref<64x24xf32, #tpu.memory_space<vmem>>, vector<64x8xf32>,
    return
  }
}

</mosaic_0001>

<llo_original>
// kernel: decoder_forward.1
$region0: #{decoder_forward.1}
  #allocation0 [shape = 'u32[]', space=smem, size = 0x4, offset = 0x4, fixed_abs, tag = 'smem constant byte address 0x4 - core index']
  #allocation1 [shape = 'u32[144,128]{1,0:T(1,128)}', space=vmem, size = 0x12000, scoped, tag = 'internal scratch']
  #allocation2 [shape = 'f32[64,512]{1,0:T(8,128)}', space=vmem, size = 0x20000, scoped, tag = 'scratch operand']
  %s0 = inlined_call_operand.vmem [shape: f32[64,16], index: 0, kind: input, shape index: {}]
  %s1 = inlined_call_operand.vmem [shape: bf16[16,512], index: 1, kind: input, shape index: {}]
  %s2 = inlined_call_operand.vmem [shape: bf16[128,512], index: 2, kind: input, shape index: {}]
  %s3 = inlined_call_operand.vmem [shape: f32[1,512], index: 3, kind: input, shape index: {}]
  %s4 = inlined_call_operand.hbm [shape: bf16[128,512], index: 4, kind: input, shape index: {}]
  %s5 = inlined_call_operand.hbm [shape: bf16[128,512], index: 5, kind: input, shape index: {}]
  %s6 = inlined_call_operand.vmem [shape: f32[1,512], index: 6, kind: input, shape index: {}]
  %s7 = inlined_call_operand.vmem [shape: bf16[128,16], index: 7, kind: input, shape index: {}]
  %s8 = inlined_call_operand.vmem [shape: f32[1,16], index: 8, kind: input, shape index: {}]
  %s9 = inlined_call_operand.vmem [shape: f32[64,8], index: 9, kind: input, shape index: {}]
  %s10 = inlined_call_operand.vmem [shape: f32[64,24], index: 10, kind: output, shape index: {}]
  %s11 = sld [smem:[#allocation0]]
  $region58: #{decoder_forward.1} parent=0
    _
  %s13 = ssub.s32 1, %s11
  %s14 = scalar_select 0, %s13, %s11
  $region1: #{decoder_forward.1} parent=0
    #allocation3 [shape = 'u8[131072]{0}', space=vmem, size = 0x20000, scoped, tag = 'input window, operand 4, single buffered']
    #allocation4 [shape = 's32[1]{0}', space=sflag, size = 0x4, scoped, tag = 'scoped memory for decoder_forward.1']
    #allocation5 [shape = 'u8[131072]{0}', space=vmem, size = 0x20000, scoped, tag = 'input window, operand 5, single buffered']
    #allocation6 [shape = 's32[1]{0}', space=sflag, size = 0x4, scoped, tag = 'scoped memory for decoder_forward.1']
    %15 = vsyncpa [#allocation4], 0
    %16 = vsyncpa [#allocation6], 0
    // Predicated region
    $region2: #{decoder_forward.1} parent=1 // pred_check
      _
    $region3: #{decoder_forward.1} parent=1 // pred_check_branch
      %18 = sbr.rel (0) target = $region5
    $region4: #{decoder_forward.1} parent=1 // pred_region
      _
    $region5: #{decoder_forward.1} parent=1 // pred_fallthru
      _
    // Predicated region
    $region6: #{decoder_forward.1} parent=1 // pred_check
      _
    $region7: #{decoder_forward.1} parent=1 // pred_check_branch
      %20 = sbr.rel (0) target = $region9
    $region8: #{decoder_forward.1} parent=1 // pred_region
      _
    $region9: #{decoder_forward.1} parent=1 // pred_fallthru
      _
    // Predicated region
    $region10: #{decoder_forward.1} parent=1 // pred_check
      _
    $region11: #{decoder_forward.1} parent=1 // pred_check_branch
      %22 = sbr.rel (0) target = $region13
    $region12: #{decoder_forward.1} parent=1 // pred_region
      _
    $region13: #{decoder_forward.1} parent=1 // pred_fallthru
      _
    // Predicated region
    $region14: #{decoder_forward.1} parent=1 // pred_check
      _
    $region15: #{decoder_forward.1} parent=1 // pred_check_branch
      %24 = sbr.rel (0) target = $region17
    $region16: #{decoder_forward.1} parent=1 // pred_region
      _
    $region17: #{decoder_forward.1} parent=1 // pred_fallthru
      _
    // Predicated region
    $region18: #{decoder_forward.1} parent=1 // pred_check
      _
    $region19: #{decoder_forward.1} parent=1 // pred_check_branch
      %26 = sbr.rel (0) target = $region21
    $region20: #{decoder_forward.1} parent=1 // pred_region
      %s28 = ssub.s32 4096, 4096
      %29 = vsyncadd [#allocation4], %s28
      %s30 = sshll.u32 [#allocation3], 4
      %s31 = int_to_ptr.vmem [resolvable:$true] %s30
      %36 = dma.hbm_to_vmem [thread:$0]  %s4, 4096, %s31, [#allocation4], 256, 256, 16
    $region21: #{decoder_forward.1} parent=1 // pred_fallthru
      _
    // Predicated region
    $region22: #{decoder_forward.1} parent=1 // pred_check
      _
    $region23: #{decoder_forward.1} parent=1 // pred_check_branch
      %38 = sbr.rel (0) target = $region25
    $region24: #{decoder_forward.1} parent=1 // pred_region
      %s40 = ssub.s32 4096, 4096
      %41 = vsyncadd [#allocation6], %s40
      %s42 = sshll.u32 [#allocation5], 4
      %s43 = int_to_ptr.vmem [resolvable:$true] %s42
      %48 = dma.hbm_to_vmem [thread:$0]  %s5, 4096, %s43, [#allocation6], 256, 256, 16
    $region25: #{decoder_forward.1} parent=1 // pred_fallthru
      _
    // Predicated region
    $region26: #{decoder_forward.1} parent=1 // pred_check
      _
    $region27: #{decoder_forward.1} parent=1 // pred_check_branch
      %50 = sbr.rel (0) target = $region29
    $region28: #{decoder_forward.1} parent=1 // pred_region
      _
    $region29: #{decoder_forward.1} parent=1 // pred_fallthru
      _
    // Predicated region
    $region30: #{decoder_forward.1} parent=1 // pred_check
      _
    $region31: #{decoder_forward.1} parent=1 // pred_check_branch
      %52 = sbr.rel (0) target = $region33
    $region32: #{decoder_forward.1} parent=1 // pred_region
      _
    $region33: #{decoder_forward.1} parent=1 // pred_fallthru
      _
    // Predicated region
    $region34: #{decoder_forward.1} parent=1 // pred_check
      _
    $region35: #{decoder_forward.1} parent=1 // pred_check_branch
      %54 = sbr.rel (0) target = $region37
    $region36: #{decoder_forward.1} parent=1 // pred_region
      _
    $region37: #{decoder_forward.1} parent=1 // pred_fallthru
      _
    // Predicated region
    $region38: #{decoder_forward.1} parent=1 // pred_check
      _
    $region39: #{decoder_forward.1} parent=1 // pred_check_branch
      %56 = sbr.rel (0) target = $region41
    $region40: #{decoder_forward.1} parent=1 // pred_region
      _
    $region41: #{decoder_forward.1} parent=1 // pred_fallthru
      _
    // Predicated region
    $region42: #{decoder_forward.1} parent=1 // pred_check
      _
    $region43: #{decoder_forward.1} parent=1 // pred_check_branch
      %58 = sbr.rel (0) target = $region45
    $region44: #{decoder_forward.1} parent=1 // pred_region
      %59 = dma.done [#allocation4], 4096
    $region45: #{decoder_forward.1} parent=1 // pred_fallthru
      _
    // Predicated region
    $region46: #{decoder_forward.1} parent=1 // pred_check
      _
    $region47: #{decoder_forward.1} parent=1 // pred_check_branch
      %61 = sbr.rel (0) target = $region49
    $region48: #{decoder_forward.1} parent=1 // pred_region
      %62 = dma.done [#allocation6], 4096
    $region49: #{decoder_forward.1} parent=1 // pred_fallthru
      _
    %v64 = vld [vmem:[%s0] sm:$0xff]
    %v65 = vld [vmem:[%s0 + $0x8] sm:$0xff]
    %v66 = vld [vmem:[%s0 + $0x10] sm:$0xff]
    %v67 = vld [vmem:[%s0 + $0x18] sm:$0xff]
    %v68 = vld [vmem:[%s0 + $0x20] sm:$0xff]
    %v69 = vld [vmem:[%s0 + $0x28] sm:$0xff]
    %v70 = vld [vmem:[%s0 + $0x30] sm:$0xff]
    %v71 = vld [vmem:[%s0 + $0x38] sm:$0xff]
    %v72 = vpack.c.bf16 %v65, %v64
    %v73 = vpack.c.bf16 %v67, %v66
    %v74 = vpack.c.bf16 %v69, %v68
    %v75 = vpack.c.bf16 %v71, %v70
    %v76 = vld [vmem:[%s1] sm:$0xff]
    %v77 = vld [vmem:[%s1 + $0x8] sm:$0xff]
    %v78 = vld [vmem:[%s1 + $0x10] sm:$0xff]
    %v79 = vld [vmem:[%s1 + $0x18] sm:$0xff]
    %v80 = vld [vmem:[%s3] sm:$0xf]
    %v82 = vlaneseq
    %v83 = vshrl.u32 %v82, 7
    %v84 = vsub.s32 0, %v83
    %v85 = vrot.slane %v80, %v84
    %v86 = vlaneseq
    %v87 = vshrl.u32 %v86, 7
    %v88 = vsub.s32 1, %v87
    %v89 = vrot.slane %v80, %v88
    %v90 = vlaneseq
    %v91 = vshrl.u32 %v90, 7
    %v92 = vsub.s32 2, %v91
    %v93 = vrot.slane %v80, %v92
    %v94 = vlaneseq
    %v95 = vshrl.u32 %v94, 7
    %v96 = vsub.s32 3, %v95
    %v97 = vrot.slane %v80, %v96
    %v106 = vunpack.c.l.b16 %v76
    %v107 = vunpack.c.h.b16 %v76
    %v108 = vunpack.c.l.b16 %v77
    %v109 = vunpack.c.h.b16 %v77
    %v110 = vunpack.c.l.b16 %v78
    %v111 = vunpack.c.h.b16 %v78
    %v112 = vunpack.c.l.b16 %v79
    %v113 = vunpack.c.h.b16 %v79
    %v114 = vpack.c.b16 %v110, %v106
    %v115 = vpack.c.b16 %v111, %v107
    %v116 = vpack.c.b16 %v112, %v108
    %v117 = vpack.c.b16 %v113, %v109
    %vm122 = vcmask 130048
    %v124 = vsel %vm122, %v72, 0
    %v127 = vsel %vm122, %v73, 0
    %v130 = vsel %vm122, %v74, 0
    %v133 = vsel %vm122, %v75, 0
    %135 = vmatprep.subr.bf16.mxu0 %v115
    %136 = vmatpush1.bf16.msra.mxu0 %v114
    %137 = vmatprep.subr.bf16.mxu0 0
    %138 = vmatpush1.bf16.msra.mxu0 0
    %139 = vmatprep.subr.bf16.mxu0 0
    %140 = vmatpush1.bf16.msra.mxu0 0
    %141 = vmatprep.subr.bf16.mxu0 0
    %142 = vmatpush1.bf16.msra.mxu0 0
    %143 = vmatprep.subr.bf16.mxu0 0
    %144 = vmatpush1.bf16.msra.mxu0 0
    %145 = vmatprep.subr.bf16.mxu0 0
    %146 = vmatpush1.bf16.msra.mxu0 0
    %147 = vmatprep.subr.bf16.mxu0 0
    %148 = vmatpush1.bf16.msra.mxu0 0
    %149 = vmatprep.subr.bf16.mxu0 0
    %150 = vmatpush1.bf16.msra.mxu0 0
    %151 = vmatprep.subr.bf16.mxu0 0
    %152 = vmatpush1.bf16.msra.mxu0 0
    %153 = vmatprep.subr.bf16.mxu0 0
    %154 = vmatpush1.bf16.msra.mxu0 0
    %155 = vmatprep.subr.bf16.mxu0 0
    %156 = vmatpush1.bf16.msra.mxu0 0
    %157 = vmatprep.subr.bf16.mxu0 0
    %158 = vmatpush1.bf16.msra.mxu0 0
    %159 = vmatprep.subr.bf16.mxu0 0
    %160 = vmatpush1.bf16.msra.mxu0 0
    %161 = vmatprep.subr.bf16.mxu0 0
    %162 = vmatpush1.bf16.msra.mxu0 0
    %163 = vmatprep.subr.bf16.mxu0 0
    %164 = vmatpush1.bf16.msra.mxu0 0
    %165 = vmatprep.subr.bf16.mxu0 0
    %166 = vmatpush1.bf16.msra.mxu0 0
    %167 = vmatprep.mubr.bf16.mxu0 0
    %168 = vmatmul.mubr.bf16.gmra.mrb[0].mxu0 %v124
    %v169 = vpop.f32.mrb[0].mxu0
    %v170 = vadd.f32 %v85, %v169
    %v171 = vpop.f32.mrb[0].mxu0
    %v172 = vadd.f32 %v89, %v171
    %v173 = vpop.f32.mrb[0].mxu0
    %v174 = vadd.f32 %v85, %v173
    %v175 = vpop.f32.mrb[0].mxu0
    %v176 = vadd.f32 %v89, %v175
    %177 = vmatprep.mubr.bf16.mxu0 0
    %178 = vmatmul.mubr.bf16.gmra.mrb[0].mxu0 %v127
    %v179 = vpop.f32.mrb[0].mxu0
    %v180 = vadd.f32 %v85, %v179
    %v181 = vpop.f32.mrb[0].mxu0
    %v182 = vadd.f32 %v89, %v181
    %v183 = vpop.f32.mrb[0].mxu0
    %v184 = vadd.f32 %v85, %v183
    %v185 = vpop.f32.mrb[0].mxu0
    %v186 = vadd.f32 %v89, %v185
    %187 = vmatprep.mubr.bf16.mxu0 0
    %188 = vmatmul.mubr.bf16.gmra.mrb[0].mxu0 %v130
    %v189 = vpop.f32.mrb[0].mxu0
    %v190 = vadd.f32 %v85, %v189
    %v191 = vpop.f32.mrb[0].mxu0
    %v192 = vadd.f32 %v89, %v191
    %v193 = vpop.f32.mrb[0].mxu0
    %v194 = vadd.f32 %v85, %v193
    %v195 = vpop.f32.mrb[0].mxu0
    %v196 = vadd.f32 %v89, %v195
    %197 = vmatprep.mubr.bf16.mxu0 0
    %198 = vmatmul.mubr.bf16.gmra.mrb[0].mxu0 %v133
    %v199 = vpop.f32.mrb[0].mxu0
    %v200 = vadd.f32 %v85, %v199
    %v201 = vpop.f32.mrb[0].mxu0
    %v202 = vadd.f32 %v89, %v201
    %v203 = vpop.f32.mrb[0].mxu0
    %v204 = vadd.f32 %v85, %v203
    %v205 = vpop.f32.mrb[0].mxu0
    %v206 = vadd.f32 %v89, %v205
    %207 = vdwg.mxu0
    %208 = vmatprep.subr.bf16.mxu0 %v117
    %209 = vmatpush1.bf16.msra.mxu0 %v116
    %210 = vmatprep.subr.bf16.mxu0 0
    %211 = vmatpush1.bf16.msra.mxu0 0
    %212 = vmatprep.subr.bf16.mxu0 0
    %213 = vmatpush1.bf16.msra.mxu0 0
    %214 = vmatprep.subr.bf16.mxu0 0
    %215 = vmatpush1.bf16.msra.mxu0 0
    %216 = vmatprep.subr.bf16.mxu0 0
    %217 = vmatpush1.bf16.msra.mxu0 0
    %218 = vmatprep.subr.bf16.mxu0 0
    %219 = vmatpush1.bf16.msra.mxu0 0
    %220 = vmatprep.subr.bf16.mxu0 0
    %221 = vmatpush1.bf16.msra.mxu0 0
    %222 = vmatprep.subr.bf16.mxu0 0
    %223 = vmatpush1.bf16.msra.mxu0 0
    %224 = vmatprep.subr.bf16.mxu0 0
    %225 = vmatpush1.bf16.msra.mxu0 0
    %226 = vmatprep.subr.bf16.mxu0 0
    %227 = vmatpush1.bf16.msra.mxu0 0
    %228 = vmatprep.subr.bf16.mxu0 0
    %229 = vmatpush1.bf16.msra.mxu0 0
    %230 = vmatprep.subr.bf16.mxu0 0
    %231 = vmatpush1.bf16.msra.mxu0 0
    %232 = vmatprep.subr.bf16.mxu0 0
    %233 = vmatpush1.bf16.msra.mxu0 0
    %234 = vmatprep.subr.bf16.mxu0 0
    %235 = vmatpush1.bf16.msra.mxu0 0
    %236 = vmatprep.subr.bf16.mxu0 0
    %237 = vmatpush1.bf16.msra.mxu0 0
    %238 = vmatprep.subr.bf16.mxu0 0
    %239 = vmatpush1.bf16.msra.mxu0 0
    %240 = vmatprep.mubr.bf16.mxu0 0
    %241 = vmatmul.mubr.bf16.gmra.mrb[0].mxu0 %v124
    %v242 = vpop.f32.mrb[0].mxu0
    %v243 = vadd.f32 %v93, %v242
    %v244 = vpop.f32.mrb[0].mxu0
    %v245 = vadd.f32 %v97, %v244
    %v246 = vpop.f32.mrb[0].mxu0
    %v247 = vadd.f32 %v93, %v246
    %v248 = vpop.f32.mrb[0].mxu0
    %v249 = vadd.f32 %v97, %v248
    %250 = vmatprep.mubr.bf16.mxu0 0
    %251 = vmatmul.mubr.bf16.gmra.mrb[0].mxu0 %v127
    %v252 = vpop.f32.mrb[0].mxu0
    %v253 = vadd.f32 %v93, %v252
    %v254 = vpop.f32.mrb[0].mxu0
    %v255 = vadd.f32 %v97, %v254
    %v256 = vpop.f32.mrb[0].mxu0
    %v257 = vadd.f32 %v93, %v256
    %v258 = vpop.f32.mrb[0].mxu0
    %v259 = vadd.f32 %v97, %v258
    %260 = vmatprep.mubr.bf16.mxu0 0
    %261 = vmatmul.mubr.bf16.gmra.mrb[0].mxu0 %v130
    %v262 = vpop.f32.mrb[0].mxu0
    %v263 = vadd.f32 %v93, %v262
    %v264 = vpop.f32.mrb[0].mxu0
    %v265 = vadd.f32 %v97, %v264
    %v266 = vpop.f32.mrb[0].mxu0
    %v267 = vadd.f32 %v93, %v266
    %v268 = vpop.f32.mrb[0].mxu0
    %v269 = vadd.f32 %v97, %v268
    %270 = vmatprep.mubr.bf16.mxu0 0
    %271 = vmatmul.mubr.bf16.gmra.mrb[0].mxu0 %v133
    %v272 = vpop.f32.mrb[0].mxu0
    %v273 = vadd.f32 %v93, %v272
    %v274 = vpop.f32.mrb[0].mxu0
    %v275 = vadd.f32 %v97, %v274
    %v276 = vpop.f32.mrb[0].mxu0
    %v277 = vadd.f32 %v93, %v276
    %v278 = vpop.f32.mrb[0].mxu0
    %v279 = vadd.f32 %v97, %v278
    %280 = vdwg.mxu0
    %281 = vst [vmem:[#allocation2] sm:$0xff] %v170
    %282 = vst [vmem:[#allocation2 + $0x8] sm:$0xff] %v172
    %283 = vst [vmem:[#allocation2 + $0x10] sm:$0xff] %v243
    %284 = vst [vmem:[#allocation2 + $0x18] sm:$0xff] %v245
    %285 = vst [vmem:[#allocation2 + $0x20] sm:$0xff] %v174
    %286 = vst [vmem:[#allocation2 + $0x28] sm:$0xff] %v176
    %287 = vst [vmem:[#allocation2 + $0x30] sm:$0xff] %v247
    %288 = vst [vmem:[#allocation2 + $0x38] sm:$0xff] %v249
    %289 = vst [vmem:[#allocation2 + $0x40] sm:$0xff] %v180
    %290 = vst [vmem:[#allocation2 + $0x48] sm:$0xff] %v182
    %291 = vst [vmem:[#allocation2 + $0x50] sm:$0xff] %v253
    %292 = vst [vmem:[#allocation2 + $0x58] sm:$0xff] %v255
    %293 = vst [vmem:[#allocation2 + $0x60] sm:$0xff] %v184
    %294 = vst [vmem:[#allocation2 + $0x68] sm:$0xff] %v186
    %295 = vst [vmem:[#allocation2 + $0x70] sm:$0xff] %v257
    %296 = vst [vmem:[#allocation2 + $0x78] sm:$0xff] %v259
    %297 = vst [vmem:[#allocation2 + $0x80] sm:$0xff] %v190
    %298 = vst [vmem:[#allocation2 + $0x88] sm:$0xff] %v192
    %299 = vst [vmem:[#allocation2 + $0x90] sm:$0xff] %v263
    %300 = vst [vmem:[#allocation2 + $0x98] sm:$0xff] %v265
    %301 = vst [vmem:[#allocation2 + $0xa0] sm:$0xff] %v194
    %302 = vst [vmem:[#allocation2 + $0xa8] sm:$0xff] %v196
    %303 = vst [vmem:[#allocation2 + $0xb0] sm:$0xff] %v267
    %304 = vst [vmem:[#allocation2 + $0xb8] sm:$0xff] %v269
    %305 = vst [vmem:[#allocation2 + $0xc0] sm:$0xff] %v200
    %306 = vst [vmem:[#allocation2 + $0xc8] sm:$0xff] %v202
    %307 = vst [vmem:[#allocation2 + $0xd0] sm:$0xff] %v273
    %308 = vst [vmem:[#allocation2 + $0xd8] sm:$0xff] %v275
    %309 = vst [vmem:[#allocation2 + $0xe0] sm:$0xff] %v204
    %310 = vst [vmem:[#allocation2 + $0xe8] sm:$0xff] %v206
    %311 = vst [vmem:[#allocation2 + $0xf0] sm:$0xff] %v277
    %312 = vst [vmem:[#allocation2 + $0xf8] sm:$0xff] %v279
    %v313 = vld [vmem:[%s6] sm:$0xf]
    %v315 = vlaneseq
    %v316 = vshrl.u32 %v315, 7
    %v317 = vsub.s32 0, %v316
    %v318 = vrot.slane %v313, %v317
    %v319 = vlaneseq
    %v320 = vshrl.u32 %v319, 7
    %v321 = vsub.s32 1, %v320
    %v322 = vrot.slane %v313, %v321
    %v323 = vlaneseq
    %v324 = vshrl.u32 %v323, 7
    %v325 = vsub.s32 2, %v324
    %v326 = vrot.slane %v313, %v325
    %v327 = vlaneseq
    %v328 = vshrl.u32 %v327, 7
    %v329 = vsub.s32 3, %v328
    %v330 = vrot.slane %v313, %v329
    %v335 = vld [vmem:[#allocation2] sm:$0xff]
    %v336 = vld [vmem:[#allocation2 + $0x8] sm:$0xff]
    %v337 = vld [vmem:[#allocation2 + $0x10] sm:$0xff]
    %v338 = vld [vmem:[#allocation2 + $0x18] sm:$0xff]
    %v339 = vld [vmem:[%s2] sm:$0xff]
    %v340 = vld [vmem:[%s2 + $0x8] sm:$0xff]
    %v341 = vld [vmem:[%s2 + $0x10] sm:$0xff]
    %v342 = vld [vmem:[%s2 + $0x18] sm:$0xff]
    %v343 = vld [vmem:[%s2 + $0x20] sm:$0xff]
    %v344 = vld [vmem:[%s2 + $0x28] sm:$0xff]
    %v345 = vld [vmem:[%s2 + $0x30] sm:$0xff]
    %v346 = vld [vmem:[%s2 + $0x38] sm:$0xff]
    %v347 = vld [vmem:[%s2 + $0x40] sm:$0xff]
    %v348 = vld [vmem:[%s2 + $0x48] sm:$0xff]
    %v349 = vld [vmem:[%s2 + $0x50] sm:$0xff]
    %v350 = vld [vmem:[%s2 + $0x58] sm:$0xff]
    %v351 = vld [vmem:[%s2 + $0x60] sm:$0xff]
    %v352 = vld [vmem:[%s2 + $0x68] sm:$0xff]
    %v353 = vld [vmem:[%s2 + $0x70] sm:$0xff]
    %v354 = vld [vmem:[%s2 + $0x78] sm:$0xff]
    %v355 = vld [vmem:[%s2 + $0x80] sm:$0xff]
    %v356 = vld [vmem:[%s2 + $0x88] sm:$0xff]
    %v357 = vld [vmem:[%s2 + $0x90] sm:$0xff]
    %v358 = vld [vmem:[%s2 + $0x98] sm:$0xff]
    %v359 = vld [vmem:[%s2 + $0xa0] sm:$0xff]
    %v360 = vld [vmem:[%s2 + $0xa8] sm:$0xff]
    %v361 = vld [vmem:[%s2 + $0xb0] sm:$0xff]
    %v362 = vld [vmem:[%s2 + $0xb8] sm:$0xff]
    %v363 = vld [vmem:[%s2 + $0xc0] sm:$0xff]
    %v364 = vld [vmem:[%s2 + $0xc8] sm:$0xff]
    %v365 = vld [vmem:[%s2 + $0xd0] sm:$0xff]
    %v366 = vld [vmem:[%s2 + $0xd8] sm:$0xff]
    %v367 = vld [vmem:[%s2 + $0xe0] sm:$0xff]
    %v368 = vld [vmem:[%s2 + $0xe8] sm:$0xff]
    %v369 = vld [vmem:[%s2 + $0xf0] sm:$0xff]
    %v370 = vld [vmem:[%s2 + $0xf8] sm:$0xff]
    %v403 = vunpack.c.l.b16 %v339
    %v404 = vunpack.c.h.b16 %v339
    %v405 = vunpack.c.l.b16 %v340
    %v406 = vunpack.c.h.b16 %v340
    %v407 = vunpack.c.l.b16 %v341
    %v408 = vunpack.c.h.b16 %v341
    %v409 = vunpack.c.l.b16 %v342
    %v410 = vunpack.c.h.b16 %v342
    %v411 = vunpack.c.l.b16 %v343
    %v412 = vunpack.c.h.b16 %v343
    %v413 = vunpack.c.l.b16 %v344
    %v414 = vunpack.c.h.b16 %v344
    %v415 = vunpack.c.l.b16 %v345
    %v416 = vunpack.c.h.b16 %v345
    %v417 = vunpack.c.l.b16 %v346
    %v418 = vunpack.c.h.b16 %v346
    %v419 = vunpack.c.l.b16 %v347
    %v420 = vunpack.c.h.b16 %v347
    %v421 = vunpack.c.l.b16 %v348
    %v422 = vunpack.c.h.b16 %v348
    %v423 = vunpack.c.l.b16 %v349
    %v424 = vunpack.c.h.b16 %v349
    %v425 = vunpack.c.l.b16 %v350
    %v426 = vunpack.c.h.b16 %v350
    %v427 = vunpack.c.l.b16 %v351
    %v428 = vunpack.c.h.b16 %v351
    %v429 = vunpack.c.l.b16 %v352
    %v430 = vunpack.c.h.b16 %v352
    %v431 = vunpack.c.l.b16 %v353
    %v432 = vunpack.c.h.b16 %v353
    %v433 = vunpack.c.l.b16 %v354
    %v434 = vunpack.c.h.b16 %v354
    %v435 = vunpack.c.l.b16 %v355
    %v436 = vunpack.c.h.b16 %v355
    %v437 = vunpack.c.l.b16 %v356
    %v438 = vunpack.c.h.b16 %v356
    %v439 = vunpack.c.l.b16 %v357
    %v440 = vunpack.c.h.b16 %v357
    %v441 = vunpack.c.l.b16 %v358
    %v442 = vunpack.c.h.b16 %v358
    %v443 = vunpack.c.l.b16 %v359
    %v444 = vunpack.c.h.b16 %v359
    %v445 = vunpack.c.l.b16 %v360
    %v446 = vunpack.c.h.b16 %v360
    %v447 = vunpack.c.l.b16 %v361
    %v448 = vunpack.c.h.b16 %v361
    %v449 = vunpack.c.l.b16 %v362
    %v450 = vunpack.c.h.b16 %v362
    %v451 = vunpack.c.l.b16 %v363
    %v452 = vunpack.c.h.b16 %v363
    %v453 = vunpack.c.l.b16 %v364
    %v454 = vunpack.c.h.b16 %v364
    %v455 = vunpack.c.l.b16 %v365
    %v456 = vunpack.c.h.b16 %v365
    %v457 = vunpack.c.l.b16 %v366
    %v458 = vunpack.c.h.b16 %v366
    %v459 = vunpack.c.l.b16 %v367
    %v460 = vunpack.c.h.b16 %v367
    %v461 = vunpack.c.l.b16 %v368
    %v462 = vunpack.c.h.b16 %v368
    %v463 = vunpack.c.l.b16 %v369
    %v464 = vunpack.c.h.b16 %v369
    %v465 = vunpack.c.l.b16 %v370
    %v466 = vunpack.c.h.b16 %v370
    %v467 = vpack.c.b16 %v407, %v403
    %v468 = vpack.c.b16 %v408, %v404
    %v469 = vpack.c.b16 %v409, %v405
    %v470 = vpack.c.b16 %v410, %v406
    %v471 = vpack.c.b16 %v415, %v411
    %v472 = vpack.c.b16 %v416, %v412
    %v473 = vpack.c.b16 %v417, %v413
    %v474 = vpack.c.b16 %v418, %v414
    %v475 = vpack.c.b16 %v423, %v419
    %v476 = vpack.c.b16 %v424, %v420
    %v477 = vpack.c.b16 %v425, %v421
    %v478 = vpack.c.b16 %v426, %v422
    %v479 = vpack.c.b16 %v431, %v427
    %v480 = vpack.c.b16 %v432, %v428
    %v481 = vpack.c.b16 %v433, %v429
    %v482 = vpack.c.b16 %v434, %v430
    %v483 = vpack.c.b16 %v439, %v435
    %v484 = vpack.c.b16 %v440, %v436
    %v485 = vpack.c.b16 %v441, %v437
    %v486 = vpack.c.b16 %v442, %v438
    %v487 = vpack.c.b16 %v447, %v443
    %v488 = vpack.c.b16 %v448, %v444
    %v489 = vpack.c.b16 %v449, %v445
    %v490 = vpack.c.b16 %v450, %v446
    %v491 = vpack.c.b16 %v455, %v451
    %v492 = vpack.c.b16 %v456, %v452
    %v493 = vpack.c.b16 %v457, %v453
    %v494 = vpack.c.b16 %v458, %v454
    %v495 = vpack.c.b16 %v463, %v459
    %v496 = vpack.c.b16 %v464, %v460
    %v497 = vpack.c.b16 %v465, %v461
    %v498 = vpack.c.b16 %v466, %v462
    %531 = vmatprep.subr.bf16.mxu0 %v468
    %532 = vmatpush1.bf16.msra.mxu0 %v467
    %533 = vmatprep.subr.bf16.mxu0 %v472
    %534 = vmatpush1.bf16.msra.mxu0 %v471
    %535 = vmatprep.subr.bf16.mxu0 %v476
    %536 = vmatpush1.bf16.msra.mxu0 %v475
    %537 = vmatprep.subr.bf16.mxu0 %v480
    %538 = vmatpush1.bf16.msra.mxu0 %v479
    %539 = vmatprep.subr.bf16.mxu0 %v484
    %540 = vmatpush1.bf16.msra.mxu0 %v483
    %541 = vmatprep.subr.bf16.mxu0 %v488
    %542 = vmatpush1.bf16.msra.mxu0 %v487
    %543 = vmatprep.subr.bf16.mxu0 %v492
    %544 = vmatpush1.bf16.msra.mxu0 %v491
    %545 = vmatprep.subr.bf16.mxu0 %v496
    %546 = vmatpush1.bf16.msra.mxu0 %v495
    %547 = vmatprep.subr.bf16.mxu0 0
    %548 = vmatpush1.bf16.msra.mxu0 0
    %549 = vmatprep.subr.bf16.mxu0 0
    %550 = vmatpush1.bf16.msra.mxu0 0
    %551 = vmatprep.subr.bf16.mxu0 0
    %552 = vmatpush1.bf16.msra.mxu0 0
    %553 = vmatprep.subr.bf16.mxu0 0
    %554 = vmatpush1.bf16.msra.mxu0 0
    %555 = vmatprep.subr.bf16.mxu0 0
    %556 = vmatpush1.bf16.msra.mxu0 0
    %557 = vmatprep.subr.bf16.mxu0 0
    %558 = vmatpush1.bf16.msra.mxu0 0
    %559 = vmatprep.subr.bf16.mxu0 0
    %560 = vmatpush1.bf16.msra.mxu0 0
    %561 = vmatprep.subr.bf16.mxu0 0
    %562 = vmatpush1.bf16.msra.mxu0 0
    %563 = vmatprep.mubr.bf16.mxu0 0
    %564 = vmatmul.mubr.bf16.gmra.mrb[0].mxu0 0
    %v565 = vpop.f32.mrb[0].mxu0
    %v566 = vadd.f32 0.0, %v565
    %v567 = vpop.f32.mrb[0].mxu0
    %v568 = vadd.f32 0.0, %v567
    %v569 = vpop.f32.mrb[0].mxu0
    %v570 = vpop.f32.mrb[0].mxu0
    %571 = vdwg.mxu0
    %572 = vmatprep.subr.bf16.mxu0 %v470
    %573 = vmatpush1.bf16.msra.mxu0 %v469
    %574 = vmatprep.subr.bf16.mxu0 %v474
    %575 = vmatpush1.bf16.msra.mxu0 %v473
    %576 = vmatprep.subr.bf16.mxu0 %v478
    %577 = vmatpush1.bf16.msra.mxu0 %v477
    %578 = vmatprep.subr.bf16.mxu0 %v482
    %579 = vmatpush1.bf16.msra.mxu0 %v481
    %580 = vmatprep.subr.bf16.mxu0 %v486
    %581 = vmatpush1.bf16.msra.mxu0 %v485
    %582 = vmatprep.subr.bf16.mxu0 %v490
    %583 = vmatpush1.bf16.msra.mxu0 %v489
    %584 = vmatprep.subr.bf16.mxu0 %v494
    %585 = vmatpush1.bf16.msra.mxu0 %v493
    %586 = vmatprep.subr.bf16.mxu0 %v498
    %587 = vmatpush1.bf16.msra.mxu0 %v497
    %588 = vmatprep.subr.bf16.mxu0 0
    %589 = vmatpush1.bf16.msra.mxu0 0
    %590 = vmatprep.subr.bf16.mxu0 0
    %591 = vmatpush1.bf16.msra.mxu0 0
    %592 = vmatprep.subr.bf16.mxu0 0
    %593 = vmatpush1.bf16.msra.mxu0 0
    %594 = vmatprep.subr.bf16.mxu0 0
    %595 = vmatpush1.bf16.msra.mxu0 0
    %596 = vmatprep.subr.bf16.mxu0 0
    %597 = vmatpush1.bf16.msra.mxu0 0
    %598 = vmatprep.subr.bf16.mxu0 0
    %599 = vmatpush1.bf16.msra.mxu0 0
    %600 = vmatprep.subr.bf16.mxu0 0
    %601 = vmatpush1.bf16.msra.mxu0 0
    %602 = vmatprep.subr.bf16.mxu0 0
    %603 = vmatpush1.bf16.msra.mxu0 0
    %604 = vmatprep.mubr.bf16.mxu0 0
    %605 = vmatmul.mubr.bf16.gmra.mrb[0].mxu0 0
    %v606 = vpop.f32.mrb[0].mxu0
    %v607 = vadd.f32 0.0, %v606
    %v608 = vpop.f32.mrb[0].mxu0
    %v609 = vadd.f32 0.0, %v608
    %v610 = vpop.f32.mrb[0].mxu0
    %v611 = vpop.f32.mrb[0].mxu0
    %612 = vdwg.mxu0
    %v613 = vadd.f32 %v335, %v566
    %v614 = vadd.f32 %v336, %v568
    %v615 = vadd.f32 %v337, %v607
    %v616 = vadd.f32 %v338, %v609
    %v617 = vxor.u32 %v613, 2147483648
    %v618 = vmul.f32 %v617, 1.442695
    %v619 = vpow.pop %v618
    %v620 = vadd.f32 %v619, 1.0
    %v621 = vrcp.pop %v620
    %v622 = vmul.f32 1.0, %v621
    %v623 = vxor.u32 %v614, 2147483648
    %v624 = vmul.f32 %v623, 1.442695
    %v625 = vpow.pop %v624
    %v626 = vadd.f32 %v625, 1.0
    %v627 = vrcp.pop %v626
    %v628 = vmul.f32 1.0, %v627
    %v629 = vtanh.pop %v615
    %v630 = vxor.u32 %v616, 2147483648
    %v631 = vmul.f32 %v630, 1.442695
    %v632 = vpow.pop %v631
    %v633 = vadd.f32 %v632, 1.0
    %v634 = vrcp.pop %v633
    %v635 = vmul.f32 1.0, %v634
    %v636 = vmul.f32 %v628, 0.0
    %v637 = vmul.f32 %v622, %v629
    %v638 = vadd.f32 %v636, %v637
    %v639 = vtanh.pop %v638
    %v640 = vmul.f32 %v635, %v639
    %v641 = vpack.c.bf16 %v640, %v640
    %v642 = vld [vmem:[#allocation3] sm:$0xff]
    %v643 = vld [vmem:[#allocation3 + $0x8] sm:$0xff]
    %v644 = vld [vmem:[#allocation3 + $0x10] sm:$0xff]
    %v645 = vld [vmem:[#allocation3 + $0x18] sm:$0xff]
    %v646 = vld [vmem:[#allocation3 + $0x20] sm:$0xff]
    %v647 = vld [vmem:[#allocation3 + $0x28] sm:$0xff]
    %v648 = vld [vmem:[#allocation3 + $0x30] sm:$0xff]
    %v649 = vld [vmem:[#allocation3 + $0x38] sm:$0xff]
    %v650 = vld [vmem:[#allocation3 + $0x40] sm:$0xff]
    %v651 = vld [vmem:[#allocation3 + $0x48] sm:$0xff]
    %v652 = vld [vmem:[#allocation3 + $0x50] sm:$0xff]
    %v653 = vld [vmem:[#allocation3 + $0x58] sm:$0xff]
    %v654 = vld [vmem:[#allocation3 + $0x60] sm:$0xff]
    %v655 = vld [vmem:[#allocation3 + $0x68] sm:$0xff]
    %v656 = vld [vmem:[#allocation3 + $0x70] sm:$0xff]
    %v657 = vld [vmem:[#allocation3 + $0x78] sm:$0xff]
    %v658 = vld [vmem:[#allocation3 + $0x80] sm:$0xff]
    %v659 = vld [vmem:[#allocation3 + $0x88] sm:$0xff]
    %v660 = vld [vmem:[#allocation3 + $0x90] sm:$0xff]
    %v661 = vld [vmem:[#allocation3 + $0x98] sm:$0xff]
    %v662 = vld [vmem:[#allocation3 + $0xa0] sm:$0xff]
    %v663 = vld [vmem:[#allocation3 + $0xa8] sm:$0xff]
    %v664 = vld [vmem:[#allocation3 + $0xb0] sm:$0xff]
    %v665 = vld [vmem:[#allocation3 + $0xb8] sm:$0xff]
    %v666 = vld [vmem:[#allocation3 + $0xc0] sm:$0xff]
    %v667 = vld [vmem:[#allocation3 + $0xc8] sm:$0xff]
    %v668 = vld [vmem:[#allocation3 + $0xd0] sm:$0xff]
    %v669 = vld [vmem:[#allocation3 + $0xd8] sm:$0xff]
    %v670 = vld [vmem:[#allocation3 + $0xe0] sm:$0xff]
    %v671 = vld [vmem:[#allocation3 + $0xe8] sm:$0xff]
    %v672 = vld [vmem:[#allocation3 + $0xf0] sm:$0xff]
    %v673 = vld [vmem:[#allocation3 + $0xf8] sm:$0xff]
    %v674 = vld [vmem:[#allocation5] sm:$0xff]
    %v675 = vld [vmem:[#allocation5 + $0x8] sm:$0xff]
    %v676 = vld [vmem:[#allocation5 + $0x10] sm:$0xff]
    %v677 = vld [vmem:[#allocation5 + $0x18] sm:$0xff]
    %v678 = vld [vmem:[#allocation5 + $0x20] sm:$0xff]
    %v679 = vld [vmem:[#allocation5 + $0x28] sm:$0xff]
    %v680 = vld [vmem:[#allocation5 + $0x30] sm:$0xff]
    %v681 = vld [vmem:[#allocation5 + $0x38] sm:$0xff]
    %v682 = vld [vmem:[#allocation5 + $0x40] sm:$0xff]
    %v683 = vld [vmem:[#allocation5 + $0x48] sm:$0xff]
    %v684 = vld [vmem:[#allocation5 + $0x50] sm:$0xff]
    %v685 = vld [vmem:[#allocation5 + $0x58] sm:$0xff]
    %v686 = vld [vmem:[#allocation5 + $0x60] sm:$0xff]
    %v687 = vld [vmem:[#allocation5 + $0x68] sm:$0xff]
    %v688 = vld [vmem:[#allocation5 + $0x70] sm:$0xff]
    %v689 = vld [vmem:[#allocation5 + $0x78] sm:$0xff]
    %v690 = vld [vmem:[#allocation5 + $0x80] sm:$0xff]
    %v691 = vld [vmem:[#allocation5 + $0x88] sm:$0xff]
    %v692 = vld [vmem:[#allocation5 + $0x90] sm:$0xff]
    %v693 = vld [vmem:[#allocation5 + $0x98] sm:$0xff]
    %v694 = vld [vmem:[#allocation5 + $0xa0] sm:$0xff]
    %v695 = vld [vmem:[#allocation5 + $0xa8] sm:$0xff]
    %v696 = vld [vmem:[#allocation5 + $0xb0] sm:$0xff]
    %v697 = vld [vmem:[#allocation5 + $0xb8] sm:$0xff]
    %v698 = vld [vmem:[#allocation5 + $0xc0] sm:$0xff]
    %v699 = vld [vmem:[#allocation5 + $0xc8] sm:$0xff]
    %v700 = vld [vmem:[#allocation5 + $0xd0] sm:$0xff]
    %v701 = vld [vmem:[#allocation5 + $0xd8] sm:$0xff]
    %v702 = vld [vmem:[#allocation5 + $0xe0] sm:$0xff]
    %v703 = vld [vmem:[#allocation5 + $0xe8] sm:$0xff]
    %v704 = vld [vmem:[#allocation5 + $0xf0] sm:$0xff]
    %v705 = vld [vmem:[#allocation5 + $0xf8] sm:$0xff]
    %v738 = vunpack.c.l.b16 %v674
    %v739 = vunpack.c.h.b16 %v674
    %v740 = vunpack.c.l.b16 %v675
    %v741 = vunpack.c.h.b16 %v675
    %v742 = vunpack.c.l.b16 %v676
    %v743 = vunpack.c.h.b16 %v676
    %v744 = vunpack.c.l.b16 %v677
    %v745 = vunpack.c.h.b16 %v677
    %v746 = vunpack.c.l.b16 %v678
    %v747 = vunpack.c.h.b16 %v678
    %v748 = vunpack.c.l.b16 %v679
    %v749 = vunpack.c.h.b16 %v679
    %v750 = vunpack.c.l.b16 %v680
    %v751 = vunpack.c.h.b16 %v680
    %v752 = vunpack.c.l.b16 %v681
    %v753 = vunpack.c.h.b16 %v681
    %v754 = vunpack.c.l.b16 %v682
    %v755 = vunpack.c.h.b16 %v682
    %v756 = vunpack.c.l.b16 %v683
    %v757 = vunpack.c.h.b16 %v683
    %v758 = vunpack.c.l.b16 %v684
    %v759 = vunpack.c.h.b16 %v684
    %v760 = vunpack.c.l.b16 %v685
    %v761 = vunpack.c.h.b16 %v685
    %v762 = vunpack.c.l.b16 %v686
    %v763 = vunpack.c.h.b16 %v686
    %v764 = vunpack.c.l.b16 %v687
    %v765 = vunpack.c.h.b16 %v687
    %v766 = vunpack.c.l.b16 %v688
    %v767 = vunpack.c.h.b16 %v688
    %v768 = vunpack.c.l.b16 %v689
    %v769 = vunpack.c.h.b16 %v689
    %v770 = vunpack.c.l.b16 %v690
    %v771 = vunpack.c.h.b16 %v690
    %v772 = vunpack.c.l.b16 %v691
    %v773 = vunpack.c.h.b16 %v691
    %v774 = vunpack.c.l.b16 %v692
    %v775 = vunpack.c.h.b16 %v692
    %v776 = vunpack.c.l.b16 %v693
    %v777 = vunpack.c.h.b16 %v693
    %v778 = vunpack.c.l.b16 %v694
    %v779 = vunpack.c.h.b16 %v694
    %v780 = vunpack.c.l.b16 %v695
    %v781 = vunpack.c.h.b16 %v695
    %v782 = vunpack.c.l.b16 %v696
    %v783 = vunpack.c.h.b16 %v696
    %v784 = vunpack.c.l.b16 %v697
    %v785 = vunpack.c.h.b16 %v697
    %v786 = vunpack.c.l.b16 %v698
    %v787 = vunpack.c.h.b16 %v698
    %v788 = vunpack.c.l.b16 %v699
    %v789 = vunpack.c.h.b16 %v699
    %v790 = vunpack.c.l.b16 %v700
    %v791 = vunpack.c.h.b16 %v700
    %v792 = vunpack.c.l.b16 %v701
    %v793 = vunpack.c.h.b16 %v701
    %v794 = vunpack.c.l.b16 %v702
    %v795 = vunpack.c.h.b16 %v702
    %v796 = vunpack.c.l.b16 %v703
    %v797 = vunpack.c.h.b16 %v703
    %v798 = vunpack.c.l.b16 %v704
    %v799 = vunpack.c.h.b16 %v704
    %v800 = vunpack.c.l.b16 %v705
    %v801 = vunpack.c.h.b16 %v705
    %v802 = vpack.c.b16 %v742, %v738
    %v803 = vpack.c.b16 %v743, %v739
    %v804 = vpack.c.b16 %v744, %v740
    %v805 = vpack.c.b16 %v745, %v741
    %v806 = vpack.c.b16 %v750, %v746
    %v807 = vpack.c.b16 %v751, %v747
    %v808 = vpack.c.b16 %v752, %v748
    %v809 = vpack.c.b16 %v753, %v749
    %v810 = vpack.c.b16 %v758, %v754
    %v811 = vpack.c.b16 %v759, %v755
    %v812 = vpack.c.b16 %v760, %v756
    %v813 = vpack.c.b16 %v761, %v757
    %v814 = vpack.c.b16 %v766, %v762
    %v815 = vpack.c.b16 %v767, %v763
    %v816 = vpack.c.b16 %v768, %v764
    %v817 = vpack.c.b16 %v769, %v765
    %v818 = vpack.c.b16 %v774, %v770
    %v819 = vpack.c.b16 %v775, %v771
    %v820 = vpack.c.b16 %v776, %v772
    %v821 = vpack.c.b16 %v777, %v773
    %v822 = vpack.c.b16 %v782, %v778
    %v823 = vpack.c.b16 %v783, %v779
    %v824 = vpack.c.b16 %v784, %v780
    %v825 = vpack.c.b16 %v785, %v781
    %v826 = vpack.c.b16 %v790, %v786
    %v827 = vpack.c.b16 %v791, %v787
    %v828 = vpack.c.b16 %v792, %v788
    %v829 = vpack.c.b16 %v793, %v789
    %v830 = vpack.c.b16 %v798, %v794
    %v831 = vpack.c.b16 %v799, %v795
    %v832 = vpack.c.b16 %v800, %v796
    %v833 = vpack.c.b16 %v801, %v797
    %866 = vmatprep.subr.bf16.mxu0 %v803
    %867 = vmatpush1.bf16.msra.mxu0 %v802
    %868 = vmatprep.subr.bf16.mxu0 %v807
    %869 = vmatpush1.bf16.msra.mxu0 %v806
    %870 = vmatprep.subr.bf16.mxu0 %v811
    %871 = vmatpush1.bf16.msra.mxu0 %v810
    %872 = vmatprep.subr.bf16.mxu0 %v815
    %873 = vmatpush1.bf16.msra.mxu0 %v814
    %874 = vmatprep.subr.bf16.mxu0 %v819
    %875 = vmatpush1.bf16.msra.mxu0 %v818
    %876 = vmatprep.subr.bf16.mxu0 %v823
    %877 = vmatpush1.bf16.msra.mxu0 %v822
    %878 = vmatprep.subr.bf16.mxu0 %v827
    %879 = vmatpush1.bf16.msra.mxu0 %v826
    %880 = vmatprep.subr.bf16.mxu0 %v831
    %881 = vmatpush1.bf16.msra.mxu0 %v830
    %882 = vmatprep.subr.bf16.mxu0 0
    %883 = vmatpush1.bf16.msra.mxu0 0
    %884 = vmatprep.subr.bf16.mxu0 0
    %885 = vmatpush1.bf16.msra.mxu0 0
    %886 = vmatprep.subr.bf16.mxu0 0
    %887 = vmatpush1.bf16.msra.mxu0 0
    %888 = vmatprep.subr.bf16.mxu0 0
    %889 = vmatpush1.bf16.msra.mxu0 0
    %890 = vmatprep.subr.bf16.mxu0 0
    %891 = vmatpush1.bf16.msra.mxu0 0
    %892 = vmatprep.subr.bf16.mxu0 0
    %893 = vmatpush1.bf16.msra.mxu0 0
    %894 = vmatprep.subr.bf16.mxu0 0
    %895 = vmatpush1.bf16.msra.mxu0 0
    %896 = vmatprep.subr.bf16.mxu0 0
    %897 = vmatpush1.bf16.msra.mxu0 0
    %898 = vmatprep.mubr.bf16.mxu0 0
    %899 = vmatmul.mubr.bf16.gmra.mrb[0].mxu0 0
    %v900 = vpop.f32.mrb[0].mxu0
    %v901 = vadd.f32 0.0, %v900
    %v902 = vpop.f32.mrb[0].mxu0
    %v903 = vadd.f32 0.0, %v902
    %v904 = vpop.f32.mrb[0].mxu0
    %v905 = vpop.f32.mrb[0].mxu0
    %906 = vdwg.mxu0
    %907 = vmatprep.subr.bf16.mxu0 %v805
    %908 = vmatpush1.bf16.msra.mxu0 %v804
    %909 = vmatprep.subr.bf16.mxu0 %v809
    %910 = vmatpush1.bf16.msra.mxu0 %v808
    %911 = vmatprep.subr.bf16.mxu0 %v813
    %912 = vmatpush1.bf16.msra.mxu0 %v812
    %913 = vmatprep.subr.bf16.mxu0 %v817
    %914 = vmatpush1.bf16.msra.mxu0 %v816
    %915 = vmatprep.subr.bf16.mxu0 %v821
    %916 = vmatpush1.bf16.msra.mxu0 %v820
    %917 = vmatprep.subr.bf16.mxu0 %v825
    %918 = vmatpush1.bf16.msra.mxu0 %v824
    %919 = vmatprep.subr.bf16.mxu0 %v829
    %920 = vmatpush1.bf16.msra.mxu0 %v828
    %921 = vmatprep.subr.bf16.mxu0 %v833
    %922 = vmatpush1.bf16.msra.mxu0 %v832
    %923 = vmatprep.subr.bf16.mxu0 0
    %924 = vmatpush1.bf16.msra.mxu0 0
    %925 = vmatprep.subr.bf16.mxu0 0
    %926 = vmatpush1.bf16.msra.mxu0 0
    %927 = vmatprep.subr.bf16.mxu0 0
    %928 = vmatpush1.bf16.msra.mxu0 0
    %929 = vmatprep.subr.bf16.mxu0 0
    %930 = vmatpush1.bf16.msra.mxu0 0
    %931 = vmatprep.subr.bf16.mxu0 0
    %932 = vmatpush1.bf16.msra.mxu0 0
    %933 = vmatprep.subr.bf16.mxu0 0
    %934 = vmatpush1.bf16.msra.mxu0 0
    %935 = vmatprep.subr.bf16.mxu0 0
    %936 = vmatpush1.bf16.msra.mxu0 0
    %937 = vmatprep.subr.bf16.mxu0 0
    %938 = vmatpush1.bf16.msra.mxu0 0
    %939 = vmatprep.mubr.bf16.mxu0 0
    %940 = vmatmul.mubr.bf16.gmra.mrb[0].mxu0 0
    %v941 = vpop.f32.mrb[0].mxu0
    %v942 = vadd.f32 0.0, %v941
    %v943 = vpop.f32.mrb[0].mxu0
    %v944 = vadd.f32 0.0, %v943
    %v945 = vpop.f32.mrb[0].mxu0
    %v946 = vpop.f32.mrb[0].mxu0
    %947 = vdwg.mxu0
    %v980 = vunpack.c.l.b16 %v642
    %v981 = vunpack.c.h.b16 %v642
    %v982 = vunpack.c.l.b16 %v643
    %v983 = vunpack.c.h.b16 %v643
    %v984 = vunpack.c.l.b16 %v644
    %v985 = vunpack.c.h.b16 %v644
    %v986 = vunpack.c.l.b16 %v645
    %v987 = vunpack.c.h.b16 %v645
    %v988 = vunpack.c.l.b16 %v646
    %v989 = vunpack.c.h.b16 %v646
    %v990 = vunpack.c.l.b16 %v647
    %v991 = vunpack.c.h.b16 %v647
    %v992 = vunpack.c.l.b16 %v648
    %v993 = vunpack.c.h.b16 %v648
    %v994 = vunpack.c.l.b16 %v649
    %v995 = vunpack.c.h.b16 %v649
    %v996 = vunpack.c.l.b16 %v650
    %v997 = vunpack.c.h.b16 %v650
    %v998 = vunpack.c.l.b16 %v651
    %v999 = vunpack.c.h.b16 %v651
    %v1000 = vunpack.c.l.b16 %v652
    %v1001 = vunpack.c.h.b16 %v652
    %v1002 = vunpack.c.l.b16 %v653
    %v1003 = vunpack.c.h.b16 %v653
    %v1004 = vunpack.c.l.b16 %v654
    %v1005 = vunpack.c.h.b16 %v654
    %v1006 = vunpack.c.l.b16 %v655
    %v1007 = vunpack.c.h.b16 %v655
    %v1008 = vunpack.c.l.b16 %v656
    %v1009 = vunpack.c.h.b16 %v656
    %v1010 = vunpack.c.l.b16 %v657
    %v1011 = vunpack.c.h.b16 %v657
    %v1012 = vunpack.c.l.b16 %v658
    %v1013 = vunpack.c.h.b16 %v658
    %v1014 = vunpack.c.l.b16 %v659
    %v1015 = vunpack.c.h.b16 %v659
    %v1016 = vunpack.c.l.b16 %v660
    %v1017 = vunpack.c.h.b16 %v660
    %v1018 = vunpack.c.l.b16 %v661
    %v1019 = vunpack.c.h.b16 %v661
    %v1020 = vunpack.c.l.b16 %v662
    %v1021 = vunpack.c.h.b16 %v662
    %v1022 = vunpack.c.l.b16 %v663
    %v1023 = vunpack.c.h.b16 %v663
    %v1024 = vunpack.c.l.b16 %v664
    %v1025 = vunpack.c.h.b16 %v664
    %v1026 = vunpack.c.l.b16 %v665
    %v1027 = vunpack.c.h.b16 %v665
    %v1028 = vunpack.c.l.b16 %v666
    %v1029 = vunpack.c.h.b16 %v666
    %v1030 = vunpack.c.l.b16 %v667
    %v1031 = vunpack.c.h.b16 %v667
    %v1032 = vunpack.c.l.b16 %v668
    %v1033 = vunpack.c.h.b16 %v668
    %v1034 = vunpack.c.l.b16 %v669
    %v1035 = vunpack.c.h.b16 %v669
    %v1036 = vunpack.c.l.b16 %v670
    %v1037 = vunpack.c.h.b16 %v670
    %v1038 = vunpack.c.l.b16 %v671
    %v1039 = vunpack.c.h.b16 %v671
    %v1040 = vunpack.c.l.b16 %v672
    %v1041 = vunpack.c.h.b16 %v672
    %v1042 = vunpack.c.l.b16 %v673
    %v1043 = vunpack.c.h.b16 %v673
    %v1044 = vpack.c.b16 %v984, %v980
    %v1045 = vpack.c.b16 %v985, %v981
    %v1046 = vpack.c.b16 %v986, %v982
    %v1047 = vpack.c.b16 %v987, %v983
    %v1048 = vpack.c.b16 %v992, %v988
    %v1049 = vpack.c.b16 %v993, %v989
    %v1050 = vpack.c.b16 %v994, %v990
    %v1051 = vpack.c.b16 %v995, %v991
    %v1052 = vpack.c.b16 %v1000, %v996
    %v1053 = vpack.c.b16 %v1001, %v997
    %v1054 = vpack.c.b16 %v1002, %v998
    %v1055 = vpack.c.b16 %v1003, %v999
    %v1056 = vpack.c.b16 %v1008, %v1004
    %v1057 = vpack.c.b16 %v1009, %v1005
    %v1058 = vpack.c.b16 %v1010, %v1006
    %v1059 = vpack.c.b16 %v1011, %v1007
    %v1060 = vpack.c.b16 %v1016, %v1012
    %v1061 = vpack.c.b16 %v1017, %v1013
    %v1062 = vpack.c.b16 %v1018, %v1014
    %v1063 = vpack.c.b16 %v1019, %v1015
    %v1064 = vpack.c.b16 %v1024, %v1020
    %v1065 = vpack.c.b16 %v1025, %v1021
    %v1066 = vpack.c.b16 %v1026, %v1022
    %v1067 = vpack.c.b16 %v1027, %v1023
    %v1068 = vpack.c.b16 %v1032, %v1028
    %v1069 = vpack.c.b16 %v1033, %v1029
    %v1070 = vpack.c.b16 %v1034, %v1030
    %v1071 = vpack.c.b16 %v1035, %v1031
    %v1072 = vpack.c.b16 %v1040, %v1036
    %v1073 = vpack.c.b16 %v1041, %v1037
    %v1074 = vpack.c.b16 %v1042, %v1038
    %v1075 = vpack.c.b16 %v1043, %v1039
    %1108 = vmatprep.subr.bf16.mxu0 %v1045
    %1109 = vmatpush1.bf16.msra.mxu0 %v1044
    %1110 = vmatprep.subr.bf16.mxu0 %v1049
    %1111 = vmatpush1.bf16.msra.mxu0 %v1048
    %1112 = vmatprep.subr.bf16.mxu0 %v1053
    %1113 = vmatpush1.bf16.msra.mxu0 %v1052
    %1114 = vmatprep.subr.bf16.mxu0 %v1057
    %1115 = vmatpush1.bf16.msra.mxu0 %v1056
    %1116 = vmatprep.subr.bf16.mxu0 %v1061
    %1117 = vmatpush1.bf16.msra.mxu0 %v1060
    %1118 = vmatprep.subr.bf16.mxu0 %v1065
    %1119 = vmatpush1.bf16.msra.mxu0 %v1064
    %1120 = vmatprep.subr.bf16.mxu0 %v1069
    %1121 = vmatpush1.bf16.msra.mxu0 %v1068
    %1122 = vmatprep.subr.bf16.mxu0 %v1073
    %1123 = vmatpush1.bf16.msra.mxu0 %v1072
    %1124 = vmatprep.subr.bf16.mxu0 0
    %1125 = vmatpush1.bf16.msra.mxu0 0
    %1126 = vmatprep.subr.bf16.mxu0 0
    %1127 = vmatpush1.bf16.msra.mxu0 0
    %1128 = vmatprep.subr.bf16.mxu0 0
    %1129 = vmatpush1.bf16.msra.mxu0 0
    %1130 = vmatprep.subr.bf16.mxu0 0
    %1131 = vmatpush1.bf16.msra.mxu0 0
    %1132 = vmatprep.subr.bf16.mxu0 0
    %1133 = vmatpush1.bf16.msra.mxu0 0
    %1134 = vmatprep.subr.bf16.mxu0 0
    %1135 = vmatpush1.bf16.msra.mxu0 0
    %1136 = vmatprep.subr.bf16.mxu0 0
    %1137 = vmatpush1.bf16.msra.mxu0 0
    %1138 = vmatprep.subr.bf16.mxu0 0
    %1139 = vmatpush1.bf16.msra.mxu0 0
    %1140 = vmatprep.mubr.bf16.mxu0 0
    %1141 = vmatmul.mubr.bf16.gmra.mrb[0].mxu0 %v641
    %v1142 = vpop.f32.mrb[0].mxu0
    %v1143 = vadd.f32 %v901, %v1142
    %v1144 = vpop.f32.mrb[0].mxu0
    %v1145 = vadd.f32 %v903, %v1144
    %v1146 = vpop.f32.mrb[0].mxu0
    %v1147 = vpop.f32.mrb[0].mxu0
    %1148 = vdwg.mxu0
    %1149 = vmatprep.subr.bf16.mxu0 %v1047
    %1150 = vmatpush1.bf16.msra.mxu0 %v1046
    %1151 = vmatprep.subr.bf16.mxu0 %v1051
    %1152 = vmatpush1.bf16.msra.mxu0 %v1050
    %1153 = vmatprep.subr.bf16.mxu0 %v1055
    %1154 = vmatpush1.bf16.msra.mxu0 %v1054
    %1155 = vmatprep.subr.bf16.mxu0 %v1059
    %1156 = vmatpush1.bf16.msra.mxu0 %v1058
    %1157 = vmatprep.subr.bf16.mxu0 %v1063
    %1158 = vmatpush1.bf16.msra.mxu0 %v1062
    %1159 = vmatprep.subr.bf16.mxu0 %v1067
    %1160 = vmatpush1.bf16.msra.mxu0 %v1066
    %1161 = vmatprep.subr.bf16.mxu0 %v1071
    %1162 = vmatpush1.bf16.msra.mxu0 %v1070
    %1163 = vmatprep.subr.bf16.mxu0 %v1075
    %1164 = vmatpush1.bf16.msra.mxu0 %v1074
    %1165 = vmatprep.subr.bf16.mxu0 0
    %1166 = vmatpush1.bf16.msra.mxu0 0
    %1167 = vmatprep.subr.bf16.mxu0 0
    %1168 = vmatpush1.bf16.msra.mxu0 0
    %1169 = vmatprep.subr.bf16.mxu0 0
    %1170 = vmatpush1.bf16.msra.mxu0 0
    %1171 = vmatprep.subr.bf16.mxu0 0
    %1172 = vmatpush1.bf16.msra.mxu0 0
    %1173 = vmatprep.subr.bf16.mxu0 0
    %1174 = vmatpush1.bf16.msra.mxu0 0
    %1175 = vmatprep.subr.bf16.mxu0 0
    %1176 = vmatpush1.bf16.msra.mxu0 0
    %1177 = vmatprep.subr.bf16.mxu0 0
    %1178 = vmatpush1.bf16.msra.mxu0 0
    %1179 = vmatprep.subr.bf16.mxu0 0
    %1180 = vmatpush1.bf16.msra.mxu0 0
    %1181 = vmatprep.mubr.bf16.mxu0 0
    %1182 = vmatmul.mubr.bf16.gmra.mrb[0].mxu0 %v641
    %v1183 = vpop.f32.mrb[0].mxu0
    %v1184 = vadd.f32 %v942, %v1183
    %v1185 = vpop.f32.mrb[0].mxu0
    %v1186 = vadd.f32 %v944, %v1185
    %v1187 = vpop.f32.mrb[0].mxu0
    %v1188 = vpop.f32.mrb[0].mxu0
    %1189 = vdwg.mxu0
    %v1190 = vadd.f32 %v1143, %v318
    %v1191 = vadd.f32 %v1145, %v322
    %v1192 = vadd.f32 %v1184, %v326
    %v1193 = vadd.f32 %v1186, %v330
    %v1194 = vxor.u32 %v1190, 2147483648
    %v1195 = vmul.f32 %v1194, 1.442695
    %v1196 = vpow.pop %v1195
    %v1197 = vadd.f32 %v1196, 1.0
    %v1198 = vrcp.pop %v1197
    %v1199 = vmul.f32 1.0, %v1198
    %v1200 = vxor.u32 %v1191, 2147483648
    %v1201 = vmul.f32 %v1200, 1.442695
    %v1202 = vpow.pop %v1201
    %v1203 = vadd.f32 %v1202, 1.0
    %v1204 = vrcp.pop %v1203
    %v1205 = vmul.f32 1.0, %v1204
    %v1206 = vtanh.pop %v1192
    %v1207 = vxor.u32 %v1193, 2147483648
    %v1208 = vmul.f32 %v1207, 1.442695
    %v1209 = vpow.pop %v1208
    %v1210 = vadd.f32 %v1209, 1.0
    %v1211 = vrcp.pop %v1210
    %v1212 = vmul.f32 1.0, %v1211
    %v1213 = vmul.f32 %v1205, 0.0
    %v1214 = vmul.f32 %v1199, %v1206
    %v1215 = vadd.f32 %v1213, %v1214
    %v1216 = vtanh.pop %v1215
    %v1217 = vmul.f32 %v1212, %v1216
    %v1218 = vld [vmem:[#allocation2 + $0x20] sm:$0xff]
    %v1219 = vld [vmem:[#allocation2 + $0x28] sm:$0xff]
    %v1220 = vld [vmem:[#allocation2 + $0x30] sm:$0xff]
    %v1221 = vld [vmem:[#allocation2 + $0x38] sm:$0xff]
    %1222 = vmatprep.subr.bf16.mxu0 %v468
    %1223 = vmatpush1.bf16.msra.mxu0 %v467
    %1224 = vmatprep.subr.bf16.mxu0 %v472
    %1225 = vmatpush1.bf16.msra.mxu0 %v471
    %1226 = vmatprep.subr.bf16.mxu0 %v476
    %1227 = vmatpush1.bf16.msra.mxu0 %v475
    %1228 = vmatprep.subr.bf16.mxu0 %v480
    %1229 = vmatpush1.bf16.msra.mxu0 %v479
    %1230 = vmatprep.subr.bf16.mxu0 %v484
    %1231 = vmatpush1.bf16.msra.mxu0 %v483
    %1232 = vmatprep.subr.bf16.mxu0 %v488
    %1233 = vmatpush1.bf16.msra.mxu0 %v487
    %1234 = vmatprep.subr.bf16.mxu0 %v492
    %1235 = vmatpush1.bf16.msra.mxu0 %v491
    %1236 = vmatprep.subr.bf16.mxu0 %v496
    %1237 = vmatpush1.bf16.msra.mxu0 %v495
    %1238 = vmatprep.subr.bf16.mxu0 0
    %1239 = vmatpush1.bf16.msra.mxu0 0
    %1240 = vmatprep.subr.bf16.mxu0 0
    %1241 = vmatpush1.bf16.msra.mxu0 0
    %1242 = vmatprep.subr.bf16.mxu0 0
    %1243 = vmatpush1.bf16.msra.mxu0 0
    %1244 = vmatprep.subr.bf16.mxu0 0
    %1245 = vmatpush1.bf16.msra.mxu0 0
    %1246 = vmatprep.subr.bf16.mxu0 0
    %1247 = vmatpush1.bf16.msra.mxu0 0
    %1248 = vmatprep.subr.bf16.mxu0 0
    %1249 = vmatpush1.bf16.msra.mxu0 0
    %1250 = vmatprep.subr.bf16.mxu0 0
    %1251 = vmatpush1.bf16.msra.mxu0 0
    %1252 = vmatprep.subr.bf16.mxu0 0
    %1253 = vmatpush1.bf16.msra.mxu0 0
    %1254 = vmatprep.mubr.bf16.mxu0 0
    %1255 = vmatmul.mubr.bf16.gmra.mrb[0].mxu0 %v641
    %v1256 = vpop.f32.mrb[0].mxu0
    %v1257 = vadd.f32 0.0, %v1256
    %v1258 = vpop.f32.mrb[0].mxu0
    %v1259 = vadd.f32 0.0, %v1258
    %v1260 = vpop.f32.mrb[0].mxu0
    %v1261 = vpop.f32.mrb[0].mxu0
    %1262 = vdwg.mxu0
    %1263 = vmatprep.subr.bf16.mxu0 %v470
    %1264 = vmatpush1.bf16.msra.mxu0 %v469
    %1265 = vmatprep.subr.bf16.mxu0 %v474
    %1266 = vmatpush1.bf16.msra.mxu0 %v473
    %1267 = vmatprep.subr.bf16.mxu0 %v478
    %1268 = vmatpush1.bf16.msra.mxu0 %v477
    %1269 = vmatprep.subr.bf16.mxu0 %v482
    %1270 = vmatpush1.bf16.msra.mxu0 %v481
    %1271 = vmatprep.subr.bf16.mxu0 %v486
    %1272 = vmatpush1.bf16.msra.mxu0 %v485
    %1273 = vmatprep.subr.bf16.mxu0 %v490
    %1274 = vmatpush1.bf16.msra.mxu0 %v489
    %1275 = vmatprep.subr.bf16.mxu0 %v494
    %1276 = vmatpush1.bf16.msra.mxu0 %v493
    %1277 = vmatprep.subr.bf16.mxu0 %v498
    %1278 = vmatpush1.bf16.msra.mxu0 %v497
    %1279 = vmatprep.subr.bf16.mxu0 0
    %1280 = vmatpush1.bf16.msra.mxu0 0
    %1281 = vmatprep.subr.bf16.mxu0 0
    %1282 = vmatpush1.bf16.msra.mxu0 0
    %1283 = vmatprep.subr.bf16.mxu0 0
    %1284 = vmatpush1.bf16.msra.mxu0 0
    %1285 = vmatprep.subr.bf16.mxu0 0
    %1286 = vmatpush1.bf16.msra.mxu0 0
    %1287 = vmatprep.subr.bf16.mxu0 0
    %1288 = vmatpush1.bf16.msra.mxu0 0
    %1289 = vmatprep.subr.bf16.mxu0 0
    %1290 = vmatpush1.bf16.msra.mxu0 0
    %1291 = vmatprep.subr.bf16.mxu0 0
    %1292 = vmatpush1.bf16.msra.mxu0 0
    %1293 = vmatprep.subr.bf16.mxu0 0
    %1294 = vmatpush1.bf16.msra.mxu0 0
    %1295 = vmatprep.mubr.bf16.mxu0 0
    %1296 = vmatmul.mubr.bf16.gmra.mrb[0].mxu0 %v641
    %v1297 = vpop.f32.mrb[0].mxu0
    %v1298 = vadd.f32 0.0, %v1297
    %v1299 = vpop.f32.mrb[0].mxu0
    %v1300 = vadd.f32 0.0, %v1299
    %v1301 = vpop.f32.mrb[0].mxu0
    %v1302 = vpop.f32.mrb[0].mxu0
    %1303 = vdwg.mxu0
    %v1304 = vadd.f32 %v1218, %v1257
    %v1305 = vadd.f32 %v1219, %v1259
    %v1306 = vadd.f32 %v1220, %v1298
    %v1307 = vadd.f32 %v1221, %v1300
    %v1308 = vxor.u32 %v1304, 2147483648
    %v1309 = vmul.f32 %v1308, 1.442695
    %v1310 = vpow.pop %v1309
    %v1311 = vadd.f32 %v1310, 1.0
    %v1312 = vrcp.pop %v1311
    %v1313 = vmul.f32 1.0, %v1312
    %v1314 = vxor.u32 %v1305, 2147483648
    %v1315 = vmul.f32 %v1314, 1.442695
    %v1316 = vpow.pop %v1315
    %v1317 = vadd.f32 %v1316, 1.0
    %v1318 = vrcp.pop %v1317
    %v1319 = vmul.f32 1.0, %v1318
    %v1320 = vtanh.pop %v1306
    %v1321 = vxor.u32 %v1307, 2147483648
    %v1322 = vmul.f32 %v1321, 1.442695
    %v1323 = vpow.pop %v1322
    %v1324 = vadd.f32 %v1323, 1.0
    %v1325 = vrcp.pop %v1324
    %v1326 = vmul.f32 1.0, %v1325
    %v1327 = vmul.f32 %v1319, %v638
    %v1328 = vmul.f32 %v1313, %v1320
    %v1329 = vadd.f32 %v1327, %v1328
    %v1330 = vtanh.pop %v1329
    %v1331 = vmul.f32 %v1326, %v1330
    %v1332 = vpack.c.bf16 %v1331, %v1331
    %v1333 = vpack.c.bf16 %v1217, %v1217
    %1334 = vmatprep.subr.bf16.mxu0 %v803
    %1335 = vmatpush1.bf16.msra.mxu0 %v802
    %1336 = vmatprep.subr.bf16.mxu0 %v807
    %1337 = vmatpush1.bf16.msra.mxu0 %v806
    %1338 = vmatprep.subr.bf16.mxu0 %v811
    %1339 = vmatpush1.bf16.msra.mxu0 %v810
    %1340 = vmatprep.subr.bf16.mxu0 %v815
    %1341 = vmatpush1.bf16.msra.mxu0 %v814
    %1342 = vmatprep.subr.bf16.mxu0 %v819
    %1343 = vmatpush1.bf16.msra.mxu0 %v818
    %1344 = vmatprep.subr.bf16.mxu0 %v823
    %1345 = vmatpush1.bf16.msra.mxu0 %v822
    %1346 = vmatprep.subr.bf16.mxu0 %v827
    %1347 = vmatpush1.bf16.msra.mxu0 %v826
    %1348 = vmatprep.subr.bf16.mxu0 %v831
    %1349 = vmatpush1.bf16.msra.mxu0 %v830
    %1350 = vmatprep.subr.bf16.mxu0 0
    %1351 = vmatpush1.bf16.msra.mxu0 0
    %1352 = vmatprep.subr.bf16.mxu0 0
    %1353 = vmatpush1.bf16.msra.mxu0 0
    %1354 = vmatprep.subr.bf16.mxu0 0
    %1355 = vmatpush1.bf16.msra.mxu0 0
    %1356 = vmatprep.subr.bf16.mxu0 0
    %1357 = vmatpush1.bf16.msra.mxu0 0
    %1358 = vmatprep.subr.bf16.mxu0 0
    %1359 = vmatpush1.bf16.msra.mxu0 0
    %1360 = vmatprep.subr.bf16.mxu0 0
    %1361 = vmatpush1.bf16.msra.mxu0 0
    %1362 = vmatprep.subr.bf16.mxu0 0
    %1363 = vmatpush1.bf16.msra.mxu0 0
    %1364 = vmatprep.subr.bf16.mxu0 0
    %1365 = vmatpush1.bf16.msra.mxu0 0
    %1366 = vmatprep.mubr.bf16.mxu0 0
    %1367 = vmatmul.mubr.bf16.gmra.mrb[0].mxu0 %v1333
    %v1368 = vpop.f32.mrb[0].mxu0
    %v1369 = vadd.f32 0.0, %v1368
    %v1370 = vpop.f32.mrb[0].mxu0
    %v1371 = vadd.f32 0.0, %v1370
    %v1372 = vpop.f32.mrb[0].mxu0
    %v1373 = vpop.f32.mrb[0].mxu0
    %1374 = vdwg.mxu0
    %1375 = vmatprep.subr.bf16.mxu0 %v805
    %1376 = vmatpush1.bf16.msra.mxu0 %v804
    %1377 = vmatprep.subr.bf16.mxu0 %v809
    %1378 = vmatpush1.bf16.msra.mxu0 %v808
    %1379 = vmatprep.subr.bf16.mxu0 %v813
    %1380 = vmatpush1.bf16.msra.mxu0 %v812
    %1381 = vmatprep.subr.bf16.mxu0 %v817
    %1382 = vmatpush1.bf16.msra.mxu0 %v816
    %1383 = vmatprep.subr.bf16.mxu0 %v821
    %1384 = vmatpush1.bf16.msra.mxu0 %v820
    %1385 = vmatprep.subr.bf16.mxu0 %v825
    %1386 = vmatpush1.bf16.msra.mxu0 %v824
    %1387 = vmatprep.subr.bf16.mxu0 %v829
    %1388 = vmatpush1.bf16.msra.mxu0 %v828
    %1389 = vmatprep.subr.bf16.mxu0 %v833
    %1390 = vmatpush1.bf16.msra.mxu0 %v832
    %1391 = vmatprep.subr.bf16.mxu0 0
    %1392 = vmatpush1.bf16.msra.mxu0 0
    %1393 = vmatprep.subr.bf16.mxu0 0
    %1394 = vmatpush1.bf16.msra.mxu0 0
    %1395 = vmatprep.subr.bf16.mxu0 0
    %1396 = vmatpush1.bf16.msra.mxu0 0
    %1397 = vmatprep.subr.bf16.mxu0 0
    %1398 = vmatpush1.bf16.msra.mxu0 0
    %1399 = vmatprep.subr.bf16.mxu0 0
    %1400 = vmatpush1.bf16.msra.mxu0 0
    %1401 = vmatprep.subr.bf16.mxu0 0
    %1402 = vmatpush1.bf16.msra.mxu0 0
    %1403 = vmatprep.subr.bf16.mxu0 0
    %1404 = vmatpush1.bf16.msra.mxu0 0
    %1405 = vmatprep.subr.bf16.mxu0 0
    %1406 = vmatpush1.bf16.msra.mxu0 0
    %1407 = vmatprep.mubr.bf16.mxu0 0
    %1408 = vmatmul.mubr.bf16.gmra.mrb[0].mxu0 %v1333
    %v1409 = vpop.f32.mrb[0].mxu0
    %v1410 = vadd.f32 0.0, %v1409
    %v1411 = vpop.f32.mrb[0].mxu0
    %v1412 = vadd.f32 0.0, %v1411
    %v1413 = vpop.f32.mrb[0].mxu0
    %v1414 = vpop.f32.mrb[0].mxu0
    %1415 = vdwg.mxu0
    %1416 = vmatprep.subr.bf16.mxu0 %v1045
    %1417 = vmatpush1.bf16.msra.mxu0 %v1044
    %1418 = vmatprep.subr.bf16.mxu0 %v1049
    %1419 = vmatpush1.bf16.msra.mxu0 %v1048
    %1420 = vmatprep.subr.bf16.mxu0 %v1053
    %1421 = vmatpush1.bf16.msra.mxu0 %v1052
    %1422 = vmatprep.subr.bf16.mxu0 %v1057
    %1423 = vmatpush1.bf16.msra.mxu0 %v1056
    %1424 = vmatprep.subr.bf16.mxu0 %v1061
    %1425 = vmatpush1.bf16.msra.mxu0 %v1060
    %1426 = vmatprep.subr.bf16.mxu0 %v1065
    %1427 = vmatpush1.bf16.msra.mxu0 %v1064
    %1428 = vmatprep.subr.bf16.mxu0 %v1069
    %1429 = vmatpush1.bf16.msra.mxu0 %v1068
    %1430 = vmatprep.subr.bf16.mxu0 %v1073
    %1431 = vmatpush1.bf16.msra.mxu0 %v1072
    %1432 = vmatprep.subr.bf16.mxu0 0
    %1433 = vmatpush1.bf16.msra.mxu0 0
    %1434 = vmatprep.subr.bf16.mxu0 0
    %1435 = vmatpush1.bf16.msra.mxu0 0
    %1436 = vmatprep.subr.bf16.mxu0 0
    %1437 = vmatpush1.bf16.msra.mxu0 0
    %1438 = vmatprep.subr.bf16.mxu0 0
    %1439 = vmatpush1.bf16.msra.mxu0 0
    %1440 = vmatprep.subr.bf16.mxu0 0
    %1441 = vmatpush1.bf16.msra.mxu0 0
    %1442 = vmatprep.subr.bf16.mxu0 0
    %1443 = vmatpush1.bf16.msra.mxu0 0
    %1444 = vmatprep.subr.bf16.mxu0 0
    %1445 = vmatpush1.bf16.msra.mxu0 0
    %1446 = vmatprep.subr.bf16.mxu0 0
    %1447 = vmatpush1.bf16.msra.mxu0 0
    %1448 = vmatprep.mubr.bf16.mxu0 0
    %1449 = vmatmul.mubr.bf16.gmra.mrb[0].mxu0 %v1332
    %v1450 = vpop.f32.mrb[0].mxu0
    %v1451 = vadd.f32 %v1369, %v1450
    %v1452 = vpop.f32.mrb[0].mxu0
    %v1453 = vadd.f32 %v1371, %v1452
    %v1454 = vpop.f32.mrb[0].mxu0
    %v1455 = vpop.f32.mrb[0].mxu0
    %1456 = vdwg.mxu0
    %1457 = vmatprep.subr.bf16.mxu0 %v1047
    %1458 = vmatpush1.bf16.msra.mxu0 %v1046
    %1459 = vmatprep.subr.bf16.mxu0 %v1051
    %1460 = vmatpush1.bf16.msra.mxu0 %v1050
    %1461 = vmatprep.subr.bf16.mxu0 %v1055
    %1462 = vmatpush1.bf16.msra.mxu0 %v1054
    %1463 = vmatprep.subr.bf16.mxu0 %v1059
    %1464 = vmatpush1.bf16.msra.mxu0 %v1058
    %1465 = vmatprep.subr.bf16.mxu0 %v1063
    %1466 = vmatpush1.bf16.msra.mxu0 %v1062
    %1467 = vmatprep.subr.bf16.mxu0 %v1067
    %1468 = vmatpush1.bf16.msra.mxu0 %v1066
    %1469 = vmatprep.subr.bf16.mxu0 %v1071
    %1470 = vmatpush1.bf16.msra.mxu0 %v1070
    %1471 = vmatprep.subr.bf16.mxu0 %v1075
    %1472 = vmatpush1.bf16.msra.mxu0 %v1074
    %1473 = vmatprep.subr.bf16.mxu0 0
    %1474 = vmatpush1.bf16.msra.mxu0 0
    %1475 = vmatprep.subr.bf16.mxu0 0
    %1476 = vmatpush1.bf16.msra.mxu0 0
    %1477 = vmatprep.subr.bf16.mxu0 0
    %1478 = vmatpush1.bf16.msra.mxu0 0
    %1479 = vmatprep.subr.bf16.mxu0 0
    %1480 = vmatpush1.bf16.msra.mxu0 0
    %1481 = vmatprep.subr.bf16.mxu0 0
    %1482 = vmatpush1.bf16.msra.mxu0 0
    %1483 = vmatprep.subr.bf16.mxu0 0
    %1484 = vmatpush1.bf16.msra.mxu0 0
    %1485 = vmatprep.subr.bf16.mxu0 0
    %1486 = vmatpush1.bf16.msra.mxu0 0
    %1487 = vmatprep.subr.bf16.mxu0 0
    %1488 = vmatpush1.bf16.msra.mxu0 0
    %1489 = vmatprep.mubr.bf16.mxu0 0
    %1490 = vmatmul.mubr.bf16.gmra.mrb[0].mxu0 %v1332
    %v1491 = vpop.f32.mrb[0].mxu0
    %v1492 = vadd.f32 %v1410, %v1491
    %v1493 = vpop.f32.mrb[0].mxu0
    %v1494 = vadd.f32 %v1412, %v1493
    %v1495 = vpop.f32.mrb[0].mxu0
    %v1496 = vpop.f32.mrb[0].mxu0
    %1497 = vdwg.mxu0
    %v1498 = vadd.f32 %v1451, %v318
    %v1499 = vadd.f32 %v1453, %v322
    %v1500 = vadd.f32 %v1492, %v326
    %v1501 = vadd.f32 %v1494, %v330
    %v1502 = vxor.u32 %v1498, 2147483648
    %v1503 = vmul.f32 %v1502, 1.442695
    %v1504 = vpow.pop %v1503
    %v1505 = vadd.f32 %v1504, 1.0
    %v1506 = vrcp.pop %v1505
    %v1507 = vmul.f32 1.0, %v1506
    %v1508 = vxor.u32 %v1499, 2147483648
    %v1509 = vmul.f32 %v1508, 1.442695
    %v1510 = vpow.pop %v1509
    %v1511 = vadd.f32 %v1510, 1.0
    %v1512 = vrcp.pop %v1511
    %v1513 = vmul.f32 1.0, %v1512
    %v1514 = vtanh.pop %v1500
    %v1515 = vxor.u32 %v1501, 2147483648
    %v1516 = vmul.f32 %v1515, 1.442695
    %v1517 = vpow.pop %v1516
    %v1518 = vadd.f32 %v1517, 1.0
    %v1519 = vrcp.pop %v1518
    %v1520 = vmul.f32 1.0, %v1519
    %v1521 = vmul.f32 %v1513, %v1215
    %v1522 = vmul.f32 %v1507, %v1514
    %v1523 = vadd.f32 %v1521, %v1522
    %v1524 = vtanh.pop %v1523
    %v1525 = vmul.f32 %v1520, %v1524
    %v1526 = vld [vmem:[#allocation2 + $0x40] sm:$0xff]
    %v1527 = vld [vmem:[#allocation2 + $0x48] sm:$0xff]
    %v1528 = vld [vmem:[#allocation2 + $0x50] sm:$0xff]
    %v1529 = vld [vmem:[#allocation2 + $0x58] sm:$0xff]
    %1530 = vmatprep.subr.bf16.mxu0 %v468
    %1531 = vmatpush1.bf16.msra.mxu0 %v467
    %1532 = vmatprep.subr.bf16.mxu0 %v472
    %1533 = vmatpush1.bf16.msra.mxu0 %v471
    %1534 = vmatprep.subr.bf16.mxu0 %v476
    %1535 = vmatpush1.bf16.msra.mxu0 %v475
    %1536 = vmatprep.subr.bf16.mxu0 %v480
    %1537 = vmatpush1.bf16.msra.mxu0 %v479
    %1538 = vmatprep.subr.bf16.mxu0 %v484
    %1539 = vmatpush1.bf16.msra.mxu0 %v483
    %1540 = vmatprep.subr.bf16.mxu0 %v488
    %1541 = vmatpush1.bf16.msra.mxu0 %v487
    %1542 = vmatprep.subr.bf16.mxu0 %v492
    %1543 = vmatpush1.bf16.msra.mxu0 %v491
    %1544 = vmatprep.subr.bf16.mxu0 %v496
    %1545 = vmatpush1.bf16.msra.mxu0 %v495
    %1546 = vmatprep.subr.bf16.mxu0 0
    %1547 = vmatpush1.bf16.msra.mxu0 0
    %1548 = vmatprep.subr.bf16.mxu0 0
    %1549 = vmatpush1.bf16.msra.mxu0 0
    %1550 = vmatprep.subr.bf16.mxu0 0
    %1551 = vmatpush1.bf16.msra.mxu0 0
    %1552 = vmatprep.subr.bf16.mxu0 0
    %1553 = vmatpush1.bf16.msra.mxu0 0
    %1554 = vmatprep.subr.bf16.mxu0 0
    %1555 = vmatpush1.bf16.msra.mxu0 0
    %1556 = vmatprep.subr.bf16.mxu0 0
    %1557 = vmatpush1.bf16.msra.mxu0 0
    %1558 = vmatprep.subr.bf16.mxu0 0
    %1559 = vmatpush1.bf16.msra.mxu0 0
    %1560 = vmatprep.subr.bf16.mxu0 0
    %1561 = vmatpush1.bf16.msra.mxu0 0
    %1562 = vmatprep.mubr.bf16.mxu0 0
    %1563 = vmatmul.mubr.bf16.gmra.mrb[0].mxu0 %v1332
    %v1564 = vpop.f32.mrb[0].mxu0
    %v1565 = vadd.f32 0.0, %v1564
    %v1566 = vpop.f32.mrb[0].mxu0
    %v1567 = vadd.f32 0.0, %v1566
    %v1568 = vpop.f32.mrb[0].mxu0
    %v1569 = vpop.f32.mrb[0].mxu0
    %1570 = vdwg.mxu0
    %1571 = vmatprep.subr.bf16.mxu0 %v470
    %1572 = vmatpush1.bf16.msra.mxu0 %v469
    %1573 = vmatprep.subr.bf16.mxu0 %v474
    %1574 = vmatpush1.bf16.msra.mxu0 %v473
    %1575 = vmatprep.subr.bf16.mxu0 %v478
    %1576 = vmatpush1.bf16.msra.mxu0 %v477
    %1577 = vmatprep.subr.bf16.mxu0 %v482
    %1578 = vmatpush1.bf16.msra.mxu0 %v481
    %1579 = vmatprep.subr.bf16.mxu0 %v486
    %1580 = vmatpush1.bf16.msra.mxu0 %v485
    %1581 = vmatprep.subr.bf16.mxu0 %v490
    %1582 = vmatpush1.bf16.msra.mxu0 %v489
    %1583 = vmatprep.subr.bf16.mxu0 %v494
    %1584 = vmatpush1.bf16.msra.mxu0 %v493
    %1585 = vmatprep.subr.bf16.mxu0 %v498
    %1586 = vmatpush1.bf16.msra.mxu0 %v497
    %1587 = vmatprep.subr.bf16.mxu0 0
    %1588 = vmatpush1.bf16.msra.mxu0 0
    %1589 = vmatprep.subr.bf16.mxu0 0
    %1590 = vmatpush1.bf16.msra.mxu0 0
    %1591 = vmatprep.subr.bf16.mxu0 0
    %1592 = vmatpush1.bf16.msra.mxu0 0
    %1593 = vmatprep.subr.bf16.mxu0 0
    %1594 = vmatpush1.bf16.msra.mxu0 0
    %1595 = vmatprep.subr.bf16.mxu0 0
    %1596 = vmatpush1.bf16.msra.mxu0 0
    %1597 = vmatprep.subr.bf16.mxu0 0
    %1598 = vmatpush1.bf16.msra.mxu0 0
    %1599 = vmatprep.subr.bf16.mxu0 0
    %1600 = vmatpush1.bf16.msra.mxu0 0
    %1601 = vmatprep.subr.bf16.mxu0 0
    %1602 = vmatpush1.bf16.msra.mxu0 0
    %1603 = vmatprep.mubr.bf16.mxu0 0
    %1604 = vmatmul.mubr.bf16.gmra.mrb[0].mxu0 %v1332
    %v1605 = vpop.f32.mrb[0].mxu0
    %v1606 = vadd.f32 0.0, %v1605
    %v1607 = vpop.f32.mrb[0].mxu0
    %v1608 = vadd.f32 0.0, %v1607
    %v1609 = vpop.f32.mrb[0].mxu0
    %v1610 = vpop.f32.mrb[0].mxu0
    %1611 = vdwg.mxu0
    %v1612 = vadd.f32 %v1526, %v1565
    %v1613 = vadd.f32 %v1527, %v1567
    %v1614 = vadd.f32 %v1528, %v1606
    %v1615 = vadd.f32 %v1529, %v1608
    %v1616 = vxor.u32 %v1612, 2147483648
    %v1617 = vmul.f32 %v1616, 1.442695
    %v1618 = vpow.pop %v1617
    %v1619 = vadd.f32 %v1618, 1.0
    %v1620 = vrcp.pop %v1619
    %v1621 = vmul.f32 1.0, %v1620
    %v1622 = vxor.u32 %v1613, 2147483648
    %v1623 = vmul.f32 %v1622, 1.442695
    %v1624 = vpow.pop %v1623
    %v1625 = vadd.f32 %v1624, 1.0
    %v1626 = vrcp.pop %v1625
    %v1627 = vmul.f32 1.0, %v1626
    %v1628 = vtanh.pop %v1614
    %v1629 = vxor.u32 %v1615, 2147483648
    %v1630 = vmul.f32 %v1629, 1.442695
    %v1631 = vpow.pop %v1630
    %v1632 = vadd.f32 %v1631, 1.0
    %v1633 = vrcp.pop %v1632
    %v1634 = vmul.f32 1.0, %v1633
    %v1635 = vmul.f32 %v1627, %v1329
    %v1636 = vmul.f32 %v1621, %v1628
    %v1637 = vadd.f32 %v1635, %v1636
    %v1638 = vtanh.pop %v1637
    %v1639 = vmul.f32 %v1634, %v1638
    %v1640 = vpack.c.bf16 %v1639, %v1639
    %v1641 = vpack.c.bf16 %v1525, %v1525
    %1642 = vmatprep.subr.bf16.mxu0 %v803
    %1643 = vmatpush1.bf16.msra.mxu0 %v802
    %1644 = vmatprep.subr.bf16.mxu0 %v807
    %1645 = vmatpush1.bf16.msra.mxu0 %v806
    %1646 = vmatprep.subr.bf16.mxu0 %v811
    %1647 = vmatpush1.bf16.msra.mxu0 %v810
    %1648 = vmatprep.subr.bf16.mxu0 %v815
    %1649 = vmatpush1.bf16.msra.mxu0 %v814
    %1650 = vmatprep.subr.bf16.mxu0 %v819
    %1651 = vmatpush1.bf16.msra.mxu0 %v818
    %1652 = vmatprep.subr.bf16.mxu0 %v823
    %1653 = vmatpush1.bf16.msra.mxu0 %v822
    %1654 = vmatprep.subr.bf16.mxu0 %v827
    %1655 = vmatpush1.bf16.msra.mxu0 %v826
    %1656 = vmatprep.subr.bf16.mxu0 %v831
    %1657 = vmatpush1.bf16.msra.mxu0 %v830
    %1658 = vmatprep.subr.bf16.mxu0 0
    %1659 = vmatpush1.bf16.msra.mxu0 0
    %1660 = vmatprep.subr.bf16.mxu0 0
    %1661 = vmatpush1.bf16.msra.mxu0 0
    %1662 = vmatprep.subr.bf16.mxu0 0
    %1663 = vmatpush1.bf16.msra.mxu0 0
    %1664 = vmatprep.subr.bf16.mxu0 0
    %1665 = vmatpush1.bf16.msra.mxu0 0
    %1666 = vmatprep.subr.bf16.mxu0 0
    %1667 = vmatpush1.bf16.msra.mxu0 0
    %1668 = vmatprep.subr.bf16.mxu0 0
    %1669 = vmatpush1.bf16.msra.mxu0 0
    %1670 = vmatprep.subr.bf16.mxu0 0
    %1671 = vmatpush1.bf16.msra.mxu0 0
    %1672 = vmatprep.subr.bf16.mxu0 0
    %1673 = vmatpush1.bf16.msra.mxu0 0
    %1674 = vmatprep.mubr.bf16.mxu0 0
    %1675 = vmatmul.mubr.bf16.gmra.mrb[0].mxu0 %v1641
    %v1676 = vpop.f32.mrb[0].mxu0
    %v1677 = vadd.f32 0.0, %v1676
    %v1678 = vpop.f32.mrb[0].mxu0
    %v1679 = vadd.f32 0.0, %v1678
    %v1680 = vpop.f32.mrb[0].mxu0
    %v1681 = vpop.f32.mrb[0].mxu0
    %1682 = vdwg.mxu0
    %1683 = vmatprep.subr.bf16.mxu0 %v805
    %1684 = vmatpush1.bf16.msra.mxu0 %v804
    %1685 = vmatprep.subr.bf16.mxu0 %v809
    %1686 = vmatpush1.bf16.msra.mxu0 %v808
    %1687 = vmatprep.subr.bf16.mxu0 %v813
    %1688 = vmatpush1.bf16.msra.mxu0 %v812
    %1689 = vmatprep.subr.bf16.mxu0 %v817
    %1690 = vmatpush1.bf16.msra.mxu0 %v816
    %1691 = vmatprep.subr.bf16.mxu0 %v821
    %1692 = vmatpush1.bf16.msra.mxu0 %v820
    %1693 = vmatprep.subr.bf16.mxu0 %v825
    %1694 = vmatpush1.bf16.msra.mxu0 %v824
    %1695 = vmatprep.subr.bf16.mxu0 %v829
    %1696 = vmatpush1.bf16.msra.mxu0 %v828
    %1697 = vmatprep.subr.bf16.mxu0 %v833
    %1698 = vmatpush1.bf16.msra.mxu0 %v832
    %1699 = vmatprep.subr.bf16.mxu0 0
    %1700 = vmatpush1.bf16.msra.mxu0 0
    %1701 = vmatprep.subr.bf16.mxu0 0
    %1702 = vmatpush1.bf16.msra.mxu0 0
    %1703 = vmatprep.subr.bf16.mxu0 0
    %1704 = vmatpush1.bf16.msra.mxu0 0
    %1705 = vmatprep.subr.bf16.mxu0 0
    %1706 = vmatpush1.bf16.msra.mxu0 0
    %1707 = vmatprep.subr.bf16.mxu0 0
    %1708 = vmatpush1.bf16.msra.mxu0 0
    %1709 = vmatprep.subr.bf16.mxu0 0
    %1710 = vmatpush1.bf16.msra.mxu0 0
    %1711 = vmatprep.subr.bf16.mxu0 0
    %1712 = vmatpush1.bf16.msra.mxu0 0
    %1713 = vmatprep.subr.bf16.mxu0 0
    %1714 = vmatpush1.bf16.msra.mxu0 0
    %1715 = vmatprep.mubr.bf16.mxu0 0
    %1716 = vmatmul.mubr.bf16.gmra.mrb[0].mxu0 %v1641
    %v1717 = vpop.f32.mrb[0].mxu0
    %v1718 = vadd.f32 0.0, %v1717
    %v1719 = vpop.f32.mrb[0].mxu0
    %v1720 = vadd.f32 0.0, %v1719
    %v1721 = vpop.f32.mrb[0].mxu0
    %v1722 = vpop.f32.mrb[0].mxu0
    %1723 = vdwg.mxu0
    %1724 = vmatprep.subr.bf16.mxu0 %v1045
    %1725 = vmatpush1.bf16.msra.mxu0 %v1044
    %1726 = vmatprep.subr.bf16.mxu0 %v1049
    %1727 = vmatpush1.bf16.msra.mxu0 %v1048
    %1728 = vmatprep.subr.bf16.mxu0 %v1053
    %1729 = vmatpush1.bf16.msra.mxu0 %v1052
    %1730 = vmatprep.subr.bf16.mxu0 %v1057
    %1731 = vmatpush1.bf16.msra.mxu0 %v1056
    %1732 = vmatprep.subr.bf16.mxu0 %v1061
    %1733 = vmatpush1.bf16.msra.mxu0 %v1060
    %1734 = vmatprep.subr.bf16.mxu0 %v1065
    %1735 = vmatpush1.bf16.msra.mxu0 %v1064
    %1736 = vmatprep.subr.bf16.mxu0 %v1069
    %1737 = vmatpush1.bf16.msra.mxu0 %v1068
    %1738 = vmatprep.subr.bf16.mxu0 %v1073
    %1739 = vmatpush1.bf16.msra.mxu0 %v1072
    %1740 = vmatprep.subr.bf16.mxu0 0
    %1741 = vmatpush1.bf16.msra.mxu0 0
    %1742 = vmatprep.subr.bf16.mxu0 0
    %1743 = vmatpush1.bf16.msra.mxu0 0
    %1744 = vmatprep.subr.bf16.mxu0 0
    %1745 = vmatpush1.bf16.msra.mxu0 0
    %1746 = vmatprep.subr.bf16.mxu0 0
    %1747 = vmatpush1.bf16.msra.mxu0 0
    %1748 = vmatprep.subr.bf16.mxu0 0
    %1749 = vmatpush1.bf16.msra.mxu0 0
    %1750 = vmatprep.subr.bf16.mxu0 0
    %1751 = vmatpush1.bf16.msra.mxu0 0
    %1752 = vmatprep.subr.bf16.mxu0 0
    %1753 = vmatpush1.bf16.msra.mxu0 0
    %1754 = vmatprep.subr.bf16.mxu0 0
    %1755 = vmatpush1.bf16.msra.mxu0 0
    %1756 = vmatprep.mubr.bf16.mxu0 0
    %1757 = vmatmul.mubr.bf16.gmra.mrb[0].mxu0 %v1640
    %v1758 = vpop.f32.mrb[0].mxu0
    %v1759 = vadd.f32 %v1677, %v1758
    %v1760 = vpop.f32.mrb[0].mxu0
    %v1761 = vadd.f32 %v1679, %v1760
    %v1762 = vpop.f32.mrb[0].mxu0
    %v1763 = vpop.f32.mrb[0].mxu0
    %1764 = vdwg.mxu0
    %1765 = vmatprep.subr.bf16.mxu0 %v1047
    %1766 = vmatpush1.bf16.msra.mxu0 %v1046
    %1767 = vmatprep.subr.bf16.mxu0 %v1051
    %1768 = vmatpush1.bf16.msra.mxu0 %v1050
    %1769 = vmatprep.subr.bf16.mxu0 %v1055
    %1770 = vmatpush1.bf16.msra.mxu0 %v1054
    %1771 = vmatprep.subr.bf16.mxu0 %v1059
    %1772 = vmatpush1.bf16.msra.mxu0 %v1058
    %1773 = vmatprep.subr.bf16.mxu0 %v1063
    %1774 = vmatpush1.bf16.msra.mxu0 %v1062
    %1775 = vmatprep.subr.bf16.mxu0 %v1067
    %1776 = vmatpush1.bf16.msra.mxu0 %v1066
    %1777 = vmatprep.subr.bf16.mxu0 %v1071
    %1778 = vmatpush1.bf16.msra.mxu0 %v1070
    %1779 = vmatprep.subr.bf16.mxu0 %v1075
    %1780 = vmatpush1.bf16.msra.mxu0 %v1074
    %1781 = vmatprep.subr.bf16.mxu0 0
    %1782 = vmatpush1.bf16.msra.mxu0 0
    %1783 = vmatprep.subr.bf16.mxu0 0
    %1784 = vmatpush1.bf16.msra.mxu0 0
    %1785 = vmatprep.subr.bf16.mxu0 0
    %1786 = vmatpush1.bf16.msra.mxu0 0
    %1787 = vmatprep.subr.bf16.mxu0 0
    %1788 = vmatpush1.bf16.msra.mxu0 0
    %1789 = vmatprep.subr.bf16.mxu0 0
    %1790 = vmatpush1.bf16.msra.mxu0 0
    %1791 = vmatprep.subr.bf16.mxu0 0
    %1792 = vmatpush1.bf16.msra.mxu0 0
    %1793 = vmatprep.subr.bf16.mxu0 0
    %1794 = vmatpush1.bf16.msra.mxu0 0
    %1795 = vmatprep.subr.bf16.mxu0 0
    %1796 = vmatpush1.bf16.msra.mxu0 0
    %1797 = vmatprep.mubr.bf16.mxu0 0
    %1798 = vmatmul.mubr.bf16.gmra.mrb[0].mxu0 %v1640
    %v1799 = vpop.f32.mrb[0].mxu0
    %v1800 = vadd.f32 %v1718, %v1799
    %v1801 = vpop.f32.mrb[0].mxu0
    %v1802 = vadd.f32 %v1720, %v1801
    %v1803 = vpop.f32.mrb[0].mxu0
    %v1804 = vpop.f32.mrb[0].mxu0
    %1805 = vdwg.mxu0
    %v1806 = vadd.f32 %v1759, %v318
    %v1807 = vadd.f32 %v1761, %v322
    %v1808 = vadd.f32 %v1800, %v326
    %v1809 = vadd.f32 %v1802, %v330
    %v1810 = vxor.u32 %v1806, 2147483648
    %v1811 = vmul.f32 %v1810, 1.442695
    %v1812 = vpow.pop %v1811
    %v1813 = vadd.f32 %v1812, 1.0
    %v1814 = vrcp.pop %v1813
    %v1815 = vmul.f32 1.0, %v1814
    %v1816 = vxor.u32 %v1807, 2147483648
    %v1817 = vmul.f32 %v1816, 1.442695
    %v1818 = vpow.pop %v1817
    %v1819 = vadd.f32 %v1818, 1.0
    %v1820 = vrcp.pop %v1819
    %v1821 = vmul.f32 1.0, %v1820
    %v1822 = vtanh.pop %v1808
    %v1823 = vxor.u32 %v1809, 2147483648
    %v1824 = vmul.f32 %v1823, 1.442695
    %v1825 = vpow.pop %v1824
    %v1826 = vadd.f32 %v1825, 1.0
    %v1827 = vrcp.pop %v1826
    %v1828 = vmul.f32 1.0, %v1827
    %v1829 = vmul.f32 %v1821, %v1523
    %v1830 = vmul.f32 %v1815, %v1822
    %v1831 = vadd.f32 %v1829, %v1830
    %v1832 = vtanh.pop %v1831
    %v1833 = vmul.f32 %v1828, %v1832
    %v1834 = vld [vmem:[#allocation2 + $0x60] sm:$0xff]
    %v1835 = vld [vmem:[#allocation2 + $0x68] sm:$0xff]
    %v1836 = vld [vmem:[#allocation2 + $0x70] sm:$0xff]
    %v1837 = vld [vmem:[#allocation2 + $0x78] sm:$0xff]
    %1838 = vmatprep.subr.bf16.mxu0 %v468
    %1839 = vmatpush1.bf16.msra.mxu0 %v467
    %1840 = vmatprep.subr.bf16.mxu0 %v472
    %1841 = vmatpush1.bf16.msra.mxu0 %v471
    %1842 = vmatprep.subr.bf16.mxu0 %v476
    %1843 = vmatpush1.bf16.msra.mxu0 %v475
    %1844 = vmatprep.subr.bf16.mxu0 %v480
    %1845 = vmatpush1.bf16.msra.mxu0 %v479
    %1846 = vmatprep.subr.bf16.mxu0 %v484
    %1847 = vmatpush1.bf16.msra.mxu0 %v483
    %1848 = vmatprep.subr.bf16.mxu0 %v488
    %1849 = vmatpush1.bf16.msra.mxu0 %v487
    %1850 = vmatprep.subr.bf16.mxu0 %v492
    %1851 = vmatpush1.bf16.msra.mxu0 %v491
    %1852 = vmatprep.subr.bf16.mxu0 %v496
    %1853 = vmatpush1.bf16.msra.mxu0 %v495
    %1854 = vmatprep.subr.bf16.mxu0 0
    %1855 = vmatpush1.bf16.msra.mxu0 0
    %1856 = vmatprep.subr.bf16.mxu0 0
    %1857 = vmatpush1.bf16.msra.mxu0 0
    %1858 = vmatprep.subr.bf16.mxu0 0
    %1859 = vmatpush1.bf16.msra.mxu0 0
    %1860 = vmatprep.subr.bf16.mxu0 0
    %1861 = vmatpush1.bf16.msra.mxu0 0
    %1862 = vmatprep.subr.bf16.mxu0 0
    %1863 = vmatpush1.bf16.msra.mxu0 0
    %1864 = vmatprep.subr.bf16.mxu0 0
    %1865 = vmatpush1.bf16.msra.mxu0 0
    %1866 = vmatprep.subr.bf16.mxu0 0
    %1867 = vmatpush1.bf16.msra.mxu0 0
    %1868 = vmatprep.subr.bf16.mxu0 0
    %1869 = vmatpush1.bf16.msra.mxu0 0
    %1870 = vmatprep.mubr.bf16.mxu0 0
    %1871 = vmatmul.mubr.bf16.gmra.mrb[0].mxu0 %v1640
    %v1872 = vpop.f32.mrb[0].mxu0
    %v1873 = vadd.f32 0.0, %v1872
    %v1874 = vpop.f32.mrb[0].mxu0
    %v1875 = vadd.f32 0.0, %v1874
    %v1876 = vpop.f32.mrb[0].mxu0
    %v1877 = vpop.f32.mrb[0].mxu0
    %1878 = vdwg.mxu0
    %1879 = vmatprep.subr.bf16.mxu0 %v470
    %1880 = vmatpush1.bf16.msra.mxu0 %v469
    %1881 = vmatprep.subr.bf16.mxu0 %v474
    %1882 = vmatpush1.bf16.msra.mxu0 %v473
    %1883 = vmatprep.subr.bf16.mxu0 %v478
    %1884 = vmatpush1.bf16.msra.mxu0 %v477
    %1885 = vmatprep.subr.bf16.mxu0 %v482
    %1886 = vmatpush1.bf16.msra.mxu0 %v481
    %1887 = vmatprep.subr.bf16.mxu0 %v486
    %1888 = vmatpush1.bf16.msra.mxu0 %v485
    %1889 = vmatprep.subr.bf16.mxu0 %v490
    %1890 = vmatpush1.bf16.msra.mxu0 %v489
    %1891 = vmatprep.subr.bf16.mxu0 %v494
    %1892 = vmatpush1.bf16.msra.mxu0 %v493
    %1893 = vmatprep.subr.bf16.mxu0 %v498
    %1894 = vmatpush1.bf16.msra.mxu0 %v497
    %1895 = vmatprep.subr.bf16.mxu0 0
    %1896 = vmatpush1.bf16.msra.mxu0 0
    %1897 = vmatprep.subr.bf16.mxu0 0
    %1898 = vmatpush1.bf16.msra.mxu0 0
    %1899 = vmatprep.subr.bf16.mxu0 0
    %1900 = vmatpush1.bf16.msra.mxu0 0
    %1901 = vmatprep.subr.bf16.mxu0 0
    %1902 = vmatpush1.bf16.msra.mxu0 0
    %1903 = vmatprep.subr.bf16.mxu0 0
    %1904 = vmatpush1.bf16.msra.mxu0 0
    %1905 = vmatprep.subr.bf16.mxu0 0
    %1906 = vmatpush1.bf16.msra.mxu0 0
    %1907 = vmatprep.subr.bf16.mxu0 0
    %1908 = vmatpush1.bf16.msra.mxu0 0
    %1909 = vmatprep.subr.bf16.mxu0 0
    %1910 = vmatpush1.bf16.msra.mxu0 0
    %1911 = vmatprep.mubr.bf16.mxu0 0
    %1912 = vmatmul.mubr.bf16.gmra.mrb[0].mxu0 %v1640
    %v1913 = vpop.f32.mrb[0].mxu0
    %v1914 = vadd.f32 0.0, %v1913
    %v1915 = vpop.f32.mrb[0].mxu0
    %v1916 = vadd.f32 0.0, %v1915
    %v1917 = vpop.f32.mrb[0].mxu0
    %v1918 = vpop.f32.mrb[0].mxu0
    %1919 = vdwg.mxu0
    %v1920 = vadd.f32 %v1834, %v1873
    %v1921 = vadd.f32 %v1835, %v1875
    %v1922 = vadd.f32 %v1836, %v1914
    %v1923 = vadd.f32 %v1837, %v1916
    %v1924 = vxor.u32 %v1920, 2147483648
    %v1925 = vmul.f32 %v1924, 1.442695
    %v1926 = vpow.pop %v1925
    %v1927 = vadd.f32 %v1926, 1.0
    %v1928 = vrcp.pop %v1927
    %v1929 = vmul.f32 1.0, %v1928
    %v1930 = vxor.u32 %v1921, 2147483648
    %v1931 = vmul.f32 %v1930, 1.442695
    %v1932 = vpow.pop %v1931
    %v1933 = vadd.f32 %v1932, 1.0
    %v1934 = vrcp.pop %v1933
    %v1935 = vmul.f32 1.0, %v1934
    %v1936 = vtanh.pop %v1922
    %v1937 = vxor.u32 %v1923, 2147483648
    %v1938 = vmul.f32 %v1937, 1.442695
    %v1939 = vpow.pop %v1938
    %v1940 = vadd.f32 %v1939, 1.0
    %v1941 = vrcp.pop %v1940
    %v1942 = vmul.f32 1.0, %v1941
    %v1943 = vmul.f32 %v1935, %v1637
    %v1944 = vmul.f32 %v1929, %v1936
    %v1945 = vadd.f32 %v1943, %v1944
    %v1946 = vtanh.pop %v1945
    %v1947 = vmul.f32 %v1942, %v1946
    %v1948 = vpack.c.bf16 %v1947, %v1947
    %v1949 = vpack.c.bf16 %v1833, %v1833
    %1950 = vmatprep.subr.bf16.mxu0 %v803
    %1951 = vmatpush1.bf16.msra.mxu0 %v802
    %1952 = vmatprep.subr.bf16.mxu0 %v807
    %1953 = vmatpush1.bf16.msra.mxu0 %v806
    %1954 = vmatprep.subr.bf16.mxu0 %v811
    %1955 = vmatpush1.bf16.msra.mxu0 %v810
    %1956 = vmatprep.subr.bf16.mxu0 %v815
    %1957 = vmatpush1.bf16.msra.mxu0 %v814
    %1958 = vmatprep.subr.bf16.mxu0 %v819
    %1959 = vmatpush1.bf16.msra.mxu0 %v818
    %1960 = vmatprep.subr.bf16.mxu0 %v823
    %1961 = vmatpush1.bf16.msra.mxu0 %v822
    %1962 = vmatprep.subr.bf16.mxu0 %v827
    %1963 = vmatpush1.bf16.msra.mxu0 %v826
    %1964 = vmatprep.subr.bf16.mxu0 %v831
    %1965 = vmatpush1.bf16.msra.mxu0 %v830
    %1966 = vmatprep.subr.bf16.mxu0 0
    %1967 = vmatpush1.bf16.msra.mxu0 0
    %1968 = vmatprep.subr.bf16.mxu0 0
    %1969 = vmatpush1.bf16.msra.mxu0 0
    %1970 = vmatprep.subr.bf16.mxu0 0
    %1971 = vmatpush1.bf16.msra.mxu0 0
    %1972 = vmatprep.subr.bf16.mxu0 0
    %1973 = vmatpush1.bf16.msra.mxu0 0
    %1974 = vmatprep.subr.bf16.mxu0 0
    %1975 = vmatpush1.bf16.msra.mxu0 0
    %1976 = vmatprep.subr.bf16.mxu0 0
    %1977 = vmatpush1.bf16.msra.mxu0 0
    %1978 = vmatprep.subr.bf16.mxu0 0
    %1979 = vmatpush1.bf16.msra.mxu0 0
    %1980 = vmatprep.subr.bf16.mxu0 0
    %1981 = vmatpush1.bf16.msra.mxu0 0
    %1982 = vmatprep.mubr.bf16.mxu0 0
    %1983 = vmatmul.mubr.bf16.gmra.mrb[0].mxu0 %v1949
    %v1984 = vpop.f32.mrb[0].mxu0
    %v1985 = vadd.f32 0.0, %v1984
    %v1986 = vpop.f32.mrb[0].mxu0
    %v1987 = vadd.f32 0.0, %v1986
    %v1988 = vpop.f32.mrb[0].mxu0
    %v1989 = vpop.f32.mrb[0].mxu0
    %1990 = vdwg.mxu0
    %1991 = vmatprep.subr.bf16.mxu0 %v805
    %1992 = vmatpush1.bf16.msra.mxu0 %v804
    %1993 = vmatprep.subr.bf16.mxu0 %v809
    %1994 = vmatpush1.bf16.msra.mxu0 %v808
    %1995 = vmatprep.subr.bf16.mxu0 %v813
    %1996 = vmatpush1.bf16.msra.mxu0 %v812
    %1997 = vmatprep.subr.bf16.mxu0 %v817
    %1998 = vmatpush1.bf16.msra.mxu0 %v816
    %1999 = vmatprep.subr.bf16.mxu0 %v821
    %2000 = vmatpush1.bf16.msra.mxu0 %v820
    %2001 = vmatprep.subr.bf16.mxu0 %v825
    %2002 = vmatpush1.bf16.msra.mxu0 %v824
    %2003 = vmatprep.subr.bf16.mxu0 %v829
    %2004 = vmatpush1.bf16.msra.mxu0 %v828
    %2005 = vmatprep.subr.bf16.mxu0 %v833
    %2006 = vmatpush1.bf16.msra.mxu0 %v832
    %2007 = vmatprep.subr.bf16.mxu0 0
    %2008 = vmatpush1.bf16.msra.mxu0 0
    %2009 = vmatprep.subr.bf16.mxu0 0
    %2010 = vmatpush1.bf16.msra.mxu0 0
    %2011 = vmatprep.subr.bf16.mxu0 0
    %2012 = vmatpush1.bf16.msra.mxu0 0
    %2013 = vmatprep.subr.bf16.mxu0 0
    %2014 = vmatpush1.bf16.msra.mxu0 0
    %2015 = vmatprep.subr.bf16.mxu0 0
    %2016 = vmatpush1.bf16.msra.mxu0 0
    %2017 = vmatprep.subr.bf16.mxu0 0
    %2018 = vmatpush1.bf16.msra.mxu0 0
    %2019 = vmatprep.subr.bf16.mxu0 0
    %2020 = vmatpush1.bf16.msra.mxu0 0
    %2021 = vmatprep.subr.bf16.mxu0 0
    %2022 = vmatpush1.bf16.msra.mxu0 0
    %2023 = vmatprep.mubr.bf16.mxu0 0
    %2024 = vmatmul.mubr.bf16.gmra.mrb[0].mxu0 %v1949
    %v2025 = vpop.f32.mrb[0].mxu0
    %v2026 = vadd.f32 0.0, %v2025
    %v2027 = vpop.f32.mrb[0].mxu0
    %v2028 = vadd.f32 0.0, %v2027
    %v2029 = vpop.f32.mrb[0].mxu0
    %v2030 = vpop.f32.mrb[0].mxu0
    %2031 = vdwg.mxu0
    %2032 = vmatprep.subr.bf16.mxu0 %v1045
    %2033 = vmatpush1.bf16.msra.mxu0 %v1044
    %2034 = vmatprep.subr.bf16.mxu0 %v1049
    %2035 = vmatpush1.bf16.msra.mxu0 %v1048
    %2036 = vmatprep.subr.bf16.mxu0 %v1053
    %2037 = vmatpush1.bf16.msra.mxu0 %v1052
    %2038 = vmatprep.subr.bf16.mxu0 %v1057
    %2039 = vmatpush1.bf16.msra.mxu0 %v1056
    %2040 = vmatprep.subr.bf16.mxu0 %v1061
    %2041 = vmatpush1.bf16.msra.mxu0 %v1060
    %2042 = vmatprep.subr.bf16.mxu0 %v1065
    %2043 = vmatpush1.bf16.msra.mxu0 %v1064
    %2044 = vmatprep.subr.bf16.mxu0 %v1069
    %2045 = vmatpush1.bf16.msra.mxu0 %v1068
    %2046 = vmatprep.subr.bf16.mxu0 %v1073
    %2047 = vmatpush1.bf16.msra.mxu0 %v1072
    %2048 = vmatprep.subr.bf16.mxu0 0
    %2049 = vmatpush1.bf16.msra.mxu0 0
    %2050 = vmatprep.subr.bf16.mxu0 0
    %2051 = vmatpush1.bf16.msra.mxu0 0
    %2052 = vmatprep.subr.bf16.mxu0 0
    %2053 = vmatpush1.bf16.msra.mxu0 0
    %2054 = vmatprep.subr.bf16.mxu0 0
    %2055 = vmatpush1.bf16.msra.mxu0 0
    %2056 = vmatprep.subr.bf16.mxu0 0
    %2057 = vmatpush1.bf16.msra.mxu0 0
    %2058 = vmatprep.subr.bf16.mxu0 0
    %2059 = vmatpush1.bf16.msra.mxu0 0
    %2060 = vmatprep.subr.bf16.mxu0 0
    %2061 = vmatpush1.bf16.msra.mxu0 0
    %2062 = vmatprep.subr.bf16.mxu0 0
    %2063 = vmatpush1.bf16.msra.mxu0 0
    %2064 = vmatprep.mubr.bf16.mxu0 0
    %2065 = vmatmul.mubr.bf16.gmra.mrb[0].mxu0 %v1948
    %v2066 = vpop.f32.mrb[0].mxu0
    %v2067 = vadd.f32 %v1985, %v2066
    %v2068 = vpop.f32.mrb[0].mxu0
    %v2069 = vadd.f32 %v1987, %v2068
    %v2070 = vpop.f32.mrb[0].mxu0
    %v2071 = vpop.f32.mrb[0].mxu0
    %2072 = vdwg.mxu0
    %2073 = vmatprep.subr.bf16.mxu0 %v1047
    %2074 = vmatpush1.bf16.msra.mxu0 %v1046
    %2075 = vmatprep.subr.bf16.mxu0 %v1051
    %2076 = vmatpush1.bf16.msra.mxu0 %v1050
    %2077 = vmatprep.subr.bf16.mxu0 %v1055
    %2078 = vmatpush1.bf16.msra.mxu0 %v1054
    %2079 = vmatprep.subr.bf16.mxu0 %v1059
    %2080 = vmatpush1.bf16.msra.mxu0 %v1058
    %2081 = vmatprep.subr.bf16.mxu0 %v1063
    %2082 = vmatpush1.bf16.msra.mxu0 %v1062
    %2083 = vmatprep.subr.bf16.mxu0 %v1067
    %2084 = vmatpush1.bf16.msra.mxu0 %v1066
    %2085 = vmatprep.subr.bf16.mxu0 %v1071
    %2086 = vmatpush1.bf16.msra.mxu0 %v1070
    %2087 = vmatprep.subr.bf16.mxu0 %v1075
    %2088 = vmatpush1.bf16.msra.mxu0 %v1074
    %2089 = vmatprep.subr.bf16.mxu0 0
    %2090 = vmatpush1.bf16.msra.mxu0 0
    %2091 = vmatprep.subr.bf16.mxu0 0
    %2092 = vmatpush1.bf16.msra.mxu0 0
    %2093 = vmatprep.subr.bf16.mxu0 0
    %2094 = vmatpush1.bf16.msra.mxu0 0
    %2095 = vmatprep.subr.bf16.mxu0 0
    %2096 = vmatpush1.bf16.msra.mxu0 0
    %2097 = vmatprep.subr.bf16.mxu0 0
    %2098 = vmatpush1.bf16.msra.mxu0 0
    %2099 = vmatprep.subr.bf16.mxu0 0
    %2100 = vmatpush1.bf16.msra.mxu0 0
    %2101 = vmatprep.subr.bf16.mxu0 0
    %2102 = vmatpush1.bf16.msra.mxu0 0
    %2103 = vmatprep.subr.bf16.mxu0 0
    %2104 = vmatpush1.bf16.msra.mxu0 0
    %2105 = vmatprep.mubr.bf16.mxu0 0
    %2106 = vmatmul.mubr.bf16.gmra.mrb[0].mxu0 %v1948
    %v2107 = vpop.f32.mrb[0].mxu0
    %v2108 = vadd.f32 %v2026, %v2107
    %v2109 = vpop.f32.mrb[0].mxu0
    %v2110 = vadd.f32 %v2028, %v2109
    %v2111 = vpop.f32.mrb[0].mxu0
    %v2112 = vpop.f32.mrb[0].mxu0
    %2113 = vdwg.mxu0
    %v2114 = vadd.f32 %v2067, %v318
    %v2115 = vadd.f32 %v2069, %v322
    %v2116 = vadd.f32 %v2108, %v326
    %v2117 = vadd.f32 %v2110, %v330
    %v2118 = vxor.u32 %v2114, 2147483648
    %v2119 = vmul.f32 %v2118, 1.442695
    %v2120 = vpow.pop %v2119
    %v2121 = vadd.f32 %v2120, 1.0
    %v2122 = vrcp.pop %v2121
    %v2123 = vmul.f32 1.0, %v2122
    %v2124 = vxor.u32 %v2115, 2147483648
    %v2125 = vmul.f32 %v2124, 1.442695
    %v2126 = vpow.pop %v2125
    %v2127 = vadd.f32 %v2126, 1.0
    %v2128 = vrcp.pop %v2127
    %v2129 = vmul.f32 1.0, %v2128
    %v2130 = vtanh.pop %v2116
    %v2131 = vxor.u32 %v2117, 2147483648
    %v2132 = vmul.f32 %v2131, 1.442695
    %v2133 = vpow.pop %v2132
    %v2134 = vadd.f32 %v2133, 1.0
    %v2135 = vrcp.pop %v2134
    %v2136 = vmul.f32 1.0, %v2135
    %v2137 = vmul.f32 %v2129, %v1831
    %v2138 = vmul.f32 %v2123, %v2130
    %v2139 = vadd.f32 %v2137, %v2138
    %v2140 = vtanh.pop %v2139
    %v2141 = vmul.f32 %v2136, %v2140
    %v2142 = vld [vmem:[#allocation2 + $0x80] sm:$0xff]
    %v2143 = vld [vmem:[#allocation2 + $0x88] sm:$0xff]
    %v2144 = vld [vmem:[#allocation2 + $0x90] sm:$0xff]
    %v2145 = vld [vmem:[#allocation2 + $0x98] sm:$0xff]
    %2146 = vmatprep.subr.bf16.mxu0 %v468
    %2147 = vmatpush1.bf16.msra.mxu0 %v467
    %2148 = vmatprep.subr.bf16.mxu0 %v472
    %2149 = vmatpush1.bf16.msra.mxu0 %v471
    %2150 = vmatprep.subr.bf16.mxu0 %v476
    %2151 = vmatpush1.bf16.msra.mxu0 %v475
    %2152 = vmatprep.subr.bf16.mxu0 %v480
    %2153 = vmatpush1.bf16.msra.mxu0 %v479
    %2154 = vmatprep.subr.bf16.mxu0 %v484
    %2155 = vmatpush1.bf16.msra.mxu0 %v483
    %2156 = vmatprep.subr.bf16.mxu0 %v488
    %2157 = vmatpush1.bf16.msra.mxu0 %v487
    %2158 = vmatprep.subr.bf16.mxu0 %v492
    %2159 = vmatpush1.bf16.msra.mxu0 %v491
    %2160 = vmatprep.subr.bf16.mxu0 %v496
    %2161 = vmatpush1.bf16.msra.mxu0 %v495
    %2162 = vmatprep.subr.bf16.mxu0 0
    %2163 = vmatpush1.bf16.msra.mxu0 0
    %2164 = vmatprep.subr.bf16.mxu0 0
    %2165 = vmatpush1.bf16.msra.mxu0 0
    %2166 = vmatprep.subr.bf16.mxu0 0
    %2167 = vmatpush1.bf16.msra.mxu0 0
    %2168 = vmatprep.subr.bf16.mxu0 0
    %2169 = vmatpush1.bf16.msra.mxu0 0
    %2170 = vmatprep.subr.bf16.mxu0 0
    %2171 = vmatpush1.bf16.msra.mxu0 0
    %2172 = vmatprep.subr.bf16.mxu0 0
    %2173 = vmatpush1.bf16.msra.mxu0 0
    %2174 = vmatprep.subr.bf16.mxu0 0
    %2175 = vmatpush1.bf16.msra.mxu0 0
    %2176 = vmatprep.subr.bf16.mxu0 0
    %2177 = vmatpush1.bf16.msra.mxu0 0
    %2178 = vmatprep.mubr.bf16.mxu0 0
    %2179 = vmatmul.mubr.bf16.gmra.mrb[0].mxu0 %v1948
    %v2180 = vpop.f32.mrb[0].mxu0
    %v2181 = vadd.f32 0.0, %v2180
    %v2182 = vpop.f32.mrb[0].mxu0
    %v2183 = vadd.f32 0.0, %v2182
    %v2184 = vpop.f32.mrb[0].mxu0
    %v2185 = vpop.f32.mrb[0].mxu0
    %2186 = vdwg.mxu0
    %2187 = vmatprep.subr.bf16.mxu0 %v470
    %2188 = vmatpush1.bf16.msra.mxu0 %v469
    %2189 = vmatprep.subr.bf16.mxu0 %v474
    %2190 = vmatpush1.bf16.msra.mxu0 %v473
    %2191 = vmatprep.subr.bf16.mxu0 %v478
    %2192 = vmatpush1.bf16.msra.mxu0 %v477
    %2193 = vmatprep.subr.bf16.mxu0 %v482
    %2194 = vmatpush1.bf16.msra.mxu0 %v481
    %2195 = vmatprep.subr.bf16.mxu0 %v486
    %2196 = vmatpush1.bf16.msra.mxu0 %v485
    %2197 = vmatprep.subr.bf16.mxu0 %v490
    %2198 = vmatpush1.bf16.msra.mxu0 %v489
    %2199 = vmatprep.subr.bf16.mxu0 %v494
    %2200 = vmatpush1.bf16.msra.mxu0 %v493
    %2201 = vmatprep.subr.bf16.mxu0 %v498
    %2202 = vmatpush1.bf16.msra.mxu0 %v497
    %2203 = vmatprep.subr.bf16.mxu0 0
    %2204 = vmatpush1.bf16.msra.mxu0 0
    %2205 = vmatprep.subr.bf16.mxu0 0
    %2206 = vmatpush1.bf16.msra.mxu0 0
    %2207 = vmatprep.subr.bf16.mxu0 0
    %2208 = vmatpush1.bf16.msra.mxu0 0
    %2209 = vmatprep.subr.bf16.mxu0 0
    %2210 = vmatpush1.bf16.msra.mxu0 0
    %2211 = vmatprep.subr.bf16.mxu0 0
    %2212 = vmatpush1.bf16.msra.mxu0 0
    %2213 = vmatprep.subr.bf16.mxu0 0
    %2214 = vmatpush1.bf16.msra.mxu0 0
    %2215 = vmatprep.subr.bf16.mxu0 0
    %2216 = vmatpush1.bf16.msra.mxu0 0
    %2217 = vmatprep.subr.bf16.mxu0 0
    %2218 = vmatpush1.bf16.msra.mxu0 0
    %2219 = vmatprep.mubr.bf16.mxu0 0
    %2220 = vmatmul.mubr.bf16.gmra.mrb[0].mxu0 %v1948
    %v2221 = vpop.f32.mrb[0].mxu0
    %v2222 = vadd.f32 0.0, %v2221
    %v2223 = vpop.f32.mrb[0].mxu0
    %v2224 = vadd.f32 0.0, %v2223
    %v2225 = vpop.f32.mrb[0].mxu0
    %v2226 = vpop.f32.mrb[0].mxu0
    %2227 = vdwg.mxu0
    %v2228 = vadd.f32 %v2142, %v2181
    %v2229 = vadd.f32 %v2143, %v2183
    %v2230 = vadd.f32 %v2144, %v2222
    %v2231 = vadd.f32 %v2145, %v2224
    %v2232 = vxor.u32 %v2228, 2147483648
    %v2233 = vmul.f32 %v2232, 1.442695
    %v2234 = vpow.pop %v2233
    %v2235 = vadd.f32 %v2234, 1.0
    %v2236 = vrcp.pop %v2235
    %v2237 = vmul.f32 1.0, %v2236
    %v2238 = vxor.u32 %v2229, 2147483648
    %v2239 = vmul.f32 %v2238, 1.442695
    %v2240 = vpow.pop %v2239
    %v2241 = vadd.f32 %v2240, 1.0
    %v2242 = vrcp.pop %v2241
    %v2243 = vmul.f32 1.0, %v2242
    %v2244 = vtanh.pop %v2230
    %v2245 = vxor.u32 %v2231, 2147483648
    %v2246 = vmul.f32 %v2245, 1.442695
    %v2247 = vpow.pop %v2246
    %v2248 = vadd.f32 %v2247, 1.0
    %v2249 = vrcp.pop %v2248
    %v2250 = vmul.f32 1.0, %v2249
    %v2251 = vmul.f32 %v2243, %v1945
    %v2252 = vmul.f32 %v2237, %v2244
    %v2253 = vadd.f32 %v2251, %v2252
    %v2254 = vtanh.pop %v2253
    %v2255 = vmul.f32 %v2250, %v2254
    %v2256 = vpack.c.bf16 %v2255, %v2255
    %v2257 = vpack.c.bf16 %v2141, %v2141
    %2258 = vmatprep.subr.bf16.mxu0 %v803
    %2259 = vmatpush1.bf16.msra.mxu0 %v802
    %2260 = vmatprep.subr.bf16.mxu0 %v807
    %2261 = vmatpush1.bf16.msra.mxu0 %v806
    %2262 = vmatprep.subr.bf16.mxu0 %v811
    %2263 = vmatpush1.bf16.msra.mxu0 %v810
    %2264 = vmatprep.subr.bf16.mxu0 %v815
    %2265 = vmatpush1.bf16.msra.mxu0 %v814
    %2266 = vmatprep.subr.bf16.mxu0 %v819
    %2267 = vmatpush1.bf16.msra.mxu0 %v818
    %2268 = vmatprep.subr.bf16.mxu0 %v823
    %2269 = vmatpush1.bf16.msra.mxu0 %v822
    %2270 = vmatprep.subr.bf16.mxu0 %v827
    %2271 = vmatpush1.bf16.msra.mxu0 %v826
    %2272 = vmatprep.subr.bf16.mxu0 %v831
    %2273 = vmatpush1.bf16.msra.mxu0 %v830
    %2274 = vmatprep.subr.bf16.mxu0 0
    %2275 = vmatpush1.bf16.msra.mxu0 0
    %2276 = vmatprep.subr.bf16.mxu0 0
    %2277 = vmatpush1.bf16.msra.mxu0 0
    %2278 = vmatprep.subr.bf16.mxu0 0
    %2279 = vmatpush1.bf16.msra.mxu0 0
    %2280 = vmatprep.subr.bf16.mxu0 0
    %2281 = vmatpush1.bf16.msra.mxu0 0
    %2282 = vmatprep.subr.bf16.mxu0 0
    %2283 = vmatpush1.bf16.msra.mxu0 0
    %2284 = vmatprep.subr.bf16.mxu0 0
    %2285 = vmatpush1.bf16.msra.mxu0 0
    %2286 = vmatprep.subr.bf16.mxu0 0
    %2287 = vmatpush1.bf16.msra.mxu0 0
    %2288 = vmatprep.subr.bf16.mxu0 0
    %2289 = vmatpush1.bf16.msra.mxu0 0
    %2290 = vmatprep.mubr.bf16.mxu0 0
    %2291 = vmatmul.mubr.bf16.gmra.mrb[0].mxu0 %v2257
    %v2292 = vpop.f32.mrb[0].mxu0
    %v2293 = vadd.f32 0.0, %v2292
    %v2294 = vpop.f32.mrb[0].mxu0
    %v2295 = vadd.f32 0.0, %v2294
    %v2296 = vpop.f32.mrb[0].mxu0
    %v2297 = vpop.f32.mrb[0].mxu0
    %2298 = vdwg.mxu0
    %2299 = vmatprep.subr.bf16.mxu0 %v805
    %2300 = vmatpush1.bf16.msra.mxu0 %v804
    %2301 = vmatprep.subr.bf16.mxu0 %v809
    %2302 = vmatpush1.bf16.msra.mxu0 %v808
    %2303 = vmatprep.subr.bf16.mxu0 %v813
    %2304 = vmatpush1.bf16.msra.mxu0 %v812
    %2305 = vmatprep.subr.bf16.mxu0 %v817
    %2306 = vmatpush1.bf16.msra.mxu0 %v816
    %2307 = vmatprep.subr.bf16.mxu0 %v821
    %2308 = vmatpush1.bf16.msra.mxu0 %v820
    %2309 = vmatprep.subr.bf16.mxu0 %v825
    %2310 = vmatpush1.bf16.msra.mxu0 %v824
    %2311 = vmatprep.subr.bf16.mxu0 %v829
    %2312 = vmatpush1.bf16.msra.mxu0 %v828
    %2313 = vmatprep.subr.bf16.mxu0 %v833
    %2314 = vmatpush1.bf16.msra.mxu0 %v832
    %2315 = vmatprep.subr.bf16.mxu0 0
    %2316 = vmatpush1.bf16.msra.mxu0 0
    %2317 = vmatprep.subr.bf16.mxu0 0
    %2318 = vmatpush1.bf16.msra.mxu0 0
    %2319 = vmatprep.subr.bf16.mxu0 0
    %2320 = vmatpush1.bf16.msra.mxu0 0
    %2321 = vmatprep.subr.bf16.mxu0 0
    %2322 = vmatpush1.bf16.msra.mxu0 0
    %2323 = vmatprep.subr.bf16.mxu0 0
    %2324 = vmatpush1.bf16.msra.mxu0 0
    %2325 = vmatprep.subr.bf16.mxu0 0
    %2326 = vmatpush1.bf16.msra.mxu0 0
    %2327 = vmatprep.subr.bf16.mxu0 0
    %2328 = vmatpush1.bf16.msra.mxu0 0
    %2329 = vmatprep.subr.bf16.mxu0 0
    %2330 = vmatpush1.bf16.msra.mxu0 0
    %2331 = vmatprep.mubr.bf16.mxu0 0
    %2332 = vmatmul.mubr.bf16.gmra.mrb[0].mxu0 %v2257
    %v2333 = vpop.f32.mrb[0].mxu0
    %v2334 = vadd.f32 0.0, %v2333
    %v2335 = vpop.f32.mrb[0].mxu0
    %v2336 = vadd.f32 0.0, %v2335
    %v2337 = vpop.f32.mrb[0].mxu0
    %v2338 = vpop.f32.mrb[0].mxu0
    %2339 = vdwg.mxu0
    %2340 = vmatprep.subr.bf16.mxu0 %v1045
    %2341 = vmatpush1.bf16.msra.mxu0 %v1044
    %2342 = vmatprep.subr.bf16.mxu0 %v1049
    %2343 = vmatpush1.bf16.msra.mxu0 %v1048
    %2344 = vmatprep.subr.bf16.mxu0 %v1053
    %2345 = vmatpush1.bf16.msra.mxu0 %v1052
    %2346 = vmatprep.subr.bf16.mxu0 %v1057
    %2347 = vmatpush1.bf16.msra.mxu0 %v1056
    %2348 = vmatprep.subr.bf16.mxu0 %v1061
    %2349 = vmatpush1.bf16.msra.mxu0 %v1060
    %2350 = vmatprep.subr.bf16.mxu0 %v1065
    %2351 = vmatpush1.bf16.msra.mxu0 %v1064
    %2352 = vmatprep.subr.bf16.mxu0 %v1069
    %2353 = vmatpush1.bf16.msra.mxu0 %v1068
    %2354 = vmatprep.subr.bf16.mxu0 %v1073
    %2355 = vmatpush1.bf16.msra.mxu0 %v1072
    %2356 = vmatprep.subr.bf16.mxu0 0
    %2357 = vmatpush1.bf16.msra.mxu0 0
    %2358 = vmatprep.subr.bf16.mxu0 0
    %2359 = vmatpush1.bf16.msra.mxu0 0
    %2360 = vmatprep.subr.bf16.mxu0 0
    %2361 = vmatpush1.bf16.msra.mxu0 0
    %2362 = vmatprep.subr.bf16.mxu0 0
    %2363 = vmatpush1.bf16.msra.mxu0 0
    %2364 = vmatprep.subr.bf16.mxu0 0
    %2365 = vmatpush1.bf16.msra.mxu0 0
    %2366 = vmatprep.subr.bf16.mxu0 0
    %2367 = vmatpush1.bf16.msra.mxu0 0
    %2368 = vmatprep.subr.bf16.mxu0 0
    %2369 = vmatpush1.bf16.msra.mxu0 0
    %2370 = vmatprep.subr.bf16.mxu0 0
    %2371 = vmatpush1.bf16.msra.mxu0 0
    %2372 = vmatprep.mubr.bf16.mxu0 0
    %2373 = vmatmul.mubr.bf16.gmra.mrb[0].mxu0 %v2256
    %v2374 = vpop.f32.mrb[0].mxu0
    %v2375 = vadd.f32 %v2293, %v2374
    %v2376 = vpop.f32.mrb[0].mxu0
    %v2377 = vadd.f32 %v2295, %v2376
    %v2378 = vpop.f32.mrb[0].mxu0
    %v2379 = vpop.f32.mrb[0].mxu0
    %2380 = vdwg.mxu0
    %2381 = vmatprep.subr.bf16.mxu0 %v1047
    %2382 = vmatpush1.bf16.msra.mxu0 %v1046
    %2383 = vmatprep.subr.bf16.mxu0 %v1051
    %2384 = vmatpush1.bf16.msra.mxu0 %v1050
    %2385 = vmatprep.subr.bf16.mxu0 %v1055
    %2386 = vmatpush1.bf16.msra.mxu0 %v1054
    %2387 = vmatprep.subr.bf16.mxu0 %v1059
    %2388 = vmatpush1.bf16.msra.mxu0 %v1058
    %2389 = vmatprep.subr.bf16.mxu0 %v1063
    %2390 = vmatpush1.bf16.msra.mxu0 %v1062
    %2391 = vmatprep.subr.bf16.mxu0 %v1067
    %2392 = vmatpush1.bf16.msra.mxu0 %v1066
    %2393 = vmatprep.subr.bf16.mxu0 %v1071
    %2394 = vmatpush1.bf16.msra.mxu0 %v1070
    %2395 = vmatprep.subr.bf16.mxu0 %v1075
    %2396 = vmatpush1.bf16.msra.mxu0 %v1074
    %2397 = vmatprep.subr.bf16.mxu0 0
    %2398 = vmatpush1.bf16.msra.mxu0 0
    %2399 = vmatprep.subr.bf16.mxu0 0
    %2400 = vmatpush1.bf16.msra.mxu0 0
    %2401 = vmatprep.subr.bf16.mxu0 0
    %2402 = vmatpush1.bf16.msra.mxu0 0
    %2403 = vmatprep.subr.bf16.mxu0 0
    %2404 = vmatpush1.bf16.msra.mxu0 0
    %2405 = vmatprep.subr.bf16.mxu0 0
    %2406 = vmatpush1.bf16.msra.mxu0 0
    %2407 = vmatprep.subr.bf16.mxu0 0
    %2408 = vmatpush1.bf16.msra.mxu0 0
    %2409 = vmatprep.subr.bf16.mxu0 0
    %2410 = vmatpush1.bf16.msra.mxu0 0
    %2411 = vmatprep.subr.bf16.mxu0 0
    %2412 = vmatpush1.bf16.msra.mxu0 0
    %2413 = vmatprep.mubr.bf16.mxu0 0
    %2414 = vmatmul.mubr.bf16.gmra.mrb[0].mxu0 %v2256
    %v2415 = vpop.f32.mrb[0].mxu0
    %v2416 = vadd.f32 %v2334, %v2415
    %v2417 = vpop.f32.mrb[0].mxu0
    %v2418 = vadd.f32 %v2336, %v2417
    %v2419 = vpop.f32.mrb[0].mxu0
    %v2420 = vpop.f32.mrb[0].mxu0
    %2421 = vdwg.mxu0
    %v2422 = vadd.f32 %v2375, %v318
    %v2423 = vadd.f32 %v2377, %v322
    %v2424 = vadd.f32 %v2416, %v326
    %v2425 = vadd.f32 %v2418, %v330
    %v2426 = vxor.u32 %v2422, 2147483648
    %v2427 = vmul.f32 %v2426, 1.442695
    %v2428 = vpow.pop %v2427
    %v2429 = vadd.f32 %v2428, 1.0
    %v2430 = vrcp.pop %v2429
    %v2431 = vmul.f32 1.0, %v2430
    %v2432 = vxor.u32 %v2423, 2147483648
    %v2433 = vmul.f32 %v2432, 1.442695
    %v2434 = vpow.pop %v2433
    %v2435 = vadd.f32 %v2434, 1.0
    %v2436 = vrcp.pop %v2435
    %v2437 = vmul.f32 1.0, %v2436
    %v2438 = vtanh.pop %v2424
    %v2439 = vxor.u32 %v2425, 2147483648
    %v2440 = vmul.f32 %v2439, 1.442695
    %v2441 = vpow.pop %v2440
    %v2442 = vadd.f32 %v2441, 1.0
    %v2443 = vrcp.pop %v2442
    %v2444 = vmul.f32 1.0, %v2443
    %v2445 = vmul.f32 %v2437, %v2139
    %v2446 = vmul.f32 %v2431, %v2438
    %v2447 = vadd.f32 %v2445, %v2446
    %v2448 = vtanh.pop %v2447
    %v2449 = vmul.f32 %v2444, %v2448
    %v2450 = vld [vmem:[#allocation2 + $0xa0] sm:$0xff]
    %v2451 = vld [vmem:[#allocation2 + $0xa8] sm:$0xff]
    %v2452 = vld [vmem:[#allocation2 + $0xb0] sm:$0xff]
    %v2453 = vld [vmem:[#allocation2 + $0xb8] sm:$0xff]
    %2454 = vmatprep.subr.bf16.mxu0 %v468
    %2455 = vmatpush1.bf16.msra.mxu0 %v467
    %2456 = vmatprep.subr.bf16.mxu0 %v472
    %2457 = vmatpush1.bf16.msra.mxu0 %v471
    %2458 = vmatprep.subr.bf16.mxu0 %v476
    %2459 = vmatpush1.bf16.msra.mxu0 %v475
    %2460 = vmatprep.subr.bf16.mxu0 %v480
    %2461 = vmatpush1.bf16.msra.mxu0 %v479
    %2462 = vmatprep.subr.bf16.mxu0 %v484
    %2463 = vmatpush1.bf16.msra.mxu0 %v483
    %2464 = vmatprep.subr.bf16.mxu0 %v488
    %2465 = vmatpush1.bf16.msra.mxu0 %v487
    %2466 = vmatprep.subr.bf16.mxu0 %v492
    %2467 = vmatpush1.bf16.msra.mxu0 %v491
    %2468 = vmatprep.subr.bf16.mxu0 %v496
    %2469 = vmatpush1.bf16.msra.mxu0 %v495
    %2470 = vmatprep.subr.bf16.mxu0 0
    %2471 = vmatpush1.bf16.msra.mxu0 0
    %2472 = vmatprep.subr.bf16.mxu0 0
    %2473 = vmatpush1.bf16.msra.mxu0 0
    %2474 = vmatprep.subr.bf16.mxu0 0
    %2475 = vmatpush1.bf16.msra.mxu0 0
    %2476 = vmatprep.subr.bf16.mxu0 0
    %2477 = vmatpush1.bf16.msra.mxu0 0
    %2478 = vmatprep.subr.bf16.mxu0 0
    %2479 = vmatpush1.bf16.msra.mxu0 0
    %2480 = vmatprep.subr.bf16.mxu0 0
    %2481 = vmatpush1.bf16.msra.mxu0 0
    %2482 = vmatprep.subr.bf16.mxu0 0
    %2483 = vmatpush1.bf16.msra.mxu0 0
    %2484 = vmatprep.subr.bf16.mxu0 0
    %2485 = vmatpush1.bf16.msra.mxu0 0
    %2486 = vmatprep.mubr.bf16.mxu0 0
    %2487 = vmatmul.mubr.bf16.gmra.mrb[0].mxu0 %v2256
    %v2488 = vpop.f32.mrb[0].mxu0
    %v2489 = vadd.f32 0.0, %v2488
    %v2490 = vpop.f32.mrb[0].mxu0
    %v2491 = vadd.f32 0.0, %v2490
    %v2492 = vpop.f32.mrb[0].mxu0
    %v2493 = vpop.f32.mrb[0].mxu0
    %2494 = vdwg.mxu0
    %2495 = vmatprep.subr.bf16.mxu0 %v470
    %2496 = vmatpush1.bf16.msra.mxu0 %v469
    %2497 = vmatprep.subr.bf16.mxu0 %v474
    %2498 = vmatpush1.bf16.msra.mxu0 %v473
    %2499 = vmatprep.subr.bf16.mxu0 %v478
    %2500 = vmatpush1.bf16.msra.mxu0 %v477
    %2501 = vmatprep.subr.bf16.mxu0 %v482
    %2502 = vmatpush1.bf16.msra.mxu0 %v481
    %2503 = vmatprep.subr.bf16.mxu0 %v486
    %2504 = vmatpush1.bf16.msra.mxu0 %v485
    %2505 = vmatprep.subr.bf16.mxu0 %v490
    %2506 = vmatpush1.bf16.msra.mxu0 %v489
    %2507 = vmatprep.subr.bf16.mxu0 %v494
    %2508 = vmatpush1.bf16.msra.mxu0 %v493
    %2509 = vmatprep.subr.bf16.mxu0 %v498
    %2510 = vmatpush1.bf16.msra.mxu0 %v497
    %2511 = vmatprep.subr.bf16.mxu0 0
    %2512 = vmatpush1.bf16.msra.mxu0 0
    %2513 = vmatprep.subr.bf16.mxu0 0
    %2514 = vmatpush1.bf16.msra.mxu0 0
    %2515 = vmatprep.subr.bf16.mxu0 0
    %2516 = vmatpush1.bf16.msra.mxu0 0
    %2517 = vmatprep.subr.bf16.mxu0 0
    %2518 = vmatpush1.bf16.msra.mxu0 0
    %2519 = vmatprep.subr.bf16.mxu0 0
    %2520 = vmatpush1.bf16.msra.mxu0 0
    %2521 = vmatprep.subr.bf16.mxu0 0
    %2522 = vmatpush1.bf16.msra.mxu0 0
    %2523 = vmatprep.subr.bf16.mxu0 0
    %2524 = vmatpush1.bf16.msra.mxu0 0
    %2525 = vmatprep.subr.bf16.mxu0 0
    %2526 = vmatpush1.bf16.msra.mxu0 0
    %2527 = vmatprep.mubr.bf16.mxu0 0
    %2528 = vmatmul.mubr.bf16.gmra.mrb[0].mxu0 %v2256
    %v2529 = vpop.f32.mrb[0].mxu0
    %v2530 = vadd.f32 0.0, %v2529
    %v2531 = vpop.f32.mrb[0].mxu0
    %v2532 = vadd.f32 0.0, %v2531
    %v2533 = vpop.f32.mrb[0].mxu0
    %v2534 = vpop.f32.mrb[0].mxu0
    %2535 = vdwg.mxu0
    %v2536 = vadd.f32 %v2450, %v2489
    %v2537 = vadd.f32 %v2451, %v2491
    %v2538 = vadd.f32 %v2452, %v2530
    %v2539 = vadd.f32 %v2453, %v2532
    %v2540 = vxor.u32 %v2536, 2147483648
    %v2541 = vmul.f32 %v2540, 1.442695
    %v2542 = vpow.pop %v2541
    %v2543 = vadd.f32 %v2542, 1.0
    %v2544 = vrcp.pop %v2543
    %v2545 = vmul.f32 1.0, %v2544
    %v2546 = vxor.u32 %v2537, 2147483648
    %v2547 = vmul.f32 %v2546, 1.442695
    %v2548 = vpow.pop %v2547
    %v2549 = vadd.f32 %v2548, 1.0
    %v2550 = vrcp.pop %v2549
    %v2551 = vmul.f32 1.0, %v2550
    %v2552 = vtanh.pop %v2538
    %v2553 = vxor.u32 %v2539, 2147483648
    %v2554 = vmul.f32 %v2553, 1.442695
    %v2555 = vpow.pop %v2554
    %v2556 = vadd.f32 %v2555, 1.0
    %v2557 = vrcp.pop %v2556
    %v2558 = vmul.f32 1.0, %v2557
    %v2559 = vmul.f32 %v2551, %v2253
    %v2560 = vmul.f32 %v2545, %v2552
    %v2561 = vadd.f32 %v2559, %v2560
    %v2562 = vtanh.pop %v2561
    %v2563 = vmul.f32 %v2558, %v2562
    %v2564 = vpack.c.bf16 %v2563, %v2563
    %v2565 = vpack.c.bf16 %v2449, %v2449
    %2566 = vmatprep.subr.bf16.mxu0 %v803
    %2567 = vmatpush1.bf16.msra.mxu0 %v802
    %2568 = vmatprep.subr.bf16.mxu0 %v807
    %2569 = vmatpush1.bf16.msra.mxu0 %v806
    %2570 = vmatprep.subr.bf16.mxu0 %v811
    %2571 = vmatpush1.bf16.msra.mxu0 %v810
    %2572 = vmatprep.subr.bf16.mxu0 %v815
    %2573 = vmatpush1.bf16.msra.mxu0 %v814
    %2574 = vmatprep.subr.bf16.mxu0 %v819
    %2575 = vmatpush1.bf16.msra.mxu0 %v818
    %2576 = vmatprep.subr.bf16.mxu0 %v823
    %2577 = vmatpush1.bf16.msra.mxu0 %v822
    %2578 = vmatprep.subr.bf16.mxu0 %v827
    %2579 = vmatpush1.bf16.msra.mxu0 %v826
    %2580 = vmatprep.subr.bf16.mxu0 %v831
    %2581 = vmatpush1.bf16.msra.mxu0 %v830
    %2582 = vmatprep.subr.bf16.mxu0 0
    %2583 = vmatpush1.bf16.msra.mxu0 0
    %2584 = vmatprep.subr.bf16.mxu0 0
    %2585 = vmatpush1.bf16.msra.mxu0 0
    %2586 = vmatprep.subr.bf16.mxu0 0
    %2587 = vmatpush1.bf16.msra.mxu0 0
    %2588 = vmatprep.subr.bf16.mxu0 0
    %2589 = vmatpush1.bf16.msra.mxu0 0
    %2590 = vmatprep.subr.bf16.mxu0 0
    %2591 = vmatpush1.bf16.msra.mxu0 0
    %2592 = vmatprep.subr.bf16.mxu0 0
    %2593 = vmatpush1.bf16.msra.mxu0 0
    %2594 = vmatprep.subr.bf16.mxu0 0
    %2595 = vmatpush1.bf16.msra.mxu0 0
    %2596 = vmatprep.subr.bf16.mxu0 0
    %2597 = vmatpush1.bf16.msra.mxu0 0
    %2598 = vmatprep.mubr.bf16.mxu0 0
    %2599 = vmatmul.mubr.bf16.gmra.mrb[0].mxu0 %v2565
    %v2600 = vpop.f32.mrb[0].mxu0
    %v2601 = vadd.f32 0.0, %v2600
    %v2602 = vpop.f32.mrb[0].mxu0
    %v2603 = vadd.f32 0.0, %v2602
    %v2604 = vpop.f32.mrb[0].mxu0
    %v2605 = vpop.f32.mrb[0].mxu0
    %2606 = vdwg.mxu0
    %2607 = vmatprep.subr.bf16.mxu0 %v805
    %2608 = vmatpush1.bf16.msra.mxu0 %v804
    %2609 = vmatprep.subr.bf16.mxu0 %v809
    %2610 = vmatpush1.bf16.msra.mxu0 %v808
    %2611 = vmatprep.subr.bf16.mxu0 %v813
    %2612 = vmatpush1.bf16.msra.mxu0 %v812
    %2613 = vmatprep.subr.bf16.mxu0 %v817
    %2614 = vmatpush1.bf16.msra.mxu0 %v816
    %2615 = vmatprep.subr.bf16.mxu0 %v821
    %2616 = vmatpush1.bf16.msra.mxu0 %v820
    %2617 = vmatprep.subr.bf16.mxu0 %v825
    %2618 = vmatpush1.bf16.msra.mxu0 %v824
    %2619 = vmatprep.subr.bf16.mxu0 %v829
    %2620 = vmatpush1.bf16.msra.mxu0 %v828
    %2621 = vmatprep.subr.bf16.mxu0 %v833
    %2622 = vmatpush1.bf16.msra.mxu0 %v832
    %2623 = vmatprep.subr.bf16.mxu0 0
    %2624 = vmatpush1.bf16.msra.mxu0 0
    %2625 = vmatprep.subr.bf16.mxu0 0
    %2626 = vmatpush1.bf16.msra.mxu0 0
    %2627 = vmatprep.subr.bf16.mxu0 0
    %2628 = vmatpush1.bf16.msra.mxu0 0
    %2629 = vmatprep.subr.bf16.mxu0 0
    %2630 = vmatpush1.bf16.msra.mxu0 0
    %2631 = vmatprep.subr.bf16.mxu0 0
    %2632 = vmatpush1.bf16.msra.mxu0 0
    %2633 = vmatprep.subr.bf16.mxu0 0
    %2634 = vmatpush1.bf16.msra.mxu0 0
    %2635 = vmatprep.subr.bf16.mxu0 0
    %2636 = vmatpush1.bf16.msra.mxu0 0
    %2637 = vmatprep.subr.bf16.mxu0 0
    %2638 = vmatpush1.bf16.msra.mxu0 0
    %2639 = vmatprep.mubr.bf16.mxu0 0
    %2640 = vmatmul.mubr.bf16.gmra.mrb[0].mxu0 %v2565
    %v2641 = vpop.f32.mrb[0].mxu0
    %v2642 = vadd.f32 0.0, %v2641
    %v2643 = vpop.f32.mrb[0].mxu0
    %v2644 = vadd.f32 0.0, %v2643
    %v2645 = vpop.f32.mrb[0].mxu0
    %v2646 = vpop.f32.mrb[0].mxu0
    %2647 = vdwg.mxu0
    %2648 = vmatprep.subr.bf16.mxu0 %v1045
    %2649 = vmatpush1.bf16.msra.mxu0 %v1044
    %2650 = vmatprep.subr.bf16.mxu0 %v1049
    %2651 = vmatpush1.bf16.msra.mxu0 %v1048
    %2652 = vmatprep.subr.bf16.mxu0 %v1053
    %2653 = vmatpush1.bf16.msra.mxu0 %v1052
    %2654 = vmatprep.subr.bf16.mxu0 %v1057
    %2655 = vmatpush1.bf16.msra.mxu0 %v1056
    %2656 = vmatprep.subr.bf16.mxu0 %v1061
    %2657 = vmatpush1.bf16.msra.mxu0 %v1060
    %2658 = vmatprep.subr.bf16.mxu0 %v1065
    %2659 = vmatpush1.bf16.msra.mxu0 %v1064
    %2660 = vmatprep.subr.bf16.mxu0 %v1069
    %2661 = vmatpush1.bf16.msra.mxu0 %v1068
    %2662 = vmatprep.subr.bf16.mxu0 %v1073
    %2663 = vmatpush1.bf16.msra.mxu0 %v1072
    %2664 = vmatprep.subr.bf16.mxu0 0
    %2665 = vmatpush1.bf16.msra.mxu0 0
    %2666 = vmatprep.subr.bf16.mxu0 0
    %2667 = vmatpush1.bf16.msra.mxu0 0
    %2668 = vmatprep.subr.bf16.mxu0 0
    %2669 = vmatpush1.bf16.msra.mxu0 0
    %2670 = vmatprep.subr.bf16.mxu0 0
    %2671 = vmatpush1.bf16.msra.mxu0 0
    %2672 = vmatprep.subr.bf16.mxu0 0
    %2673 = vmatpush1.bf16.msra.mxu0 0
    %2674 = vmatprep.subr.bf16.mxu0 0
    %2675 = vmatpush1.bf16.msra.mxu0 0
    %2676 = vmatprep.subr.bf16.mxu0 0
    %2677 = vmatpush1.bf16.msra.mxu0 0
    %2678 = vmatprep.subr.bf16.mxu0 0
    %2679 = vmatpush1.bf16.msra.mxu0 0
    %2680 = vmatprep.mubr.bf16.mxu0 0
    %2681 = vmatmul.mubr.bf16.gmra.mrb[0].mxu0 %v2564
    %v2682 = vpop.f32.mrb[0].mxu0
    %v2683 = vadd.f32 %v2601, %v2682
    %v2684 = vpop.f32.mrb[0].mxu0
    %v2685 = vadd.f32 %v2603, %v2684
    %v2686 = vpop.f32.mrb[0].mxu0
    %v2687 = vpop.f32.mrb[0].mxu0
    %2688 = vdwg.mxu0
    %2689 = vmatprep.subr.bf16.mxu0 %v1047
    %2690 = vmatpush1.bf16.msra.mxu0 %v1046
    %2691 = vmatprep.subr.bf16.mxu0 %v1051
    %2692 = vmatpush1.bf16.msra.mxu0 %v1050
    %2693 = vmatprep.subr.bf16.mxu0 %v1055
    %2694 = vmatpush1.bf16.msra.mxu0 %v1054
    %2695 = vmatprep.subr.bf16.mxu0 %v1059
    %2696 = vmatpush1.bf16.msra.mxu0 %v1058
    %2697 = vmatprep.subr.bf16.mxu0 %v1063
    %2698 = vmatpush1.bf16.msra.mxu0 %v1062
    %2699 = vmatprep.subr.bf16.mxu0 %v1067
    %2700 = vmatpush1.bf16.msra.mxu0 %v1066
    %2701 = vmatprep.subr.bf16.mxu0 %v1071
    %2702 = vmatpush1.bf16.msra.mxu0 %v1070
    %2703 = vmatprep.subr.bf16.mxu0 %v1075
    %2704 = vmatpush1.bf16.msra.mxu0 %v1074
    %2705 = vmatprep.subr.bf16.mxu0 0
    %2706 = vmatpush1.bf16.msra.mxu0 0
    %2707 = vmatprep.subr.bf16.mxu0 0
    %2708 = vmatpush1.bf16.msra.mxu0 0
    %2709 = vmatprep.subr.bf16.mxu0 0
    %2710 = vmatpush1.bf16.msra.mxu0 0
    %2711 = vmatprep.subr.bf16.mxu0 0
    %2712 = vmatpush1.bf16.msra.mxu0 0
    %2713 = vmatprep.subr.bf16.mxu0 0
    %2714 = vmatpush1.bf16.msra.mxu0 0
    %2715 = vmatprep.subr.bf16.mxu0 0
    %2716 = vmatpush1.bf16.msra.mxu0 0
    %2717 = vmatprep.subr.bf16.mxu0 0
    %2718 = vmatpush1.bf16.msra.mxu0 0
    %2719 = vmatprep.subr.bf16.mxu0 0
    %2720 = vmatpush1.bf16.msra.mxu0 0
    %2721 = vmatprep.mubr.bf16.mxu0 0
    %2722 = vmatmul.mubr.bf16.gmra.mrb[0].mxu0 %v2564
    %v2723 = vpop.f32.mrb[0].mxu0
    %v2724 = vadd.f32 %v2642, %v2723
    %v2725 = vpop.f32.mrb[0].mxu0
    %v2726 = vadd.f32 %v2644, %v2725
    %v2727 = vpop.f32.mrb[0].mxu0
    %v2728 = vpop.f32.mrb[0].mxu0
    %2729 = vdwg.mxu0
    %v2730 = vadd.f32 %v2683, %v318
    %v2731 = vadd.f32 %v2685, %v322
    %v2732 = vadd.f32 %v2724, %v326
    %v2733 = vadd.f32 %v2726, %v330
    %v2734 = vxor.u32 %v2730, 2147483648
    %v2735 = vmul.f32 %v2734, 1.442695
    %v2736 = vpow.pop %v2735
    %v2737 = vadd.f32 %v2736, 1.0
    %v2738 = vrcp.pop %v2737
    %v2739 = vmul.f32 1.0, %v2738
    %v2740 = vxor.u32 %v2731, 2147483648
    %v2741 = vmul.f32 %v2740, 1.442695
    %v2742 = vpow.pop %v2741
    %v2743 = vadd.f32 %v2742, 1.0
    %v2744 = vrcp.pop %v2743
    %v2745 = vmul.f32 1.0, %v2744
    %v2746 = vtanh.pop %v2732
    %v2747 = vxor.u32 %v2733, 2147483648
    %v2748 = vmul.f32 %v2747, 1.442695
    %v2749 = vpow.pop %v2748
    %v2750 = vadd.f32 %v2749, 1.0
    %v2751 = vrcp.pop %v2750
    %v2752 = vmul.f32 1.0, %v2751
    %v2753 = vmul.f32 %v2745, %v2447
    %v2754 = vmul.f32 %v2739, %v2746
    %v2755 = vadd.f32 %v2753, %v2754
    %v2756 = vtanh.pop %v2755
    %v2757 = vmul.f32 %v2752, %v2756
    %v2758 = vld [vmem:[#allocation2 + $0xc0] sm:$0xff]
    %v2759 = vld [vmem:[#allocation2 + $0xc8] sm:$0xff]
    %v2760 = vld [vmem:[#allocation2 + $0xd0] sm:$0xff]
    %v2761 = vld [vmem:[#allocation2 + $0xd8] sm:$0xff]
    %2762 = vmatprep.subr.bf16.mxu0 %v468
    %2763 = vmatpush1.bf16.msra.mxu0 %v467
    %2764 = vmatprep.subr.bf16.mxu0 %v472
    %2765 = vmatpush1.bf16.msra.mxu0 %v471
    %2766 = vmatprep.subr.bf16.mxu0 %v476
    %2767 = vmatpush1.bf16.msra.mxu0 %v475
    %2768 = vmatprep.subr.bf16.mxu0 %v480
    %2769 = vmatpush1.bf16.msra.mxu0 %v479
    %2770 = vmatprep.subr.bf16.mxu0 %v484
    %2771 = vmatpush1.bf16.msra.mxu0 %v483
    %2772 = vmatprep.subr.bf16.mxu0 %v488
    %2773 = vmatpush1.bf16.msra.mxu0 %v487
    %2774 = vmatprep.subr.bf16.mxu0 %v492
    %2775 = vmatpush1.bf16.msra.mxu0 %v491
    %2776 = vmatprep.subr.bf16.mxu0 %v496
    %2777 = vmatpush1.bf16.msra.mxu0 %v495
    %2778 = vmatprep.subr.bf16.mxu0 0
    %2779 = vmatpush1.bf16.msra.mxu0 0
    %2780 = vmatprep.subr.bf16.mxu0 0
    %2781 = vmatpush1.bf16.msra.mxu0 0
    %2782 = vmatprep.subr.bf16.mxu0 0
    %2783 = vmatpush1.bf16.msra.mxu0 0
    %2784 = vmatprep.subr.bf16.mxu0 0
    %2785 = vmatpush1.bf16.msra.mxu0 0
    %2786 = vmatprep.subr.bf16.mxu0 0
    %2787 = vmatpush1.bf16.msra.mxu0 0
    %2788 = vmatprep.subr.bf16.mxu0 0
    %2789 = vmatpush1.bf16.msra.mxu0 0
    %2790 = vmatprep.subr.bf16.mxu0 0
    %2791 = vmatpush1.bf16.msra.mxu0 0
    %2792 = vmatprep.subr.bf16.mxu0 0
    %2793 = vmatpush1.bf16.msra.mxu0 0
    %2794 = vmatprep.mubr.bf16.mxu0 0
    %2795 = vmatmul.mubr.bf16.gmra.mrb[0].mxu0 %v2564
    %v2796 = vpop.f32.mrb[0].mxu0
    %v2797 = vadd.f32 0.0, %v2796
    %v2798 = vpop.f32.mrb[0].mxu0
    %v2799 = vadd.f32 0.0, %v2798
    %v2800 = vpop.f32.mrb[0].mxu0
    %v2801 = vpop.f32.mrb[0].mxu0
    %2802 = vdwg.mxu0
    %2803 = vmatprep.subr.bf16.mxu0 %v470
    %2804 = vmatpush1.bf16.msra.mxu0 %v469
    %2805 = vmatprep.subr.bf16.mxu0 %v474
    %2806 = vmatpush1.bf16.msra.mxu0 %v473
    %2807 = vmatprep.subr.bf16.mxu0 %v478
    %2808 = vmatpush1.bf16.msra.mxu0 %v477
    %2809 = vmatprep.subr.bf16.mxu0 %v482
    %2810 = vmatpush1.bf16.msra.mxu0 %v481
    %2811 = vmatprep.subr.bf16.mxu0 %v486
    %2812 = vmatpush1.bf16.msra.mxu0 %v485
    %2813 = vmatprep.subr.bf16.mxu0 %v490
    %2814 = vmatpush1.bf16.msra.mxu0 %v489
    %2815 = vmatprep.subr.bf16.mxu0 %v494
    %2816 = vmatpush1.bf16.msra.mxu0 %v493
    %2817 = vmatprep.subr.bf16.mxu0 %v498
    %2818 = vmatpush1.bf16.msra.mxu0 %v497
    %2819 = vmatprep.subr.bf16.mxu0 0
    %2820 = vmatpush1.bf16.msra.mxu0 0
    %2821 = vmatprep.subr.bf16.mxu0 0
    %2822 = vmatpush1.bf16.msra.mxu0 0
    %2823 = vmatprep.subr.bf16.mxu0 0
    %2824 = vmatpush1.bf16.msra.mxu0 0
    %2825 = vmatprep.subr.bf16.mxu0 0
    %2826 = vmatpush1.bf16.msra.mxu0 0
    %2827 = vmatprep.subr.bf16.mxu0 0
    %2828 = vmatpush1.bf16.msra.mxu0 0
    %2829 = vmatprep.subr.bf16.mxu0 0
    %2830 = vmatpush1.bf16.msra.mxu0 0
    %2831 = vmatprep.subr.bf16.mxu0 0
    %2832 = vmatpush1.bf16.msra.mxu0 0
    %2833 = vmatprep.subr.bf16.mxu0 0
    %2834 = vmatpush1.bf16.msra.mxu0 0
    %2835 = vmatprep.mubr.bf16.mxu0 0
    %2836 = vmatmul.mubr.bf16.gmra.mrb[0].mxu0 %v2564
    %v2837 = vpop.f32.mrb[0].mxu0
    %v2838 = vadd.f32 0.0, %v2837
    %v2839 = vpop.f32.mrb[0].mxu0
    %v2840 = vadd.f32 0.0, %v2839
    %v2841 = vpop.f32.mrb[0].mxu0
    %v2842 = vpop.f32.mrb[0].mxu0
    %2843 = vdwg.mxu0
    %v2844 = vadd.f32 %v2758, %v2797
    %v2845 = vadd.f32 %v2759, %v2799
    %v2846 = vadd.f32 %v2760, %v2838
    %v2847 = vadd.f32 %v2761, %v2840
    %v2848 = vxor.u32 %v2844, 2147483648
    %v2849 = vmul.f32 %v2848, 1.442695
    %v2850 = vpow.pop %v2849
    %v2851 = vadd.f32 %v2850, 1.0
    %v2852 = vrcp.pop %v2851
    %v2853 = vmul.f32 1.0, %v2852
    %v2854 = vxor.u32 %v2845, 2147483648
    %v2855 = vmul.f32 %v2854, 1.442695
    %v2856 = vpow.pop %v2855
    %v2857 = vadd.f32 %v2856, 1.0
    %v2858 = vrcp.pop %v2857
    %v2859 = vmul.f32 1.0, %v2858
    %v2860 = vtanh.pop %v2846
    %v2861 = vxor.u32 %v2847, 2147483648
    %v2862 = vmul.f32 %v2861, 1.442695
    %v2863 = vpow.pop %v2862
    %v2864 = vadd.f32 %v2863, 1.0
    %v2865 = vrcp.pop %v2864
    %v2866 = vmul.f32 1.0, %v2865
    %v2867 = vmul.f32 %v2859, %v2561
    %v2868 = vmul.f32 %v2853, %v2860
    %v2869 = vadd.f32 %v2867, %v2868
    %v2870 = vtanh.pop %v2869
    %v2871 = vmul.f32 %v2866, %v2870
    %v2872 = vpack.c.bf16 %v2871, %v2871
    %v2873 = vpack.c.bf16 %v2757, %v2757
    %2874 = vmatprep.subr.bf16.mxu0 %v803
    %2875 = vmatpush1.bf16.msra.mxu0 %v802
    %2876 = vmatprep.subr.bf16.mxu0 %v807
    %2877 = vmatpush1.bf16.msra.mxu0 %v806
    %2878 = vmatprep.subr.bf16.mxu0 %v811
    %2879 = vmatpush1.bf16.msra.mxu0 %v810
    %2880 = vmatprep.subr.bf16.mxu0 %v815
    %2881 = vmatpush1.bf16.msra.mxu0 %v814
    %2882 = vmatprep.subr.bf16.mxu0 %v819
    %2883 = vmatpush1.bf16.msra.mxu0 %v818
    %2884 = vmatprep.subr.bf16.mxu0 %v823
    %2885 = vmatpush1.bf16.msra.mxu0 %v822
    %2886 = vmatprep.subr.bf16.mxu0 %v827
    %2887 = vmatpush1.bf16.msra.mxu0 %v826
    %2888 = vmatprep.subr.bf16.mxu0 %v831
    %2889 = vmatpush1.bf16.msra.mxu0 %v830
    %2890 = vmatprep.subr.bf16.mxu0 0
    %2891 = vmatpush1.bf16.msra.mxu0 0
    %2892 = vmatprep.subr.bf16.mxu0 0
    %2893 = vmatpush1.bf16.msra.mxu0 0
    %2894 = vmatprep.subr.bf16.mxu0 0
    %2895 = vmatpush1.bf16.msra.mxu0 0
    %2896 = vmatprep.subr.bf16.mxu0 0
    %2897 = vmatpush1.bf16.msra.mxu0 0
    %2898 = vmatprep.subr.bf16.mxu0 0
    %2899 = vmatpush1.bf16.msra.mxu0 0
    %2900 = vmatprep.subr.bf16.mxu0 0
    %2901 = vmatpush1.bf16.msra.mxu0 0
    %2902 = vmatprep.subr.bf16.mxu0 0
    %2903 = vmatpush1.bf16.msra.mxu0 0
    %2904 = vmatprep.subr.bf16.mxu0 0
    %2905 = vmatpush1.bf16.msra.mxu0 0
    %2906 = vmatprep.mubr.bf16.mxu0 0
    %2907 = vmatmul.mubr.bf16.gmra.mrb[0].mxu0 %v2873
    %v2908 = vpop.f32.mrb[0].mxu0
    %v2909 = vadd.f32 0.0, %v2908
    %v2910 = vpop.f32.mrb[0].mxu0
    %v2911 = vadd.f32 0.0, %v2910
    %v2912 = vpop.f32.mrb[0].mxu0
    %v2913 = vpop.f32.mrb[0].mxu0
    %2914 = vdwg.mxu0
    %2915 = vmatprep.subr.bf16.mxu0 %v805
    %2916 = vmatpush1.bf16.msra.mxu0 %v804
    %2917 = vmatprep.subr.bf16.mxu0 %v809
    %2918 = vmatpush1.bf16.msra.mxu0 %v808
    %2919 = vmatprep.subr.bf16.mxu0 %v813
    %2920 = vmatpush1.bf16.msra.mxu0 %v812
    %2921 = vmatprep.subr.bf16.mxu0 %v817
    %2922 = vmatpush1.bf16.msra.mxu0 %v816
    %2923 = vmatprep.subr.bf16.mxu0 %v821
    %2924 = vmatpush1.bf16.msra.mxu0 %v820
    %2925 = vmatprep.subr.bf16.mxu0 %v825
    %2926 = vmatpush1.bf16.msra.mxu0 %v824
    %2927 = vmatprep.subr.bf16.mxu0 %v829
    %2928 = vmatpush1.bf16.msra.mxu0 %v828
    %2929 = vmatprep.subr.bf16.mxu0 %v833
    %2930 = vmatpush1.bf16.msra.mxu0 %v832
    %2931 = vmatprep.subr.bf16.mxu0 0
    %2932 = vmatpush1.bf16.msra.mxu0 0
    %2933 = vmatprep.subr.bf16.mxu0 0
    %2934 = vmatpush1.bf16.msra.mxu0 0
    %2935 = vmatprep.subr.bf16.mxu0 0
    %2936 = vmatpush1.bf16.msra.mxu0 0
    %2937 = vmatprep.subr.bf16.mxu0 0
    %2938 = vmatpush1.bf16.msra.mxu0 0
    %2939 = vmatprep.subr.bf16.mxu0 0
    %2940 = vmatpush1.bf16.msra.mxu0 0
    %2941 = vmatprep.subr.bf16.mxu0 0
    %2942 = vmatpush1.bf16.msra.mxu0 0
    %2943 = vmatprep.subr.bf16.mxu0 0
    %2944 = vmatpush1.bf16.msra.mxu0 0
    %2945 = vmatprep.subr.bf16.mxu0 0
    %2946 = vmatpush1.bf16.msra.mxu0 0
    %2947 = vmatprep.mubr.bf16.mxu0 0
    %2948 = vmatmul.mubr.bf16.gmra.mrb[0].mxu0 %v2873
    %v2949 = vpop.f32.mrb[0].mxu0
    %v2950 = vadd.f32 0.0, %v2949
    %v2951 = vpop.f32.mrb[0].mxu0
    %v2952 = vadd.f32 0.0, %v2951
    %v2953 = vpop.f32.mrb[0].mxu0
    %v2954 = vpop.f32.mrb[0].mxu0
    %2955 = vdwg.mxu0
    %2956 = vmatprep.subr.bf16.mxu0 %v1045
    %2957 = vmatpush1.bf16.msra.mxu0 %v1044
    %2958 = vmatprep.subr.bf16.mxu0 %v1049
    %2959 = vmatpush1.bf16.msra.mxu0 %v1048
    %2960 = vmatprep.subr.bf16.mxu0 %v1053
    %2961 = vmatpush1.bf16.msra.mxu0 %v1052
    %2962 = vmatprep.subr.bf16.mxu0 %v1057
    %2963 = vmatpush1.bf16.msra.mxu0 %v1056
    %2964 = vmatprep.subr.bf16.mxu0 %v1061
    %2965 = vmatpush1.bf16.msra.mxu0 %v1060
    %2966 = vmatprep.subr.bf16.mxu0 %v1065
    %2967 = vmatpush1.bf16.msra.mxu0 %v1064
    %2968 = vmatprep.subr.bf16.mxu0 %v1069
    %2969 = vmatpush1.bf16.msra.mxu0 %v1068
    %2970 = vmatprep.subr.bf16.mxu0 %v1073
    %2971 = vmatpush1.bf16.msra.mxu0 %v1072
    %2972 = vmatprep.subr.bf16.mxu0 0
    %2973 = vmatpush1.bf16.msra.mxu0 0
    %2974 = vmatprep.subr.bf16.mxu0 0
    %2975 = vmatpush1.bf16.msra.mxu0 0
    %2976 = vmatprep.subr.bf16.mxu0 0
    %2977 = vmatpush1.bf16.msra.mxu0 0
    %2978 = vmatprep.subr.bf16.mxu0 0
    %2979 = vmatpush1.bf16.msra.mxu0 0
    %2980 = vmatprep.subr.bf16.mxu0 0
    %2981 = vmatpush1.bf16.msra.mxu0 0
    %2982 = vmatprep.subr.bf16.mxu0 0
    %2983 = vmatpush1.bf16.msra.mxu0 0
    %2984 = vmatprep.subr.bf16.mxu0 0
    %2985 = vmatpush1.bf16.msra.mxu0 0
    %2986 = vmatprep.subr.bf16.mxu0 0
    %2987 = vmatpush1.bf16.msra.mxu0 0
    %2988 = vmatprep.mubr.bf16.mxu0 0
    %2989 = vmatmul.mubr.bf16.gmra.mrb[0].mxu0 %v2872
    %v2990 = vpop.f32.mrb[0].mxu0
    %v2991 = vadd.f32 %v2909, %v2990
    %v2992 = vpop.f32.mrb[0].mxu0
    %v2993 = vadd.f32 %v2911, %v2992
    %v2994 = vpop.f32.mrb[0].mxu0
    %v2995 = vpop.f32.mrb[0].mxu0
    %2996 = vdwg.mxu0
    %2997 = vmatprep.subr.bf16.mxu0 %v1047
    %2998 = vmatpush1.bf16.msra.mxu0 %v1046
    %2999 = vmatprep.subr.bf16.mxu0 %v1051
    %3000 = vmatpush1.bf16.msra.mxu0 %v1050
    %3001 = vmatprep.subr.bf16.mxu0 %v1055
    %3002 = vmatpush1.bf16.msra.mxu0 %v1054
    %3003 = vmatprep.subr.bf16.mxu0 %v1059
    %3004 = vmatpush1.bf16.msra.mxu0 %v1058
    %3005 = vmatprep.subr.bf16.mxu0 %v1063
    %3006 = vmatpush1.bf16.msra.mxu0 %v1062
    %3007 = vmatprep.subr.bf16.mxu0 %v1067
    %3008 = vmatpush1.bf16.msra.mxu0 %v1066
    %3009 = vmatprep.subr.bf16.mxu0 %v1071
    %3010 = vmatpush1.bf16.msra.mxu0 %v1070
    %3011 = vmatprep.subr.bf16.mxu0 %v1075
    %3012 = vmatpush1.bf16.msra.mxu0 %v1074
    %3013 = vmatprep.subr.bf16.mxu0 0
    %3014 = vmatpush1.bf16.msra.mxu0 0
    %3015 = vmatprep.subr.bf16.mxu0 0
    %3016 = vmatpush1.bf16.msra.mxu0 0
    %3017 = vmatprep.subr.bf16.mxu0 0
    %3018 = vmatpush1.bf16.msra.mxu0 0
    %3019 = vmatprep.subr.bf16.mxu0 0
    %3020 = vmatpush1.bf16.msra.mxu0 0
    %3021 = vmatprep.subr.bf16.mxu0 0
    %3022 = vmatpush1.bf16.msra.mxu0 0
    %3023 = vmatprep.subr.bf16.mxu0 0
    %3024 = vmatpush1.bf16.msra.mxu0 0
    %3025 = vmatprep.subr.bf16.mxu0 0
    %3026 = vmatpush1.bf16.msra.mxu0 0
    %3027 = vmatprep.subr.bf16.mxu0 0
    %3028 = vmatpush1.bf16.msra.mxu0 0
    %3029 = vmatprep.mubr.bf16.mxu0 0
    %3030 = vmatmul.mubr.bf16.gmra.mrb[0].mxu0 %v2872
    %v3031 = vpop.f32.mrb[0].mxu0
    %v3032 = vadd.f32 %v2950, %v3031
    %v3033 = vpop.f32.mrb[0].mxu0
    %v3034 = vadd.f32 %v2952, %v3033
    %v3035 = vpop.f32.mrb[0].mxu0
    %v3036 = vpop.f32.mrb[0].mxu0
    %3037 = vdwg.mxu0
    %v3038 = vadd.f32 %v2991, %v318
    %v3039 = vadd.f32 %v2993, %v322
    %v3040 = vadd.f32 %v3032, %v326
    %v3041 = vadd.f32 %v3034, %v330
    %v3042 = vxor.u32 %v3038, 2147483648
    %v3043 = vmul.f32 %v3042, 1.442695
    %v3044 = vpow.pop %v3043
    %v3045 = vadd.f32 %v3044, 1.0
    %v3046 = vrcp.pop %v3045
    %v3047 = vmul.f32 1.0, %v3046
    %v3048 = vxor.u32 %v3039, 2147483648
    %v3049 = vmul.f32 %v3048, 1.442695
    %v3050 = vpow.pop %v3049
    %v3051 = vadd.f32 %v3050, 1.0
    %v3052 = vrcp.pop %v3051
    %v3053 = vmul.f32 1.0, %v3052
    %v3054 = vtanh.pop %v3040
    %v3055 = vxor.u32 %v3041, 2147483648
    %v3056 = vmul.f32 %v3055, 1.442695
    %v3057 = vpow.pop %v3056
    %v3058 = vadd.f32 %v3057, 1.0
    %v3059 = vrcp.pop %v3058
    %v3060 = vmul.f32 1.0, %v3059
    %v3061 = vmul.f32 %v3053, %v2755
    %v3062 = vmul.f32 %v3047, %v3054
    %v3063 = vadd.f32 %v3061, %v3062
    %v3064 = vtanh.pop %v3063
    %v3065 = vmul.f32 %v3060, %v3064
    %v3066 = vld [vmem:[#allocation2 + $0xe0] sm:$0xff]
    %v3067 = vld [vmem:[#allocation2 + $0xe8] sm:$0xff]
    %v3068 = vld [vmem:[#allocation2 + $0xf0] sm:$0xff]
    %v3069 = vld [vmem:[#allocation2 + $0xf8] sm:$0xff]
    %3070 = vmatprep.subr.bf16.mxu0 %v468
    %3071 = vmatpush1.bf16.msra.mxu0 %v467
    %3072 = vmatprep.subr.bf16.mxu0 %v472
    %3073 = vmatpush1.bf16.msra.mxu0 %v471
    %3074 = vmatprep.subr.bf16.mxu0 %v476
    %3075 = vmatpush1.bf16.msra.mxu0 %v475
    %3076 = vmatprep.subr.bf16.mxu0 %v480
    %3077 = vmatpush1.bf16.msra.mxu0 %v479
    %3078 = vmatprep.subr.bf16.mxu0 %v484
    %3079 = vmatpush1.bf16.msra.mxu0 %v483
    %3080 = vmatprep.subr.bf16.mxu0 %v488
    %3081 = vmatpush1.bf16.msra.mxu0 %v487
    %3082 = vmatprep.subr.bf16.mxu0 %v492
    %3083 = vmatpush1.bf16.msra.mxu0 %v491
    %3084 = vmatprep.subr.bf16.mxu0 %v496
    %3085 = vmatpush1.bf16.msra.mxu0 %v495
    %3086 = vmatprep.subr.bf16.mxu0 0
    %3087 = vmatpush1.bf16.msra.mxu0 0
    %3088 = vmatprep.subr.bf16.mxu0 0
    %3089 = vmatpush1.bf16.msra.mxu0 0
    %3090 = vmatprep.subr.bf16.mxu0 0
    %3091 = vmatpush1.bf16.msra.mxu0 0
    %3092 = vmatprep.subr.bf16.mxu0 0
    %3093 = vmatpush1.bf16.msra.mxu0 0
    %3094 = vmatprep.subr.bf16.mxu0 0
    %3095 = vmatpush1.bf16.msra.mxu0 0
    %3096 = vmatprep.subr.bf16.mxu0 0
    %3097 = vmatpush1.bf16.msra.mxu0 0
    %3098 = vmatprep.subr.bf16.mxu0 0
    %3099 = vmatpush1.bf16.msra.mxu0 0
    %3100 = vmatprep.subr.bf16.mxu0 0
    %3101 = vmatpush1.bf16.msra.mxu0 0
    %3102 = vmatprep.mubr.bf16.mxu0 0
    %3103 = vmatmul.mubr.bf16.gmra.mrb[0].mxu0 %v2872
    %v3104 = vpop.f32.mrb[0].mxu0
    %v3105 = vadd.f32 0.0, %v3104
    %v3106 = vpop.f32.mrb[0].mxu0
    %v3107 = vadd.f32 0.0, %v3106
    %v3108 = vpop.f32.mrb[0].mxu0
    %v3109 = vpop.f32.mrb[0].mxu0
    %3110 = vdwg.mxu0
    %3111 = vmatprep.subr.bf16.mxu0 %v470
    %3112 = vmatpush1.bf16.msra.mxu0 %v469
    %3113 = vmatprep.subr.bf16.mxu0 %v474
    %3114 = vmatpush1.bf16.msra.mxu0 %v473
    %3115 = vmatprep.subr.bf16.mxu0 %v478
    %3116 = vmatpush1.bf16.msra.mxu0 %v477
    %3117 = vmatprep.subr.bf16.mxu0 %v482
    %3118 = vmatpush1.bf16.msra.mxu0 %v481
    %3119 = vmatprep.subr.bf16.mxu0 %v486
    %3120 = vmatpush1.bf16.msra.mxu0 %v485
    %3121 = vmatprep.subr.bf16.mxu0 %v490
    %3122 = vmatpush1.bf16.msra.mxu0 %v489
    %3123 = vmatprep.subr.bf16.mxu0 %v494
    %3124 = vmatpush1.bf16.msra.mxu0 %v493
    %3125 = vmatprep.subr.bf16.mxu0 %v498
    %3126 = vmatpush1.bf16.msra.mxu0 %v497
    %3127 = vmatprep.subr.bf16.mxu0 0
    %3128 = vmatpush1.bf16.msra.mxu0 0
    %3129 = vmatprep.subr.bf16.mxu0 0
    %3130 = vmatpush1.bf16.msra.mxu0 0
    %3131 = vmatprep.subr.bf16.mxu0 0
    %3132 = vmatpush1.bf16.msra.mxu0 0
    %3133 = vmatprep.subr.bf16.mxu0 0
    %3134 = vmatpush1.bf16.msra.mxu0 0
    %3135 = vmatprep.subr.bf16.mxu0 0
    %3136 = vmatpush1.bf16.msra.mxu0 0
    %3137 = vmatprep.subr.bf16.mxu0 0
    %3138 = vmatpush1.bf16.msra.mxu0 0
    %3139 = vmatprep.subr.bf16.mxu0 0
    %3140 = vmatpush1.bf16.msra.mxu0 0
    %3141 = vmatprep.subr.bf16.mxu0 0
    %3142 = vmatpush1.bf16.msra.mxu0 0
    %3143 = vmatprep.mubr.bf16.mxu0 0
    %3144 = vmatmul.mubr.bf16.gmra.mrb[0].mxu0 %v2872
    %v3145 = vpop.f32.mrb[0].mxu0
    %v3146 = vadd.f32 0.0, %v3145
    %v3147 = vpop.f32.mrb[0].mxu0
    %v3148 = vadd.f32 0.0, %v3147
    %v3149 = vpop.f32.mrb[0].mxu0
    %v3150 = vpop.f32.mrb[0].mxu0
    %3151 = vdwg.mxu0
    %v3152 = vadd.f32 %v3066, %v3105
    %v3153 = vadd.f32 %v3067, %v3107
    %v3154 = vadd.f32 %v3068, %v3146
    %v3155 = vadd.f32 %v3069, %v3148
    %v3156 = vxor.u32 %v3152, 2147483648
    %v3157 = vmul.f32 %v3156, 1.442695
    %v3158 = vpow.pop %v3157
    %v3159 = vadd.f32 %v3158, 1.0
    %v3160 = vrcp.pop %v3159
    %v3161 = vmul.f32 1.0, %v3160
    %v3162 = vxor.u32 %v3153, 2147483648
    %v3163 = vmul.f32 %v3162, 1.442695
    %v3164 = vpow.pop %v3163
    %v3165 = vadd.f32 %v3164, 1.0
    %v3166 = vrcp.pop %v3165
    %v3167 = vmul.f32 1.0, %v3166
    %v3168 = vtanh.pop %v3154
    %v3169 = vxor.u32 %v3155, 2147483648
    %v3170 = vmul.f32 %v3169, 1.442695
    %v3171 = vpow.pop %v3170
    %v3172 = vadd.f32 %v3171, 1.0
    %v3173 = vrcp.pop %v3172
    %v3174 = vmul.f32 1.0, %v3173
    %v3175 = vmul.f32 %v3167, %v2869
    %v3176 = vmul.f32 %v3161, %v3168
    %v3177 = vadd.f32 %v3175, %v3176
    %v3178 = vtanh.pop %v3177
    %v3179 = vmul.f32 %v3174, %v3178
    %v3180 = vpack.c.bf16 %v3179, %v3179
    %v3181 = vpack.c.bf16 %v3065, %v3065
    %3182 = vmatprep.subr.bf16.mxu0 %v803
    %3183 = vmatpush1.bf16.msra.mxu0 %v802
    %3184 = vmatprep.subr.bf16.mxu0 %v807
    %3185 = vmatpush1.bf16.msra.mxu0 %v806
    %3186 = vmatprep.subr.bf16.mxu0 %v811
    %3187 = vmatpush1.bf16.msra.mxu0 %v810
    %3188 = vmatprep.subr.bf16.mxu0 %v815
    %3189 = vmatpush1.bf16.msra.mxu0 %v814
    %3190 = vmatprep.subr.bf16.mxu0 %v819
    %3191 = vmatpush1.bf16.msra.mxu0 %v818
    %3192 = vmatprep.subr.bf16.mxu0 %v823
    %3193 = vmatpush1.bf16.msra.mxu0 %v822
    %3194 = vmatprep.subr.bf16.mxu0 %v827
    %3195 = vmatpush1.bf16.msra.mxu0 %v826
    %3196 = vmatprep.subr.bf16.mxu0 %v831
    %3197 = vmatpush1.bf16.msra.mxu0 %v830
    %3198 = vmatprep.subr.bf16.mxu0 0
    %3199 = vmatpush1.bf16.msra.mxu0 0
    %3200 = vmatprep.subr.bf16.mxu0 0
    %3201 = vmatpush1.bf16.msra.mxu0 0
    %3202 = vmatprep.subr.bf16.mxu0 0
    %3203 = vmatpush1.bf16.msra.mxu0 0
    %3204 = vmatprep.subr.bf16.mxu0 0
    %3205 = vmatpush1.bf16.msra.mxu0 0
    %3206 = vmatprep.subr.bf16.mxu0 0
    %3207 = vmatpush1.bf16.msra.mxu0 0
    %3208 = vmatprep.subr.bf16.mxu0 0
    %3209 = vmatpush1.bf16.msra.mxu0 0
    %3210 = vmatprep.subr.bf16.mxu0 0
    %3211 = vmatpush1.bf16.msra.mxu0 0
    %3212 = vmatprep.subr.bf16.mxu0 0
    %3213 = vmatpush1.bf16.msra.mxu0 0
    %3214 = vmatprep.mubr.bf16.mxu0 0
    %3215 = vmatmul.mubr.bf16.gmra.mrb[0].mxu0 %v3181
    %v3216 = vpop.f32.mrb[0].mxu0
    %v3217 = vadd.f32 0.0, %v3216
    %v3218 = vpop.f32.mrb[0].mxu0
    %v3219 = vadd.f32 0.0, %v3218
    %v3220 = vpop.f32.mrb[0].mxu0
    %v3221 = vpop.f32.mrb[0].mxu0
    %3222 = vdwg.mxu0
    %3223 = vmatprep.subr.bf16.mxu0 %v805
    %3224 = vmatpush1.bf16.msra.mxu0 %v804
    %3225 = vmatprep.subr.bf16.mxu0 %v809
    %3226 = vmatpush1.bf16.msra.mxu0 %v808
    %3227 = vmatprep.subr.bf16.mxu0 %v813
    %3228 = vmatpush1.bf16.msra.mxu0 %v812
    %3229 = vmatprep.subr.bf16.mxu0 %v817
    %3230 = vmatpush1.bf16.msra.mxu0 %v816
    %3231 = vmatprep.subr.bf16.mxu0 %v821
    %3232 = vmatpush1.bf16.msra.mxu0 %v820
    %3233 = vmatprep.subr.bf16.mxu0 %v825
    %3234 = vmatpush1.bf16.msra.mxu0 %v824
    %3235 = vmatprep.subr.bf16.mxu0 %v829
    %3236 = vmatpush1.bf16.msra.mxu0 %v828
    %3237 = vmatprep.subr.bf16.mxu0 %v833
    %3238 = vmatpush1.bf16.msra.mxu0 %v832
    %3239 = vmatprep.subr.bf16.mxu0 0
    %3240 = vmatpush1.bf16.msra.mxu0 0
    %3241 = vmatprep.subr.bf16.mxu0 0
    %3242 = vmatpush1.bf16.msra.mxu0 0
    %3243 = vmatprep.subr.bf16.mxu0 0
    %3244 = vmatpush1.bf16.msra.mxu0 0
    %3245 = vmatprep.subr.bf16.mxu0 0
    %3246 = vmatpush1.bf16.msra.mxu0 0
    %3247 = vmatprep.subr.bf16.mxu0 0
    %3248 = vmatpush1.bf16.msra.mxu0 0
    %3249 = vmatprep.subr.bf16.mxu0 0
    %3250 = vmatpush1.bf16.msra.mxu0 0
    %3251 = vmatprep.subr.bf16.mxu0 0
    %3252 = vmatpush1.bf16.msra.mxu0 0
    %3253 = vmatprep.subr.bf16.mxu0 0
    %3254 = vmatpush1.bf16.msra.mxu0 0
    %3255 = vmatprep.mubr.bf16.mxu0 0
    %3256 = vmatmul.mubr.bf16.gmra.mrb[0].mxu0 %v3181
    %v3257 = vpop.f32.mrb[0].mxu0
    %v3258 = vadd.f32 0.0, %v3257
    %v3259 = vpop.f32.mrb[0].mxu0
    %v3260 = vadd.f32 0.0, %v3259
    %v3261 = vpop.f32.mrb[0].mxu0
    %v3262 = vpop.f32.mrb[0].mxu0
    %3263 = vdwg.mxu0
    %3264 = vmatprep.subr.bf16.mxu0 %v1045
    %3265 = vmatpush1.bf16.msra.mxu0 %v1044
    %3266 = vmatprep.subr.bf16.mxu0 %v1049
    %3267 = vmatpush1.bf16.msra.mxu0 %v1048
    %3268 = vmatprep.subr.bf16.mxu0 %v1053
    %3269 = vmatpush1.bf16.msra.mxu0 %v1052
    %3270 = vmatprep.subr.bf16.mxu0 %v1057
    %3271 = vmatpush1.bf16.msra.mxu0 %v1056
    %3272 = vmatprep.subr.bf16.mxu0 %v1061
    %3273 = vmatpush1.bf16.msra.mxu0 %v1060
    %3274 = vmatprep.subr.bf16.mxu0 %v1065
    %3275 = vmatpush1.bf16.msra.mxu0 %v1064
    %3276 = vmatprep.subr.bf16.mxu0 %v1069
    %3277 = vmatpush1.bf16.msra.mxu0 %v1068
    %3278 = vmatprep.subr.bf16.mxu0 %v1073
    %3279 = vmatpush1.bf16.msra.mxu0 %v1072
    %3280 = vmatprep.subr.bf16.mxu0 0
    %3281 = vmatpush1.bf16.msra.mxu0 0
    %3282 = vmatprep.subr.bf16.mxu0 0
    %3283 = vmatpush1.bf16.msra.mxu0 0
    %3284 = vmatprep.subr.bf16.mxu0 0
    %3285 = vmatpush1.bf16.msra.mxu0 0
    %3286 = vmatprep.subr.bf16.mxu0 0
    %3287 = vmatpush1.bf16.msra.mxu0 0
    %3288 = vmatprep.subr.bf16.mxu0 0
    %3289 = vmatpush1.bf16.msra.mxu0 0
    %3290 = vmatprep.subr.bf16.mxu0 0
    %3291 = vmatpush1.bf16.msra.mxu0 0
    %3292 = vmatprep.subr.bf16.mxu0 0
    %3293 = vmatpush1.bf16.msra.mxu0 0
    %3294 = vmatprep.subr.bf16.mxu0 0
    %3295 = vmatpush1.bf16.msra.mxu0 0
    %3296 = vmatprep.mubr.bf16.mxu0 0
    %3297 = vmatmul.mubr.bf16.gmra.mrb[0].mxu0 %v3180
    %v3298 = vpop.f32.mrb[0].mxu0
    %v3299 = vadd.f32 %v3217, %v3298
    %v3300 = vpop.f32.mrb[0].mxu0
    %v3301 = vadd.f32 %v3219, %v3300
    %v3302 = vpop.f32.mrb[0].mxu0
    %v3303 = vpop.f32.mrb[0].mxu0
    %3304 = vdwg.mxu0
    %3305 = vmatprep.subr.bf16.mxu0 %v1047
    %3306 = vmatpush1.bf16.msra.mxu0 %v1046
    %3307 = vmatprep.subr.bf16.mxu0 %v1051
    %3308 = vmatpush1.bf16.msra.mxu0 %v1050
    %3309 = vmatprep.subr.bf16.mxu0 %v1055
    %3310 = vmatpush1.bf16.msra.mxu0 %v1054
    %3311 = vmatprep.subr.bf16.mxu0 %v1059
    %3312 = vmatpush1.bf16.msra.mxu0 %v1058
    %3313 = vmatprep.subr.bf16.mxu0 %v1063
    %3314 = vmatpush1.bf16.msra.mxu0 %v1062
    %3315 = vmatprep.subr.bf16.mxu0 %v1067
    %3316 = vmatpush1.bf16.msra.mxu0 %v1066
    %3317 = vmatprep.subr.bf16.mxu0 %v1071
    %3318 = vmatpush1.bf16.msra.mxu0 %v1070
    %3319 = vmatprep.subr.bf16.mxu0 %v1075
    %3320 = vmatpush1.bf16.msra.mxu0 %v1074
    %3321 = vmatprep.subr.bf16.mxu0 0
    %3322 = vmatpush1.bf16.msra.mxu0 0
    %3323 = vmatprep.subr.bf16.mxu0 0
    %3324 = vmatpush1.bf16.msra.mxu0 0
    %3325 = vmatprep.subr.bf16.mxu0 0
    %3326 = vmatpush1.bf16.msra.mxu0 0
    %3327 = vmatprep.subr.bf16.mxu0 0
    %3328 = vmatpush1.bf16.msra.mxu0 0
    %3329 = vmatprep.subr.bf16.mxu0 0
    %3330 = vmatpush1.bf16.msra.mxu0 0
    %3331 = vmatprep.subr.bf16.mxu0 0
    %3332 = vmatpush1.bf16.msra.mxu0 0
    %3333 = vmatprep.subr.bf16.mxu0 0
    %3334 = vmatpush1.bf16.msra.mxu0 0
    %3335 = vmatprep.subr.bf16.mxu0 0
    %3336 = vmatpush1.bf16.msra.mxu0 0
    %3337 = vmatprep.mubr.bf16.mxu0 0
    %3338 = vmatmul.mubr.bf16.gmra.mrb[0].mxu0 %v3180
    %v3339 = vpop.f32.mrb[0].mxu0
    %v3340 = vadd.f32 %v3258, %v3339
    %v3341 = vpop.f32.mrb[0].mxu0
    %v3342 = vadd.f32 %v3260, %v3341
    %v3343 = vpop.f32.mrb[0].mxu0
    %v3344 = vpop.f32.mrb[0].mxu0
    %3345 = vdwg.mxu0
    %v3346 = vadd.f32 %v3299, %v318
    %v3347 = vadd.f32 %v3301, %v322
    %v3348 = vadd.f32 %v3340, %v326
    %v3349 = vadd.f32 %v3342, %v330
    %v3350 = vxor.u32 %v3346, 2147483648
    %v3351 = vmul.f32 %v3350, 1.442695
    %v3352 = vpow.pop %v3351
    %v3353 = vadd.f32 %v3352, 1.0
    %v3354 = vrcp.pop %v3353
    %v3355 = vmul.f32 1.0, %v3354
    %v3356 = vxor.u32 %v3347, 2147483648
    %v3357 = vmul.f32 %v3356, 1.442695
    %v3358 = vpow.pop %v3357
    %v3359 = vadd.f32 %v3358, 1.0
    %v3360 = vrcp.pop %v3359
    %v3361 = vmul.f32 1.0, %v3360
    %v3362 = vtanh.pop %v3348
    %v3363 = vxor.u32 %v3349, 2147483648
    %v3364 = vmul.f32 %v3363, 1.442695
    %v3365 = vpow.pop %v3364
    %v3366 = vadd.f32 %v3365, 1.0
    %v3367 = vrcp.pop %v3366
    %v3368 = vmul.f32 1.0, %v3367
    %v3369 = vmul.f32 %v3361, %v3063
    %v3370 = vmul.f32 %v3355, %v3362
    %v3371 = vadd.f32 %v3369, %v3370
    %v3372 = vtanh.pop %v3371
    %v3373 = vmul.f32 %v3368, %v3372
    %v3374 = vpack.c.bf16 %v1525, %v1217
    %v3375 = vpack.c.bf16 %v2141, %v1833
    %v3376 = vpack.c.bf16 %v2757, %v2449
    %v3377 = vpack.c.bf16 %v3373, %v3065
    %v3378 = vld [vmem:[%s7] sm:$0xf]
    %v3379 = vld [vmem:[%s7 + $0x4] sm:$0xf]
    %v3380 = vld [vmem:[%s7 + $0x8] sm:$0xf]
    %v3381 = vld [vmem:[%s7 + $0xc] sm:$0xf]
    %v3382 = vld [vmem:[%s7 + $0x10] sm:$0xf]
    %v3383 = vld [vmem:[%s7 + $0x14] sm:$0xf]
    %v3384 = vld [vmem:[%s7 + $0x18] sm:$0xf]
    %v3385 = vld [vmem:[%s7 + $0x1c] sm:$0xf]
    %v3386 = vld [vmem:[%s7 + $0x20] sm:$0xf]
    %v3387 = vld [vmem:[%s7 + $0x24] sm:$0xf]
    %v3388 = vld [vmem:[%s7 + $0x28] sm:$0xf]
    %v3389 = vld [vmem:[%s7 + $0x2c] sm:$0xf]
    %v3390 = vld [vmem:[%s7 + $0x30] sm:$0xf]
    %v3391 = vld [vmem:[%s7 + $0x34] sm:$0xf]
    %v3392 = vld [vmem:[%s7 + $0x38] sm:$0xf]
    %v3393 = vld [vmem:[%s7 + $0x3c] sm:$0xf]
    %v3394 = vld [vmem:[%s8] sm:$0x1]
    %v3396 = vlaneseq
    %v3397 = vshrl.u32 %v3396, 7
    %v3398 = vsub.s32 0, %v3397
    %v3399 = vrot.slane %v3394, %v3398
    %v3417 = vunpack.c.l.b16 %v3378
    %v3418 = vunpack.c.l.b16 %v3379
    %v3419 = vunpack.c.l.b16 %v3380
    %v3420 = vunpack.c.l.b16 %v3381
    %v3421 = vunpack.c.l.b16 %v3382
    %v3422 = vunpack.c.l.b16 %v3383
    %v3423 = vunpack.c.l.b16 %v3384
    %v3424 = vunpack.c.l.b16 %v3385
    %v3425 = vunpack.c.l.b16 %v3386
    %v3426 = vunpack.c.l.b16 %v3387
    %v3427 = vunpack.c.l.b16 %v3388
    %v3428 = vunpack.c.l.b16 %v3389
    %v3429 = vunpack.c.l.b16 %v3390
    %v3430 = vunpack.c.l.b16 %v3391
    %v3431 = vunpack.c.l.b16 %v3392
    %v3432 = vunpack.c.l.b16 %v3393
    %v3433 = vpack.c.b16 %v3418, %v3417
    %v3434 = vpack.c.b16 %v3420, %v3419
    %v3435 = vpack.c.b16 %v3422, %v3421
    %v3436 = vpack.c.b16 %v3424, %v3423
    %v3437 = vpack.c.b16 %v3426, %v3425
    %v3438 = vpack.c.b16 %v3428, %v3427
    %v3439 = vpack.c.b16 %v3430, %v3429
    %v3440 = vpack.c.b16 %v3432, %v3431
    %3449 = vmatprep.subr.bf16.mxu0 0
    %3450 = vmatpush1.bf16.msra.mxu0 %v3433
    %3451 = vmatprep.subr.bf16.mxu0 0
    %3452 = vmatpush1.bf16.msra.mxu0 %v3434
    %3453 = vmatprep.subr.bf16.mxu0 0
    %3454 = vmatpush1.bf16.msra.mxu0 %v3435
    %3455 = vmatprep.subr.bf16.mxu0 0
    %3456 = vmatpush1.bf16.msra.mxu0 %v3436
    %3457 = vmatprep.subr.bf16.mxu0 0
    %3458 = vmatpush1.bf16.msra.mxu0 %v3437
    %3459 = vmatprep.subr.bf16.mxu0 0
    %3460 = vmatpush1.bf16.msra.mxu0 %v3438
    %3461 = vmatprep.subr.bf16.mxu0 0
    %3462 = vmatpush1.bf16.msra.mxu0 %v3439
    %3463 = vmatprep.subr.bf16.mxu0 0
    %3464 = vmatpush1.bf16.msra.mxu0 %v3440
    %3465 = vmatprep.subr.bf16.mxu0 0
    %3466 = vmatpush1.bf16.msra.mxu0 0
    %3467 = vmatprep.subr.bf16.mxu0 0
    %3468 = vmatpush1.bf16.msra.mxu0 0
    %3469 = vmatprep.subr.bf16.mxu0 0
    %3470 = vmatpush1.bf16.msra.mxu0 0
    %3471 = vmatprep.subr.bf16.mxu0 0
    %3472 = vmatpush1.bf16.msra.mxu0 0
    %3473 = vmatprep.subr.bf16.mxu0 0
    %3474 = vmatpush1.bf16.msra.mxu0 0
    %3475 = vmatprep.subr.bf16.mxu0 0
    %3476 = vmatpush1.bf16.msra.mxu0 0
    %3477 = vmatprep.subr.bf16.mxu0 0
    %3478 = vmatpush1.bf16.msra.mxu0 0
    %3479 = vmatprep.subr.bf16.mxu0 0
    %3480 = vmatpush1.bf16.msra.mxu0 0
    %3481 = vmatprep.mubr.bf16.mxu0 0
    %3482 = vmatmul.mubr.bf16.gmra.mrb[0].mxu0 %v3374
    %v3483 = vpop.f32.mrb[0].mxu0
    %v3484 = vadd.f32 %v3399, %v3483
    %v3485 = vpop.f32.mrb[0].mxu0
    %v3486 = vpop.f32.mrb[0].mxu0
    %v3487 = vadd.f32 %v3399, %v3486
    %v3488 = vpop.f32.mrb[0].mxu0
    %3489 = vmatprep.mubr.bf16.mxu0 0
    %3490 = vmatmul.mubr.bf16.gmra.mrb[0].mxu0 %v3375
    %v3491 = vpop.f32.mrb[0].mxu0
    %v3492 = vadd.f32 %v3399, %v3491
    %v3493 = vpop.f32.mrb[0].mxu0
    %v3494 = vpop.f32.mrb[0].mxu0
    %v3495 = vadd.f32 %v3399, %v3494
    %v3496 = vpop.f32.mrb[0].mxu0
    %3497 = vmatprep.mubr.bf16.mxu0 0
    %3498 = vmatmul.mubr.bf16.gmra.mrb[0].mxu0 %v3376
    %v3499 = vpop.f32.mrb[0].mxu0
    %v3500 = vadd.f32 %v3399, %v3499
    %v3501 = vpop.f32.mrb[0].mxu0
    %v3502 = vpop.f32.mrb[0].mxu0
    %v3503 = vadd.f32 %v3399, %v3502
    %v3504 = vpop.f32.mrb[0].mxu0
    %3505 = vmatprep.mubr.bf16.mxu0 0
    %3506 = vmatmul.mubr.bf16.gmra.mrb[0].mxu0 %v3377
    %v3507 = vpop.f32.mrb[0].mxu0
    %v3508 = vadd.f32 %v3399, %v3507
    %v3509 = vpop.f32.mrb[0].mxu0
    %v3510 = vpop.f32.mrb[0].mxu0
    %v3511 = vadd.f32 %v3399, %v3510
    %v3512 = vpop.f32.mrb[0].mxu0
    %3513 = vdwg.mxu0
    %v3514 = vld [vmem:[%s9] sm:$0xff]
    %v3515 = vld [vmem:[%s9 + $0x8] sm:$0xff]
    %v3516 = vld [vmem:[%s9 + $0x10] sm:$0xff]
    %v3517 = vld [vmem:[%s9 + $0x18] sm:$0xff]
    %v3518 = vld [vmem:[%s9 + $0x20] sm:$0xff]
    %v3519 = vld [vmem:[%s9 + $0x28] sm:$0xff]
    %v3520 = vld [vmem:[%s9 + $0x30] sm:$0xff]
    %v3521 = vld [vmem:[%s9 + $0x38] sm:$0xff]
    %v3522 = vmul.f32 %v3484, 0.5
    %v3523 = vmul.f32 %v3487, 0.5
    %v3524 = vmul.f32 %v3492, 0.5
    %v3525 = vmul.f32 %v3495, 0.5
    %v3526 = vmul.f32 %v3500, 0.5
    %v3527 = vmul.f32 %v3503, 0.5
    %v3528 = vmul.f32 %v3508, 0.5
    %v3529 = vmul.f32 %v3511, 0.5
    %v3530 = vmul.f32 %v3522, 1.442695
    %v3531 = vpow.pop %v3530
    %v3532 = vmul.f32 %v3523, 1.442695
    %v3533 = vpow.pop %v3532
    %v3534 = vmul.f32 %v3524, 1.442695
    %v3535 = vpow.pop %v3534
    %v3536 = vmul.f32 %v3525, 1.442695
    %v3537 = vpow.pop %v3536
    %v3538 = vmul.f32 %v3526, 1.442695
    %v3539 = vpow.pop %v3538
    %v3540 = vmul.f32 %v3527, 1.442695
    %v3541 = vpow.pop %v3540
    %v3542 = vmul.f32 %v3528, 1.442695
    %v3543 = vpow.pop %v3542
    %v3544 = vmul.f32 %v3529, 1.442695
    %v3545 = vpow.pop %v3544
    %3554 = vrot.lane.b32.xlu0 %v3531, 120
    %v3555 = vpop.permute.xlu0 %3554
    %3556 = vrot.lane.b32.xlu0 %v3533, 120
    %v3557 = vpop.permute.xlu0 %3556
    %3558 = vrot.lane.b32.xlu0 %v3535, 120
    %v3559 = vpop.permute.xlu0 %3558
    %3560 = vrot.lane.b32.xlu0 %v3537, 120
    %v3561 = vpop.permute.xlu0 %3560
    %3562 = vrot.lane.b32.xlu0 %v3539, 120
    %v3563 = vpop.permute.xlu0 %3562
    %3564 = vrot.lane.b32.xlu0 %v3541, 120
    %v3565 = vpop.permute.xlu0 %3564
    %3566 = vrot.lane.b32.xlu0 %v3543, 120
    %v3567 = vpop.permute.xlu0 %3566
    %3568 = vrot.lane.b32.xlu0 %v3545, 120
    %v3569 = vpop.permute.xlu0 %3568
    %v3578 = vmul.f32 %v3514, %v3555
    %v3579 = vmul.f32 %v3515, %v3557
    %v3580 = vmul.f32 %v3516, %v3559
    %v3581 = vmul.f32 %v3517, %v3561
    %v3582 = vmul.f32 %v3518, %v3563
    %v3583 = vmul.f32 %v3519, %v3565
    %v3584 = vmul.f32 %v3520, %v3567
    %v3585 = vmul.f32 %v3521, %v3569
    %v3586 = vadd.f32 %v3578, %v3484
    %v3587 = vadd.f32 %v3579, %v3487
    %v3588 = vadd.f32 %v3580, %v3492
    %v3589 = vadd.f32 %v3581, %v3495
    %v3590 = vadd.f32 %v3582, %v3500
    %v3591 = vadd.f32 %v3583, %v3503
    %v3592 = vadd.f32 %v3584, %v3508
    %v3593 = vadd.f32 %v3585, %v3511
    %3594 = vst.msk [vmem:[%s10] sm:$0xff] %vm122, %v3484
    %3595 = vst.msk [vmem:[%s10 + $0x8] sm:$0xff] %vm122, %v3487
    %3596 = vst.msk [vmem:[%s10 + $0x10] sm:$0xff] %vm122, %v3492
    %3597 = vst.msk [vmem:[%s10 + $0x18] sm:$0xff] %vm122, %v3495
    %3598 = vst.msk [vmem:[%s10 + $0x20] sm:$0xff] %vm122, %v3500
    %3599 = vst.msk [vmem:[%s10 + $0x28] sm:$0xff] %vm122, %v3503
    %3600 = vst.msk [vmem:[%s10 + $0x30] sm:$0xff] %vm122, %v3508
    %3601 = vst.msk [vmem:[%s10 + $0x38] sm:$0xff] %vm122, %v3511
    %3610 = vrot.lane.b32.xlu0 %v3586, 16
    %v3611 = vpop.permute.xlu0 %3610
    %3612 = vrot.lane.b32.xlu0 %v3587, 16
    %v3613 = vpop.permute.xlu0 %3612
    %3614 = vrot.lane.b32.xlu0 %v3588, 16
    %v3615 = vpop.permute.xlu0 %3614
    %3616 = vrot.lane.b32.xlu0 %v3589, 16
    %v3617 = vpop.permute.xlu0 %3616
    %3618 = vrot.lane.b32.xlu0 %v3590, 16
    %v3619 = vpop.permute.xlu0 %3618
    %3620 = vrot.lane.b32.xlu0 %v3591, 16
    %v3621 = vpop.permute.xlu0 %3620
    %3622 = vrot.lane.b32.xlu0 %v3592, 16
    %v3623 = vpop.permute.xlu0 %3622
    %3624 = vrot.lane.b32.xlu0 %v3593, 16
    %v3625 = vpop.permute.xlu0 %3624
    %vm3634 = vcmask 195712
    %3635 = vst.msk [vmem:[%s10] sm:$0xff] %vm3634, %v3611
    %3636 = vst.msk [vmem:[%s10 + $0x8] sm:$0xff] %vm3634, %v3613
    %3637 = vst.msk [vmem:[%s10 + $0x10] sm:$0xff] %vm3634, %v3615
    %3638 = vst.msk [vmem:[%s10 + $0x18] sm:$0xff] %vm3634, %v3617
    %3639 = vst.msk [vmem:[%s10 + $0x20] sm:$0xff] %vm3634, %v3619
    %3640 = vst.msk [vmem:[%s10 + $0x28] sm:$0xff] %vm3634, %v3621
    %3641 = vst.msk [vmem:[%s10 + $0x30] sm:$0xff] %vm3634, %v3623
    %3642 = vst.msk [vmem:[%s10 + $0x38] sm:$0xff] %vm3634, %v3625
    // Predicated region
    $region50: #{decoder_forward.1} parent=1 // pred_check
      _
    $region51: #{decoder_forward.1} parent=1 // pred_check_branch
      %3644 = sbr.rel (0) target = $region53
    $region52: #{decoder_forward.1} parent=1 // pred_region
      _
    $region53: #{decoder_forward.1} parent=1 // pred_fallthru
      _
    // Predicated region
    $region54: #{decoder_forward.1} parent=1 // pred_check
      _
    $region55: #{decoder_forward.1} parent=1 // pred_check_branch
      %3646 = sbr.rel (0) target = $region57
    $region56: #{decoder_forward.1} parent=1 // pred_region
      _
    $region57: #{decoder_forward.1} parent=1 // pred_fallthru
      _
    %3647 = vsyncpa [#allocation4], 1
    %3648 = vsyncpa [#allocation6], 1

</llo_original>
